<compile_context>
chip_gen: v7x
topology: tpu7x:2x2x1
jax: 0.10.0
libtpu: 0.0.40
codegen_flags: <defaults>
</compile_context>

<pallas_src>
import math
from functools import partial

import jax
import jax.numpy as jnp
from jax.experimental import pallas as pl
from jax.experimental.pallas import tpu as pltpu


# ----------------------------------------------------------------------------
# helpers
# ----------------------------------------------------------------------------

def _round_up(v, m):
    return ((v + m - 1) // m) * m


def _pick_time_chunk(T):
    for tc in (8, 4, 2):
        if T % tc == 0:
            return tc
    return 1


# ----------------------------------------------------------------------------
# Pallas kernels
# ----------------------------------------------------------------------------

def _gru_scan(gx, wh, bh, *, reverse, time_chunk):
    """One direction of one GRU layer over the full (padded) sequence.

    gx : (T, Bp, 3*Hp) precomputed input-gate pre-activations (x @ W_ih + b_ih),
         gate blocks laid out as [r | z | n], each Hp lanes wide.
    wh : (Hp, 3*Hp) hidden-to-gate weights (same gate layout).
    bh : (1, 3*Hp) hidden bias.
    Returns hs : (T, Bp, Hp) hidden states in *original* time order.
    """
    T, Bp, G = gx.shape
    Hp = G // 3
    TC = time_chunk
    nc = T // TC

    def kernel(gx_ref, wh_ref, bh_ref, hs_ref, h_ref):
        # Hidden state lives in VMEM scratch and carries across grid steps.
        @pl.when(pl.program_id(0) == 0)
        def _():
            h_ref[...] = jnp.zeros_like(h_ref)

        w = wh_ref[...]          # (Hp, 3Hp)   hoisted out of the step loop
        b = bh_ref[...]          # (1, 3Hp)

        # Small statically-unrolled loop over the time chunk.
        for j in range(TC):
            idx = TC - 1 - j if reverse else j
            gxt = gx_ref[idx]                      # (Bp, 3Hp)
            h = h_ref[...]                         # (Bp, Hp)
            # single fused h-matmul for all three gates
            gh = jnp.dot(h, w, preferred_element_type=jnp.float32) + b
            r = jax.nn.sigmoid(gxt[:, 0:Hp] + gh[:, 0:Hp])
            z = jax.nn.sigmoid(gxt[:, Hp:2 * Hp] + gh[:, Hp:2 * Hp])
            n = jnp.tanh(gxt[:, 2 * Hp:3 * Hp] + r * gh[:, 2 * Hp:3 * Hp])
            h_new = (1.0 - z) * n + z * h          # PyTorch GRU update
            h_ref[...] = h_new
            hs_ref[idx] = h_new

    # Time reversal handled entirely by the index_map + reversed in-chunk order.
    if reverse:
        time_map = lambda c: (nc - 1 - c, 0, 0)
    else:
        time_map = lambda c: (c, 0, 0)

    grid_spec = pltpu.PrefetchScalarGridSpec(
        num_scalar_prefetch=0,
        grid=(nc,),
        in_specs=[
            pl.BlockSpec((TC, Bp, 3 * Hp), time_map),      # gate pre-activations
            pl.BlockSpec((Hp, 3 * Hp), lambda c: (0, 0)),  # hidden weights
            pl.BlockSpec((1, 3 * Hp), lambda c: (0, 0)),   # hidden bias
        ],
        out_specs=pl.BlockSpec((TC, Bp, Hp), time_map),
        scratch_shapes=[pltpu.VMEM((Bp, Hp), jnp.float32)],
    )

    return pl.pallas_call(
        kernel,
        out_shape=jax.ShapeDtypeStruct((T, Bp, Hp), jnp.float32),
        grid_spec=grid_spec,
        compiler_params=pltpu.CompilerParams(
            dimension_semantics=("arbitrary",)),   # sequential recurrence
    )(gx, wh, bh)


def _fc_logsoftmax_kernel(hf_ref, hb_ref, wf_ref, wb_ref, b_ref, out_ref):
    # concat(h_fwd, h_bwd) @ W_fc  ==  h_fwd @ W_f + h_bwd @ W_b   (no concat)
    logits = (jnp.dot(hf_ref[...], wf_ref[...], preferred_element_type=jnp.float32)
              + jnp.dot(hb_ref[...], wb_ref[...], preferred_element_type=jnp.float32)
              + b_ref[...])
    m = jnp.max(logits, axis=-1, keepdims=True)
    z = logits - m
    lse = jnp.log(jnp.sum(jnp.exp(z), axis=-1, keepdims=True))
    out_ref[...] = z - lse


# ----------------------------------------------------------------------------
# parameter construction / packing
# ----------------------------------------------------------------------------

def init_params(key, input_size, hidden_size, output_size):
    """Raw parameters in PyTorch nn.GRU / nn.Linear layout (gate order r,z,n)."""
    H = hidden_size
    keys = iter(jax.random.split(key, 18))

    def u(shape, bound):
        return jax.random.uniform(next(keys), shape, jnp.float32, -bound, bound)

    kg = 1.0 / math.sqrt(H)
    p = {}
    for layer, in_size in ((0, input_size), (1, 2 * H)):
        for d in ("fw", "bw"):
            p[f"w_ih_l{layer}_{d}"] = u((3 * H, in_size), kg)
            p[f"w_hh_l{layer}_{d}"] = u((3 * H, H), kg)
            p[f"b_ih_l{layer}_{d}"] = u((3 * H,), kg)
            p[f"b_hh_l{layer}_{d}"] = u((3 * H,), kg)
    kf = 1.0 / math.sqrt(2 * H)
    p["fc_w"] = u((output_size, 2 * H), kf)
    p["fc_b"] = u((output_size,), kf)
    return p


def pack_params(p, H, O, Hp, Op):
    """Transpose + zero-pad raw params into the kernel's lane-dense layout."""
    f32 = jnp.float32

    def gate_cols(w_t):                      # (rows, 3H) -> (rows, 3Hp)
        rows = w_t.shape[0]
        out = jnp.zeros((rows, 3 * Hp), f32)
        for g in range(3):
            out = out.at[:, g * Hp:g * Hp + H].set(w_t[:, g * H:(g + 1) * H])
        return out

    def gate_bias(b):                        # (3H,) -> (1, 3Hp)
        out = jnp.zeros((1, 3 * Hp), f32)
        for g in range(3):
            out = out.at[0, g * Hp:g * Hp + H].set(b[g * H:(g + 1) * H])
        return out

    def pad_rows(w, rows_p):
        return jnp.pad(w, ((0, rows_p - w.shape[0]), (0, 0)))

    pk = {}
    for d in ("fw", "bw"):
        pk[f"wi0_{d}"] = gate_cols(p[f"w_ih_l0_{d}"].T)                    # (I, 3Hp)
        pk[f"wh0_{d}"] = pad_rows(gate_cols(p[f"w_hh_l0_{d}"].T), Hp)      # (Hp, 3Hp)
        pk[f"bi0_{d}"] = gate_bias(p[f"b_ih_l0_{d}"])
        pk[f"bh0_{d}"] = gate_bias(p[f"b_hh_l0_{d}"])
        w_ih1 = p[f"w_ih_l1_{d}"]                                          # (3H, 2H)
        pk[f"wi1_{d}_xf"] = pad_rows(gate_cols(w_ih1[:, :H].T), Hp)        # (Hp, 3Hp)
        pk[f"wi1_{d}_xb"] = pad_rows(gate_cols(w_ih1[:, H:].T), Hp)
        pk[f"wh1_{d}"] = pad_rows(gate_cols(p[f"w_hh_l1_{d}"].T), Hp)
        pk[f"bi1_{d}"] = gate_bias(p[f"b_ih_l1_{d}"])
        pk[f"bh1_{d}"] = gate_bias(p[f"b_hh_l1_{d}"])

    fc_w = p["fc_w"]                                                       # (O, 2H)
    pk["wfc_f"] = jnp.zeros((Hp, Op), f32).at[:H, :O].set(fc_w[:, :H].T)
    pk["wfc_b"] = jnp.zeros((Hp, Op), f32).at[:H, :O].set(fc_w[:, H:].T)
    # padded logit lanes get a huge negative bias -> contribute 0 to softmax
    pk["bfc"] = jnp.full((1, Op), -1e30, f32).at[0, :O].set(p["fc_b"])
    return pk


# ----------------------------------------------------------------------------
# forward pass
# ----------------------------------------------------------------------------

@partial(jax.jit, static_argnums=(2, 3))
def bigru_forward(x, raw_params, hidden_size, output_size):
    """x: (B, T, I) float32 -> (B, O) log-softmax of fc(outputs[:, -1, :])."""
    B, T, I = x.shape
    H, O = hidden_size, output_size
    Hp = _round_up(H, 128)
    Op = _round_up(O, 128)
    Bp = _round_up(B, 8)
    TC = _pick_time_chunk(T)

    pk = pack_params(raw_params, H, O, Hp, Op)
    prec = jax.lax.Precision.HIGHEST

    xp = jnp.pad(x, ((0, Bp - B), (0, 0), (0, 0)))          # pad batch to 8

    # ---- layer 0: hoisted input projections (time-major output, no transpose)
    gx0_fw = jnp.einsum("bti,ig->tbg", xp, pk["wi0_fw"], precision=prec) + pk["bi0_fw"]
    gx0_bw = jnp.einsum("bti,ig->tbg", xp, pk["wi0_bw"], precision=prec) + pk["bi0_bw"]

    h0_fw = _gru_scan(gx0_fw, pk["wh0_fw"], pk["bh0_fw"], reverse=False, time_chunk=TC)
    h0_bw = _gru_scan(gx0_bw, pk["wh0_bw"], pk["bh0_bw"], reverse=True, time_chunk=TC)

    # ---- layer 1: input projections from layer-0 outputs (split, no concat)
    gx1_fw = (jnp.einsum("tbh,hg->tbg", h0_fw, pk["wi1_fw_xf"], precision=prec)
              + jnp.einsum("tbh,hg->tbg", h0_bw, pk["wi1_fw_xb"], precision=prec)
              + pk["bi1_fw"])
    gx1_bw = (jnp.einsum("tbh,hg->tbg", h0_fw, pk["wi1_bw_xf"], precision=prec)
              + jnp.einsum("tbh,hg->tbg", h0_bw, pk["wi1_bw_xb"], precision=prec)
              + pk["bi1_bw"])

    h1_fw = _gru_scan(gx1_fw, pk["wh1_fw"], pk["bh1_fw"], reverse=False, time_chunk=TC)
    h1_bw = _gru_scan(gx1_bw, pk["wh1_bw"], pk["bh1_bw"], reverse=True, time_chunk=TC)

    # ---- fc(outputs[:, -1, :]) + log_softmax
    out_pad = pl.pallas_call(
        _fc_logsoftmax_kernel,
        out_shape=jax.ShapeDtypeStruct((Bp, Op), jnp.float32),
    )(h1_fw[T - 1], h1_bw[T - 1], pk["wfc_f"], pk["wfc_b"], pk["bfc"])

    return out_pad[:B, :O]


# ----------------------------------------------------------------------------
# pure-JAX reference (PyTorch nn.GRU semantics, gate order r,z,n)
# ----------------------------------------------------------------------------

def bigru_reference(x, p, H):
    prec = jax.lax.Precision.HIGHEST

    def cell(xt, h, w_ih, w_hh, b_ih, b_hh):
        gi = jnp.dot(xt, w_ih.T, precision=prec) + b_ih
        gh = jnp.dot(h, w_hh.T, precision=prec) + b_hh
        r = jax.nn.sigmoid(gi[:, :H] + gh[:, :H])
        z = jax.nn.sigmoid(gi[:, H:2 * H] + gh[:, H:2 * H])
        n = jnp.tanh(gi[:, 2 * H:] + r * gh[:, 2 * H:])
        return (1.0 - z) * n + z * h

    B, T, _ = x.shape
    xs = [x[:, t, :] for t in range(T)]

    def run(seq, layer, d):
        w_ih = p[f"w_ih_l{layer}_{d}"]; w_hh = p[f"w_hh_l{layer}_{d}"]
        b_ih = p[f"b_ih_l{layer}_{d}"]; b_hh = p[f"b_hh_l{layer}_{d}"]
        h = jnp.zeros((B, H), jnp.float32)
        out = [None] * T
        order = range(T) if d == "fw" else range(T - 1, -1, -1)
        for t in order:
            h = cell(seq[t], h, w_ih, w_hh, b_ih, b_hh)
            out[t] = h
        return out

    h0f = run(xs, 0, "fw"); h0b = run(xs, 0, "bw")
    l0 = [jnp.concatenate([h0f[t], h0b[t]], axis=-1) for t in range(T)]
    h1f = run(l0, 1, "fw"); h1b = run(l0, 1, "bw")
    last = jnp.concatenate([h1f[T - 1], h1b[T - 1]], axis=-1)
    logits = jnp.dot(last, p["fc_w"].T, precision=prec) + p["fc_b"]
    return jax.nn.log_softmax(logits, axis=-1)


# ----------------------------------------------------------------------------

if __name__ == "__main__":
    B, T, I, H, O = 4, 16, 16, 32, 10
    key = jax.random.PRNGKey(0)
    kx, kp = jax.random.split(key)
    x = jax.random.normal(kx, (B, T, I), jnp.float32)
    params = init_params(kp, I, H, O)

    out = bigru_forward(x, params, H, O)
    out = jax.block_until_ready(out)

    ref = bigru_reference(x, params, H)
    assert out.shape == (B, O)
    assert bool(jnp.allclose(out, ref, atol=1e-4, rtol=1e-4)), (
        f"max abs diff {float(jnp.max(jnp.abs(out - ref)))}")

    print("KERNEL_OK")
</pallas_src>

<mosaic_0001>
module attributes {stable_mosaic.version = 11 : i64} {
  func.func @kernel(%arg0: i32, %arg1: memref<8x8x384xf32, #tpu.memory_space<vmem>>, %arg2: memref<128x384xf32, #tpu.memory_space<vmem>>, %arg3: memref<1x384xf32, #tpu.memory_space<vmem>>, %arg4: memref<8x8x128xf32, #tpu.memory_space<vmem>>, %arg5: memref<8x128xf32, #tpu.memory_space<vmem>>) attributes {dimension_semantics = [#tpu.dimension_semantics<arbitrary>], iteration_bounds = array<i64: 2>, scalar_prefetch = 0 : i64, scratch_operands = 1 : i64, tpu.core_type = #tpu.core_type<tc>, window_params = [{transform_indices = @transform_0, window_bounds = array<i64: 8, 8, 384>}, {pipeline_mode = #tpu.pipeline_mode<synchronous>, transform_indices = @transform_1, window_bounds = array<i64: 128, 384>}, {pipeline_mode = #tpu.pipeline_mode<synchronous>, transform_indices = @transform_2, window_bounds = array<i64: 1, 384>}, {transform_indices = @transform_3, window_bounds = array<i64: 8, 8, 128>}]} {
    %c0_i32 = arith.constant 0 : i32
    %0 = arith.cmpi eq, %arg0, %c0_i32 : i32
    %1 = arith.extui %0 : i1 to i32
    %c0_i32_0 = arith.constant 0 : i32
    %2 = arith.cmpi ne, %1, %c0_i32_0 : i32
    scf.if %2 {
      %cst_108 = arith.constant 0.000000e+00 : f32
      %293 = vector.broadcast %cst_108 : f32 to vector<8x128xf32>
      %c0_109 = arith.constant 0 : index
      %c0_110 = arith.constant 0 : index
      %294 = vector.load %arg5[%c0_109, %c0_110] : memref<8x128xf32, #tpu.memory_space<vmem>>, vector<8x128xf32>
      tpu.vector_store %arg5[%c0_109, %c0_110], %293 {strides = array<i32>} : memref<8x128xf32, #tpu.memory_space<vmem>>, vector<8x128xf32>,
    } else {
    }
    %c0 = arith.constant 0 : index
    %c0_1 = arith.constant 0 : index
    %3 = vector.load %arg2[%c0, %c0_1] : memref<128x384xf32, #tpu.memory_space<vmem>>, vector<128x384xf32>
    %c0_2 = arith.constant 0 : index
    %c0_3 = arith.constant 0 : index
    %4 = vector.load %arg3[%c0_2, %c0_3] : memref<1x384xf32, #tpu.memory_space<vmem>>, vector<1x384xf32>
    %c0_4 = arith.constant 0 : index
    %c0_5 = arith.constant 0 : index
    %c0_6 = arith.constant 0 : index
    %5 = vector.load %arg1[%c0_4, %c0_5, %c0_6] : memref<8x8x384xf32, #tpu.memory_space<vmem>>, vector<1x8x384xf32>
    %6 = vector.shape_cast %5 : vector<1x8x384xf32> to vector<8x384xf32>
    %c0_7 = arith.constant 0 : index
    %c0_8 = arith.constant 0 : index
    %7 = vector.load %arg5[%c0_7, %c0_8] : memref<8x128xf32, #tpu.memory_space<vmem>>, vector<8x128xf32>
    %cst = arith.constant dense<0.000000e+00> : vector<8x384xf32>
    %8 = tpu.matmul %7, %3, %cst {dimension_numbers = #tpu.dot_dimension_numbers<[1], [0], [0], [1], [0, 0, 1, 1], [], []>} : vector<8x128xf32>, vector<128x384xf32>, vector<8x384xf32> -> vector<8x384xf32>
    %9 = vector.broadcast %4 : vector<1x384xf32> to vector<8x384xf32>
    %10 = arith.addf %8, %9 : vector<8x384xf32>
    %11 = vector.extract_strided_slice %6 {offsets = [0, 0], sizes = [8, 128], strides = [1, 1]} : vector<8x384xf32> to vector<8x128xf32>
    %12 = vector.extract_strided_slice %10 {offsets = [0, 0], sizes = [8, 128], strides = [1, 1]} : vector<8x384xf32> to vector<8x128xf32>
    %13 = arith.addf %11, %12 : vector<8x128xf32>
    %14 = arith.negf %13 : vector<8x128xf32>
    %15 = math.exp %14 : vector<8x128xf32>
    %cst_9 = arith.constant 1.000000e+00 : f32
    %16 = vector.broadcast %cst_9 : f32 to vector<8x128xf32>
    %17 = arith.addf %16, %15 : vector<8x128xf32>
    %18 = arith.divf %16, %17 : vector<8x128xf32>
    %19 = vector.extract_strided_slice %6 {offsets = [0, 128], sizes = [8, 128], strides = [1, 1]} : vector<8x384xf32> to vector<8x128xf32>
    %20 = vector.extract_strided_slice %10 {offsets = [0, 128], sizes = [8, 128], strides = [1, 1]} : vector<8x384xf32> to vector<8x128xf32>
    %21 = arith.addf %19, %20 : vector<8x128xf32>
    %22 = arith.negf %21 : vector<8x128xf32>
    %23 = math.exp %22 : vector<8x128xf32>
    %cst_10 = arith.constant 1.000000e+00 : f32
    %24 = vector.broadcast %cst_10 : f32 to vector<8x128xf32>
    %25 = arith.addf %24, %23 : vector<8x128xf32>
    %26 = arith.divf %24, %25 : vector<8x128xf32>
    %27 = vector.extract_strided_slice %6 {offsets = [0, 256], sizes = [8, 128], strides = [1, 1]} : vector<8x384xf32> to vector<8x128xf32>
    %28 = vector.extract_strided_slice %10 {offsets = [0, 256], sizes = [8, 128], strides = [1, 1]} : vector<8x384xf32> to vector<8x128xf32>
    %29 = arith.mulf %18, %28 : vector<8x128xf32>
    %30 = arith.addf %27, %29 : vector<8x128xf32>
    %31 = math.tanh %30 : vector<8x128xf32>
    %cst_11 = arith.constant 1.000000e+00 : f32
    %32 = vector.broadcast %cst_11 : f32 to vector<8x128xf32>
    %33 = arith.subf %32, %26 : vector<8x128xf32>
    %34 = arith.mulf %33, %31 : vector<8x128xf32>
    %35 = arith.mulf %26, %7 : vector<8x128xf32>
    %36 = arith.addf %34, %35 : vector<8x128xf32>
    %c0_12 = arith.constant 0 : index
    %c0_13 = arith.constant 0 : index
    %37 = vector.load %arg5[%c0_12, %c0_13] : memref<8x128xf32, #tpu.memory_space<vmem>>, vector<8x128xf32>
    tpu.vector_store %arg5[%c0_12, %c0_13], %36 {strides = array<i32>} : memref<8x128xf32, #tpu.memory_space<vmem>>, vector<8x128xf32>,
    %c0_14 = arith.constant 0 : index
    %c0_15 = arith.constant 0 : index
    %c0_16 = arith.constant 0 : index
    %38 = vector.load %arg4[%c0_14, %c0_15, %c0_16] : memref<8x8x128xf32, #tpu.memory_space<vmem>>, vector<1x8x128xf32>
    %39 = vector.shape_cast %38 : vector<1x8x128xf32> to vector<8x128xf32>
    %40 = vector.shape_cast %36 : vector<8x128xf32> to vector<1x8x128xf32>
    tpu.vector_store %arg4[%c0_14, %c0_15, %c0_16], %40 {strides = array<i32>} : memref<8x8x128xf32, #tpu.memory_space<vmem>>, vector<1x8x128xf32>,
    %c1 = arith.constant 1 : index
    %c0_17 = arith.constant 0 : index
    %c0_18 = arith.constant 0 : index
    %41 = vector.load %arg1[%c1, %c0_17, %c0_18] : memref<8x8x384xf32, #tpu.memory_space<vmem>>, vector<1x8x384xf32>
    %42 = vector.shape_cast %41 : vector<1x8x384xf32> to vector<8x384xf32>
    %c0_19 = arith.constant 0 : index
    %c0_20 = arith.constant 0 : index
    %43 = vector.load %arg5[%c0_19, %c0_20] : memref<8x128xf32, #tpu.memory_space<vmem>>, vector<8x128xf32>
    %cst_21 = arith.constant dense<0.000000e+00> : vector<8x384xf32>
    %44 = tpu.matmul %43, %3, %cst_21 {dimension_numbers = #tpu.dot_dimension_numbers<[1], [0], [0], [1], [0, 0, 1, 1], [], []>} : vector<8x128xf32>, vector<128x384xf32>, vector<8x384xf32> -> vector<8x384xf32>
    %45 = vector.broadcast %4 : vector<1x384xf32> to vector<8x384xf32>
    %46 = arith.addf %44, %45 : vector<8x384xf32>
    %47 = vector.extract_strided_slice %42 {offsets = [0, 0], sizes = [8, 128], strides = [1, 1]} : vector<8x384xf32> to vector<8x128xf32>
    %48 = vector.extract_strided_slice %46 {offsets = [0, 0], sizes = [8, 128], strides = [1, 1]} : vector<8x384xf32> to vector<8x128xf32>
    %49 = arith.addf %47, %48 : vector<8x128xf32>
    %50 = arith.negf %49 : vector<8x128xf32>
    %51 = math.exp %50 : vector<8x128xf32>
    %cst_22 = arith.constant 1.000000e+00 : f32
    %52 = vector.broadcast %cst_22 : f32 to vector<8x128xf32>
    %53 = arith.addf %52, %51 : vector<8x128xf32>
    %54 = arith.divf %52, %53 : vector<8x128xf32>
    %55 = vector.extract_strided_slice %42 {offsets = [0, 128], sizes = [8, 128], strides = [1, 1]} : vector<8x384xf32> to vector<8x128xf32>
    %56 = vector.extract_strided_slice %46 {offsets = [0, 128], sizes = [8, 128], strides = [1, 1]} : vector<8x384xf32> to vector<8x128xf32>
    %57 = arith.addf %55, %56 : vector<8x128xf32>
    %58 = arith.negf %57 : vector<8x128xf32>
    %59 = math.exp %58 : vector<8x128xf32>
    %cst_23 = arith.constant 1.000000e+00 : f32
    %60 = vector.broadcast %cst_23 : f32 to vector<8x128xf32>
    %61 = arith.addf %60, %59 : vector<8x128xf32>
    %62 = arith.divf %60, %61 : vector<8x128xf32>
    %63 = vector.extract_strided_slice %42 {offsets = [0, 256], sizes = [8, 128], strides = [1, 1]} : vector<8x384xf32> to vector<8x128xf32>
    %64 = vector.extract_strided_slice %46 {offsets = [0, 256], sizes = [8, 128], strides = [1, 1]} : vector<8x384xf32> to vector<8x128xf32>
    %65 = arith.mulf %54, %64 : vector<8x128xf32>
    %66 = arith.addf %63, %65 : vector<8x128xf32>
    %67 = math.tanh %66 : vector<8x128xf32>
    %cst_24 = arith.constant 1.000000e+00 : f32
    %68 = vector.broadcast %cst_24 : f32 to vector<8x128xf32>
    %69 = arith.subf %68, %62 : vector<8x128xf32>
    %70 = arith.mulf %69, %67 : vector<8x128xf32>
    %71 = arith.mulf %62, %43 : vector<8x128xf32>
    %72 = arith.addf %70, %71 : vector<8x128xf32>
    %c0_25 = arith.constant 0 : index
    %c0_26 = arith.constant 0 : index
    %73 = vector.load %arg5[%c0_25, %c0_26] : memref<8x128xf32, #tpu.memory_space<vmem>>, vector<8x128xf32>
    tpu.vector_store %arg5[%c0_25, %c0_26], %72 {strides = array<i32>} : memref<8x128xf32, #tpu.memory_space<vmem>>, vector<8x128xf32>,
    %c1_27 = arith.constant 1 : index
    %c0_28 = arith.constant 0 : index
    %c0_29 = arith.constant 0 : index
    %74 = vector.load %arg4[%c1_27, %c0_28, %c0_29] : memref<8x8x128xf32, #tpu.memory_space<vmem>>, vector<1x8x128xf32>
    %75 = vector.shape_cast %74 : vector<1x8x128xf32> to vector<8x128xf32>
    %76 = vector.shape_cast %72 : vector<8x128xf32> to vector<1x8x128xf32>
    tpu.vector_store %arg4[%c1_27, %c0_28, %c0_29], %76 {strides = array<i32>} : memref<8x8x128xf32, #tpu.memory_space<vmem>>, vector<1x8x128xf32>,
    %c2 = arith.constant 2 : index
    %c0_30 = arith.constant 0 : index
    %c0_31 = arith.constant 0 : index
    %77 = vector.load %arg1[%c2, %c0_30, %c0_31] : memref<8x8x384xf32, #tpu.memory_space<vmem>>, vector<1x8x384xf32>
    %78 = vector.shape_cast %77 : vector<1x8x384xf32> to vector<8x384xf32>
    %c0_32 = arith.constant 0 : index
    %c0_33 = arith.constant 0 : index
    %79 = vector.load %arg5[%c0_32, %c0_33] : memref<8x128xf32, #tpu.memory_space<vmem>>, vector<8x128xf32>
    %cst_34 = arith.constant dense<0.000000e+00> : vector<8x384xf32>
    %80 = tpu.matmul %79, %3, %cst_34 {dimension_numbers = #tpu.dot_dimension_numbers<[1], [0], [0], [1], [0, 0, 1, 1], [], []>} : vector<8x128xf32>, vector<128x384xf32>, vector<8x384xf32> -> vector<8x384xf32>
    %81 = vector.broadcast %4 : vector<1x384xf32> to vector<8x384xf32>
    %82 = arith.addf %80, %81 : vector<8x384xf32>
    %83 = vector.extract_strided_slice %78 {offsets = [0, 0], sizes = [8, 128], strides = [1, 1]} : vector<8x384xf32> to vector<8x128xf32>
    %84 = vector.extract_strided_slice %82 {offsets = [0, 0], sizes = [8, 128], strides = [1, 1]} : vector<8x384xf32> to vector<8x128xf32>
    %85 = arith.addf %83, %84 : vector<8x128xf32>
    %86 = arith.negf %85 : vector<8x128xf32>
    %87 = math.exp %86 : vector<8x128xf32>
    %cst_35 = arith.constant 1.000000e+00 : f32
    %88 = vector.broadcast %cst_35 : f32 to vector<8x128xf32>
    %89 = arith.addf %88, %87 : vector<8x128xf32>
    %90 = arith.divf %88, %89 : vector<8x128xf32>
    %91 = vector.extract_strided_slice %78 {offsets = [0, 128], sizes = [8, 128], strides = [1, 1]} : vector<8x384xf32> to vector<8x128xf32>
    %92 = vector.extract_strided_slice %82 {offsets = [0, 128], sizes = [8, 128], strides = [1, 1]} : vector<8x384xf32> to vector<8x128xf32>
    %93 = arith.addf %91, %92 : vector<8x128xf32>
    %94 = arith.negf %93 : vector<8x128xf32>
    %95 = math.exp %94 : vector<8x128xf32>
    %cst_36 = arith.constant 1.000000e+00 : f32
    %96 = vector.broadcast %cst_36 : f32 to vector<8x128xf32>
    %97 = arith.addf %96, %95 : vector<8x128xf32>
    %98 = arith.divf %96, %97 : vector<8x128xf32>
    %99 = vector.extract_strided_slice %78 {offsets = [0, 256], sizes = [8, 128], strides = [1, 1]} : vector<8x384xf32> to vector<8x128xf32>
    %100 = vector.extract_strided_slice %82 {offsets = [0, 256], sizes = [8, 128], strides = [1, 1]} : vector<8x384xf32> to vector<8x128xf32>
    %101 = arith.mulf %90, %100 : vector<8x128xf32>
    %102 = arith.addf %99, %101 : vector<8x128xf32>
    %103 = math.tanh %102 : vector<8x128xf32>
    %cst_37 = arith.constant 1.000000e+00 : f32
    %104 = vector.broadcast %cst_37 : f32 to vector<8x128xf32>
    %105 = arith.subf %104, %98 : vector<8x128xf32>
    %106 = arith.mulf %105, %103 : vector<8x128xf32>
    %107 = arith.mulf %98, %79 : vector<8x128xf32>
    %108 = arith.addf %106, %107 : vector<8x128xf32>
    %c0_38 = arith.constant 0 : index
    %c0_39 = arith.constant 0 : index
    %109 = vector.load %arg5[%c0_38, %c0_39] : memref<8x128xf32, #tpu.memory_space<vmem>>, vector<8x128xf32>
    tpu.vector_store %arg5[%c0_38, %c0_39], %108 {strides = array<i32>} : memref<8x128xf32, #tpu.memory_space<vmem>>, vector<8x128xf32>,
    %c2_40 = arith.constant 2 : index
    %c0_41 = arith.constant 0 : index
    %c0_42 = arith.constant 0 : index
    %110 = vector.load %arg4[%c2_40, %c0_41, %c0_42] : memref<8x8x128xf32, #tpu.memory_space<vmem>>, vector<1x8x128xf32>
    %111 = vector.shape_cast %110 : vector<1x8x128xf32> to vector<8x128xf32>
    %112 = vector.shape_cast %108 : vector<8x128xf32> to vector<1x8x128xf32>
    tpu.vector_store %arg4[%c2_40, %c0_41, %c0_42], %112 {strides = array<i32>} : memref<8x8x128xf32, #tpu.memory_space<vmem>>, vector<1x8x128xf32>,
    %c3 = arith.constant 3 : index
    %c0_43 = arith.constant 0 : index
    %c0_44 = arith.constant 0 : index
    %113 = vector.load %arg1[%c3, %c0_43, %c0_44] : memref<8x8x384xf32, #tpu.memory_space<vmem>>, vector<1x8x384xf32>
    %114 = vector.shape_cast %113 : vector<1x8x384xf32> to vector<8x384xf32>
    %c0_45 = arith.constant 0 : index
    %c0_46 = arith.constant 0 : index
    %115 = vector.load %arg5[%c0_45, %c0_46] : memref<8x128xf32, #tpu.memory_space<vmem>>, vector<8x128xf32>
    %cst_47 = arith.constant dense<0.000000e+00> : vector<8x384xf32>
    %116 = tpu.matmul %115, %3, %cst_47 {dimension_numbers = #tpu.dot_dimension_numbers<[1], [0], [0], [1], [0, 0, 1, 1], [], []>} : vector<8x128xf32>, vector<128x384xf32>, vector<8x384xf32> -> vector<8x384xf32>
    %117 = vector.broadcast %4 : vector<1x384xf32> to vector<8x384xf32>
    %118 = arith.addf %116, %117 : vector<8x384xf32>
    %119 = vector.extract_strided_slice %114 {offsets = [0, 0], sizes = [8, 128], strides = [1, 1]} : vector<8x384xf32> to vector<8x128xf32>
    %120 = vector.extract_strided_slice %118 {offsets = [0, 0], sizes = [8, 128], strides = [1, 1]} : vector<8x384xf32> to vector<8x128xf32>
    %121 = arith.addf %119, %120 : vector<8x128xf32>
    %122 = arith.negf %121 : vector<8x128xf32>
    %123 = math.exp %122 : vector<8x128xf32>
    %cst_48 = arith.constant 1.000000e+00 : f32
    %124 = vector.broadcast %cst_48 : f32 to vector<8x128xf32>
    %125 = arith.addf %124, %123 : vector<8x128xf32>
    %126 = arith.divf %124, %125 : vector<8x128xf32>
    %127 = vector.extract_strided_slice %114 {offsets = [0, 128], sizes = [8, 128], strides = [1, 1]} : vector<8x384xf32> to vector<8x128xf32>
    %128 = vector.extract_strided_slice %118 {offsets = [0, 128], sizes = [8, 128], strides = [1, 1]} : vector<8x384xf32> to vector<8x128xf32>
    %129 = arith.addf %127, %128 : vector<8x128xf32>
    %130 = arith.negf %129 : vector<8x128xf32>
    %131 = math.exp %130 : vector<8x128xf32>
    %cst_49 = arith.constant 1.000000e+00 : f32
    %132 = vector.broadcast %cst_49 : f32 to vector<8x128xf32>
    %133 = arith.addf %132, %131 : vector<8x128xf32>
    %134 = arith.divf %132, %133 : vector<8x128xf32>
    %135 = vector.extract_strided_slice %114 {offsets = [0, 256], sizes = [8, 128], strides = [1, 1]} : vector<8x384xf32> to vector<8x128xf32>
    %136 = vector.extract_strided_slice %118 {offsets = [0, 256], sizes = [8, 128], strides = [1, 1]} : vector<8x384xf32> to vector<8x128xf32>
    %137 = arith.mulf %126, %136 : vector<8x128xf32>
    %138 = arith.addf %135, %137 : vector<8x128xf32>
    %139 = math.tanh %138 : vector<8x128xf32>
    %cst_50 = arith.constant 1.000000e+00 : f32
    %140 = vector.broadcast %cst_50 : f32 to vector<8x128xf32>
    %141 = arith.subf %140, %134 : vector<8x128xf32>
    %142 = arith.mulf %141, %139 : vector<8x128xf32>
    %143 = arith.mulf %134, %115 : vector<8x128xf32>
    %144 = arith.addf %142, %143 : vector<8x128xf32>
    %c0_51 = arith.constant 0 : index
    %c0_52 = arith.constant 0 : index
    %145 = vector.load %arg5[%c0_51, %c0_52] : memref<8x128xf32, #tpu.memory_space<vmem>>, vector<8x128xf32>
    tpu.vector_store %arg5[%c0_51, %c0_52], %144 {strides = array<i32>} : memref<8x128xf32, #tpu.memory_space<vmem>>, vector<8x128xf32>,
    %c3_53 = arith.constant 3 : index
    %c0_54 = arith.constant 0 : index
    %c0_55 = arith.constant 0 : index
    %146 = vector.load %arg4[%c3_53, %c0_54, %c0_55] : memref<8x8x128xf32, #tpu.memory_space<vmem>>, vector<1x8x128xf32>
    %147 = vector.shape_cast %146 : vector<1x8x128xf32> to vector<8x128xf32>
    %148 = vector.shape_cast %144 : vector<8x128xf32> to vector<1x8x128xf32>
    tpu.vector_store %arg4[%c3_53, %c0_54, %c0_55], %148 {strides = array<i32>} : memref<8x8x128xf32, #tpu.memory_space<vmem>>, vector<1x8x128xf32>,
    %c4 = arith.constant 4 : index
    %c0_56 = arith.constant 0 : index
    %c0_57 = arith.constant 0 : index
    %149 = vector.load %arg1[%c4, %c0_56, %c0_57] : memref<8x8x384xf32, #tpu.memory_space<vmem>>, vector<1x8x384xf32>
    %150 = vector.shape_cast %149 : vector<1x8x384xf32> to vector<8x384xf32>
    %c0_58 = arith.constant 0 : index
    %c0_59 = arith.constant 0 : index
    %151 = vector.load %arg5[%c0_58, %c0_59] : memref<8x128xf32, #tpu.memory_space<vmem>>, vector<8x128xf32>
    %cst_60 = arith.constant dense<0.000000e+00> : vector<8x384xf32>
    %152 = tpu.matmul %151, %3, %cst_60 {dimension_numbers = #tpu.dot_dimension_numbers<[1], [0], [0], [1], [0, 0, 1, 1], [], []>} : vector<8x128xf32>, vector<128x384xf32>, vector<8x384xf32> -> vector<8x384xf32>
    %153 = vector.broadcast %4 : vector<1x384xf32> to vector<8x384xf32>
    %154 = arith.addf %152, %153 : vector<8x384xf32>
    %155 = vector.extract_strided_slice %150 {offsets = [0, 0], sizes = [8, 128], strides = [1, 1]} : vector<8x384xf32> to vector<8x128xf32>
    %156 = vector.extract_strided_slice %154 {offsets = [0, 0], sizes = [8, 128], strides = [1, 1]} : vector<8x384xf32> to vector<8x128xf32>
    %157 = arith.addf %155, %156 : vector<8x128xf32>
    %158 = arith.negf %157 : vector<8x128xf32>
    %159 = math.exp %158 : vector<8x128xf32>
    %cst_61 = arith.constant 1.000000e+00 : f32
    %160 = vector.broadcast %cst_61 : f32 to vector<8x128xf32>
    %161 = arith.addf %160, %159 : vector<8x128xf32>
    %162 = arith.divf %160, %161 : vector<8x128xf32>
    %163 = vector.extract_strided_slice %150 {offsets = [0, 128], sizes = [8, 128], strides = [1, 1]} : vector<8x384xf32> to vector<8x128xf32>
    %164 = vector.extract_strided_slice %154 {offsets = [0, 128], sizes = [8, 128], strides = [1, 1]} : vector<8x384xf32> to vector<8x128xf32>
    %165 = arith.addf %163, %164 : vector<8x128xf32>
    %166 = arith.negf %165 : vector<8x128xf32>
    %167 = math.exp %166 : vector<8x128xf32>
    %cst_62 = arith.constant 1.000000e+00 : f32
    %168 = vector.broadcast %cst_62 : f32 to vector<8x128xf32>
    %169 = arith.addf %168, %167 : vector<8x128xf32>
    %170 = arith.divf %168, %169 : vector<8x128xf32>
    %171 = vector.extract_strided_slice %150 {offsets = [0, 256], sizes = [8, 128], strides = [1, 1]} : vector<8x384xf32> to vector<8x128xf32>
    %172 = vector.extract_strided_slice %154 {offsets = [0, 256], sizes = [8, 128], strides = [1, 1]} : vector<8x384xf32> to vector<8x128xf32>
    %173 = arith.mulf %162, %172 : vector<8x128xf32>
    %174 = arith.addf %171, %173 : vector<8x128xf32>
    %175 = math.tanh %174 : vector<8x128xf32>
    %cst_63 = arith.constant 1.000000e+00 : f32
    %176 = vector.broadcast %cst_63 : f32 to vector<8x128xf32>
    %177 = arith.subf %176, %170 : vector<8x128xf32>
    %178 = arith.mulf %177, %175 : vector<8x128xf32>
    %179 = arith.mulf %170, %151 : vector<8x128xf32>
    %180 = arith.addf %178, %179 : vector<8x128xf32>
    %c0_64 = arith.constant 0 : index
    %c0_65 = arith.constant 0 : index
    %181 = vector.load %arg5[%c0_64, %c0_65] : memref<8x128xf32, #tpu.memory_space<vmem>>, vector<8x128xf32>
    tpu.vector_store %arg5[%c0_64, %c0_65], %180 {strides = array<i32>} : memref<8x128xf32, #tpu.memory_space<vmem>>, vector<8x128xf32>,
    %c4_66 = arith.constant 4 : index
    %c0_67 = arith.constant 0 : index
    %c0_68 = arith.constant 0 : index
    %182 = vector.load %arg4[%c4_66, %c0_67, %c0_68] : memref<8x8x128xf32, #tpu.memory_space<vmem>>, vector<1x8x128xf32>
    %183 = vector.shape_cast %182 : vector<1x8x128xf32> to vector<8x128xf32>
    %184 = vector.shape_cast %180 : vector<8x128xf32> to vector<1x8x128xf32>
    tpu.vector_store %arg4[%c4_66, %c0_67, %c0_68], %184 {strides = array<i32>} : memref<8x8x128xf32, #tpu.memory_space<vmem>>, vector<1x8x128xf32>,
    %c5 = arith.constant 5 : index
    %c0_69 = arith.constant 0 : index
    %c0_70 = arith.constant 0 : index
    %185 = vector.load %arg1[%c5, %c0_69, %c0_70] : memref<8x8x384xf32, #tpu.memory_space<vmem>>, vector<1x8x384xf32>
    %186 = vector.shape_cast %185 : vector<1x8x384xf32> to vector<8x384xf32>
    %c0_71 = arith.constant 0 : index
    %c0_72 = arith.constant 0 : index
    %187 = vector.load %arg5[%c0_71, %c0_72] : memref<8x128xf32, #tpu.memory_space<vmem>>, vector<8x128xf32>
    %cst_73 = arith.constant dense<0.000000e+00> : vector<8x384xf32>
    %188 = tpu.matmul %187, %3, %cst_73 {dimension_numbers = #tpu.dot_dimension_numbers<[1], [0], [0], [1], [0, 0, 1, 1], [], []>} : vector<8x128xf32>, vector<128x384xf32>, vector<8x384xf32> -> vector<8x384xf32>
    %189 = vector.broadcast %4 : vector<1x384xf32> to vector<8x384xf32>
    %190 = arith.addf %188, %189 : vector<8x384xf32>
    %191 = vector.extract_strided_slice %186 {offsets = [0, 0], sizes = [8, 128], strides = [1, 1]} : vector<8x384xf32> to vector<8x128xf32>
    %192 = vector.extract_strided_slice %190 {offsets = [0, 0], sizes = [8, 128], strides = [1, 1]} : vector<8x384xf32> to vector<8x128xf32>
    %193 = arith.addf %191, %192 : vector<8x128xf32>
    %194 = arith.negf %193 : vector<8x128xf32>
    %195 = math.exp %194 : vector<8x128xf32>
    %cst_74 = arith.constant 1.000000e+00 : f32
    %196 = vector.broadcast %cst_74 : f32 to vector<8x128xf32>
    %197 = arith.addf %196, %195 : vector<8x128xf32>
    %198 = arith.divf %196, %197 : vector<8x128xf32>
    %199 = vector.extract_strided_slice %186 {offsets = [0, 128], sizes = [8, 128], strides = [1, 1]} : vector<8x384xf32> to vector<8x128xf32>
    %200 = vector.extract_strided_slice %190 {offsets = [0, 128], sizes = [8, 128], strides = [1, 1]} : vector<8x384xf32> to vector<8x128xf32>
    %201 = arith.addf %199, %200 : vector<8x128xf32>
    %202 = arith.negf %201 : vector<8x128xf32>
    %203 = math.exp %202 : vector<8x128xf32>
    %cst_75 = arith.constant 1.000000e+00 : f32
    %204 = vector.broadcast %cst_75 : f32 to vector<8x128xf32>
    %205 = arith.addf %204, %203 : vector<8x128xf32>
    %206 = arith.divf %204, %205 : vector<8x128xf32>
    %207 = vector.extract_strided_slice %186 {offsets = [0, 256], sizes = [8, 128], strides = [1, 1]} : vector<8x384xf32> to vector<8x128xf32>
    %208 = vector.extract_strided_slice %190 {offsets = [0, 256], sizes = [8, 128], strides = [1, 1]} : vector<8x384xf32> to vector<8x128xf32>
    %209 = arith.mulf %198, %208 : vector<8x128xf32>
    %210 = arith.addf %207, %209 : vector<8x128xf32>
    %211 = math.tanh %210 : vector<8x128xf32>
    %cst_76 = arith.constant 1.000000e+00 : f32
    %212 = vector.broadcast %cst_76 : f32 to vector<8x128xf32>
    %213 = arith.subf %212, %206 : vector<8x128xf32>
    %214 = arith.mulf %213, %211 : vector<8x128xf32>
    %215 = arith.mulf %206, %187 : vector<8x128xf32>
    %216 = arith.addf %214, %215 : vector<8x128xf32>
    %c0_77 = arith.constant 0 : index
    %c0_78 = arith.constant 0 : index
    %217 = vector.load %arg5[%c0_77, %c0_78] : memref<8x128xf32, #tpu.memory_space<vmem>>, vector<8x128xf32>
    tpu.vector_store %arg5[%c0_77, %c0_78], %216 {strides = array<i32>} : memref<8x128xf32, #tpu.memory_space<vmem>>, vector<8x128xf32>,
    %c5_79 = arith.constant 5 : index
    %c0_80 = arith.constant 0 : index
    %c0_81 = arith.constant 0 : index
    %218 = vector.load %arg4[%c5_79, %c0_80, %c0_81] : memref<8x8x128xf32, #tpu.memory_space<vmem>>, vector<1x8x128xf32>
    %219 = vector.shape_cast %218 : vector<1x8x128xf32> to vector<8x128xf32>
    %220 = vector.shape_cast %216 : vector<8x128xf32> to vector<1x8x128xf32>
    tpu.vector_store %arg4[%c5_79, %c0_80, %c0_81], %220 {strides = array<i32>} : memref<8x8x128xf32, #tpu.memory_space<vmem>>, vector<1x8x128xf32>,
    %c6 = arith.constant 6 : index
    %c0_82 = arith.constant 0 : index
    %c0_83 = arith.constant 0 : index
    %221 = vector.load %arg1[%c6, %c0_82, %c0_83] : memref<8x8x384xf32, #tpu.memory_space<vmem>>, vector<1x8x384xf32>
    %222 = vector.shape_cast %221 : vector<1x8x384xf32> to vector<8x384xf32>
    %c0_84 = arith.constant 0 : index
    %c0_85 = arith.constant 0 : index
    %223 = vector.load %arg5[%c0_84, %c0_85] : memref<8x128xf32, #tpu.memory_space<vmem>>, vector<8x128xf32>
    %cst_86 = arith.constant dense<0.000000e+00> : vector<8x384xf32>
    %224 = tpu.matmul %223, %3, %cst_86 {dimension_numbers = #tpu.dot_dimension_numbers<[1], [0], [0], [1], [0, 0, 1, 1], [], []>} : vector<8x128xf32>, vector<128x384xf32>, vector<8x384xf32> -> vector<8x384xf32>
    %225 = vector.broadcast %4 : vector<1x384xf32> to vector<8x384xf32>
    %226 = arith.addf %224, %225 : vector<8x384xf32>
    %227 = vector.extract_strided_slice %222 {offsets = [0, 0], sizes = [8, 128], strides = [1, 1]} : vector<8x384xf32> to vector<8x128xf32>
    %228 = vector.extract_strided_slice %226 {offsets = [0, 0], sizes = [8, 128], strides = [1, 1]} : vector<8x384xf32> to vector<8x128xf32>
    %229 = arith.addf %227, %228 : vector<8x128xf32>
    %230 = arith.negf %229 : vector<8x128xf32>
    %231 = math.exp %230 : vector<8x128xf32>
    %cst_87 = arith.constant 1.000000e+00 : f32
    %232 = vector.broadcast %cst_87 : f32 to vector<8x128xf32>
    %233 = arith.addf %232, %231 : vector<8x128xf32>
    %234 = arith.divf %232, %233 : vector<8x128xf32>
    %235 = vector.extract_strided_slice %222 {offsets = [0, 128], sizes = [8, 128], strides = [1, 1]} : vector<8x384xf32> to vector<8x128xf32>
    %236 = vector.extract_strided_slice %226 {offsets = [0, 128], sizes = [8, 128], strides = [1, 1]} : vector<8x384xf32> to vector<8x128xf32>
    %237 = arith.addf %235, %236 : vector<8x128xf32>
    %238 = arith.negf %237 : vector<8x128xf32>
    %239 = math.exp %238 : vector<8x128xf32>
    %cst_88 = arith.constant 1.000000e+00 : f32
    %240 = vector.broadcast %cst_88 : f32 to vector<8x128xf32>
    %241 = arith.addf %240, %239 : vector<8x128xf32>
    %242 = arith.divf %240, %241 : vector<8x128xf32>
    %243 = vector.extract_strided_slice %222 {offsets = [0, 256], sizes = [8, 128], strides = [1, 1]} : vector<8x384xf32> to vector<8x128xf32>
    %244 = vector.extract_strided_slice %226 {offsets = [0, 256], sizes = [8, 128], strides = [1, 1]} : vector<8x384xf32> to vector<8x128xf32>
    %245 = arith.mulf %234, %244 : vector<8x128xf32>
    %246 = arith.addf %243, %245 : vector<8x128xf32>
    %247 = math.tanh %246 : vector<8x128xf32>
    %cst_89 = arith.constant 1.000000e+00 : f32
    %248 = vector.broadcast %cst_89 : f32 to vector<8x128xf32>
    %249 = arith.subf %248, %242 : vector<8x128xf32>
    %250 = arith.mulf %249, %247 : vector<8x128xf32>
    %251 = arith.mulf %242, %223 : vector<8x128xf32>
    %252 = arith.addf %250, %251 : vector<8x128xf32>
    %c0_90 = arith.constant 0 : index
    %c0_91 = arith.constant 0 : index
    %253 = vector.load %arg5[%c0_90, %c0_91] : memref<8x128xf32, #tpu.memory_space<vmem>>, vector<8x128xf32>
    tpu.vector_store %arg5[%c0_90, %c0_91], %252 {strides = array<i32>} : memref<8x128xf32, #tpu.memory_space<vmem>>, vector<8x128xf32>,
    %c6_92 = arith.constant 6 : index
    %c0_93 = arith.constant 0 : index
    %c0_94 = arith.constant 0 : index
    %254 = vector.load %arg4[%c6_92, %c0_93, %c0_94] : memref<8x8x128xf32, #tpu.memory_space<vmem>>, vector<1x8x128xf32>
    %255 = vector.shape_cast %254 : vector<1x8x128xf32> to vector<8x128xf32>
    %256 = vector.shape_cast %252 : vector<8x128xf32> to vector<1x8x128xf32>
    tpu.vector_store %arg4[%c6_92, %c0_93, %c0_94], %256 {strides = array<i32>} : memref<8x8x128xf32, #tpu.memory_space<vmem>>, vector<1x8x128xf32>,
    %c7 = arith.constant 7 : index
    %c0_95 = arith.constant 0 : index
    %c0_96 = arith.constant 0 : index
    %257 = vector.load %arg1[%c7, %c0_95, %c0_96] : memref<8x8x384xf32, #tpu.memory_space<vmem>>, vector<1x8x384xf32>
    %258 = vector.shape_cast %257 : vector<1x8x384xf32> to vector<8x384xf32>
    %c0_97 = arith.constant 0 : index
    %c0_98 = arith.constant 0 : index
    %259 = vector.load %arg5[%c0_97, %c0_98] : memref<8x128xf32, #tpu.memory_space<vmem>>, vector<8x128xf32>
    %cst_99 = arith.constant dense<0.000000e+00> : vector<8x384xf32>
    %260 = tpu.matmul %259, %3, %cst_99 {dimension_numbers = #tpu.dot_dimension_numbers<[1], [0], [0], [1], [0, 0, 1, 1], [], []>} : vector<8x128xf32>, vector<128x384xf32>, vector<8x384xf32> -> vector<8x384xf32>
    %261 = vector.broadcast %4 : vector<1x384xf32> to vector<8x384xf32>
    %262 = arith.addf %260, %261 : vector<8x384xf32>
    %263 = vector.extract_strided_slice %258 {offsets = [0, 0], sizes = [8, 128], strides = [1, 1]} : vector<8x384xf32> to vector<8x128xf32>
    %264 = vector.extract_strided_slice %262 {offsets = [0, 0], sizes = [8, 128], strides = [1, 1]} : vector<8x384xf32> to vector<8x128xf32>
    %265 = arith.addf %263, %264 : vector<8x128xf32>
    %266 = arith.negf %265 : vector<8x128xf32>
    %267 = math.exp %266 : vector<8x128xf32>
    %cst_100 = arith.constant 1.000000e+00 : f32
    %268 = vector.broadcast %cst_100 : f32 to vector<8x128xf32>
    %269 = arith.addf %268, %267 : vector<8x128xf32>
    %270 = arith.divf %268, %269 : vector<8x128xf32>
    %271 = vector.extract_strided_slice %258 {offsets = [0, 128], sizes = [8, 128], strides = [1, 1]} : vector<8x384xf32> to vector<8x128xf32>
    %272 = vector.extract_strided_slice %262 {offsets = [0, 128], sizes = [8, 128], strides = [1, 1]} : vector<8x384xf32> to vector<8x128xf32>
    %273 = arith.addf %271, %272 : vector<8x128xf32>
    %274 = arith.negf %273 : vector<8x128xf32>
    %275 = math.exp %274 : vector<8x128xf32>
    %cst_101 = arith.constant 1.000000e+00 : f32
    %276 = vector.broadcast %cst_101 : f32 to vector<8x128xf32>
    %277 = arith.addf %276, %275 : vector<8x128xf32>
    %278 = arith.divf %276, %277 : vector<8x128xf32>
    %279 = vector.extract_strided_slice %258 {offsets = [0, 256], sizes = [8, 128], strides = [1, 1]} : vector<8x384xf32> to vector<8x128xf32>
    %280 = vector.extract_strided_slice %262 {offsets = [0, 256], sizes = [8, 128], strides = [1, 1]} : vector<8x384xf32> to vector<8x128xf32>
    %281 = arith.mulf %270, %280 : vector<8x128xf32>
    %282 = arith.addf %279, %281 : vector<8x128xf32>
    %283 = math.tanh %282 : vector<8x128xf32>
    %cst_102 = arith.constant 1.000000e+00 : f32
    %284 = vector.broadcast %cst_102 : f32 to vector<8x128xf32>
    %285 = arith.subf %284, %278 : vector<8x128xf32>
    %286 = arith.mulf %285, %283 : vector<8x128xf32>
    %287 = arith.mulf %278, %259 : vector<8x128xf32>
    %288 = arith.addf %286, %287 : vector<8x128xf32>
    %c0_103 = arith.constant 0 : index
    %c0_104 = arith.constant 0 : index
    %289 = vector.load %arg5[%c0_103, %c0_104] : memref<8x128xf32, #tpu.memory_space<vmem>>, vector<8x128xf32>
    tpu.vector_store %arg5[%c0_103, %c0_104], %288 {strides = array<i32>} : memref<8x128xf32, #tpu.memory_space<vmem>>, vector<8x128xf32>,
    %c7_105 = arith.constant 7 : index
    %c0_106 = arith.constant 0 : index
    %c0_107 = arith.constant 0 : index
    %290 = vector.load %arg4[%c7_105, %c0_106, %c0_107] : memref<8x8x128xf32, #tpu.memory_space<vmem>>, vector<1x8x128xf32>
    %291 = vector.shape_cast %290 : vector<1x8x128xf32> to vector<8x128xf32>
    %292 = vector.shape_cast %288 : vector<8x128xf32> to vector<1x8x128xf32>
    tpu.vector_store %arg4[%c7_105, %c0_106, %c0_107], %292 {strides = array<i32>} : memref<8x8x128xf32, #tpu.memory_space<vmem>>, vector<1x8x128xf32>,
    return
  }
  func.func @transform_0(%arg0: i32) -> (i32, i32, i32) {
    %c0_i32 = arith.constant 0 : i32
    %c0_i32_0 = arith.constant 0 : i32
    %c0_i32_1 = arith.constant 0 : i32
    return %arg0, %c0_i32, %c0_i32_0 : i32, i32, i32
  }
  func.func @transform_1(%arg0: i32) -> (i32, i32) {
    %c0_i32 = arith.constant 0 : i32
    %c0_i32_0 = arith.constant 0 : i32
    %c0_i32_1 = arith.constant 0 : i32
    return %c0_i32, %c0_i32_0 : i32, i32
  }
  func.func @transform_2(%arg0: i32) -> (i32, i32) {
    %c0_i32 = arith.constant 0 : i32
    %c0_i32_0 = arith.constant 0 : i32
    %c0_i32_1 = arith.constant 0 : i32
    return %c0_i32, %c0_i32_0 : i32, i32
  }
  func.func @transform_3(%arg0: i32) -> (i32, i32, i32) {
    %c0_i32 = arith.constant 0 : i32
    %c0_i32_0 = arith.constant 0 : i32
    %c0_i32_1 = arith.constant 0 : i32
    return %arg0, %c0_i32, %c0_i32_0 : i32, i32, i32
  }
}

module attributes {stable_mosaic.version = 11 : i64} {
  func.func @kernel(%arg0: i32, %arg1: memref<8x8x384xf32, #tpu.memory_space<vmem>>, %arg2: memref<128x384xf32, #tpu.memory_space<vmem>>, %arg3: memref<1x384xf32, #tpu.memory_space<vmem>>, %arg4: memref<8x8x128xf32, #tpu.memory_space<vmem>>, %arg5: memref<8x128xf32, #tpu.memory_space<vmem>>) attributes {dimension_semantics = [#tpu.dimension_semantics<arbitrary>], iteration_bounds = array<i64: 2>, scalar_prefetch = 0 : i64, scratch_operands = 1 : i64, tpu.core_type = #tpu.core_type<tc>, window_params = [{transform_indices = @transform_0, window_bounds = array<i64: 8, 8, 384>}, {pipeline_mode = #tpu.pipeline_mode<synchronous>, transform_indices = @transform_1, window_bounds = array<i64: 128, 384>}, {pipeline_mode = #tpu.pipeline_mode<synchronous>, transform_indices = @transform_2, window_bounds = array<i64: 1, 384>}, {transform_indices = @transform_3, window_bounds = array<i64: 8, 8, 128>}]} {
    %c0_i32 = arith.constant 0 : i32
    %0 = arith.cmpi eq, %arg0, %c0_i32 : i32
    %1 = arith.extui %0 : i1 to i32
    %c0_i32_0 = arith.constant 0 : i32
    %2 = arith.cmpi ne, %1, %c0_i32_0 : i32
    scf.if %2 {
      %cst_108 = arith.constant 0.000000e+00 : f32
      %293 = vector.broadcast %cst_108 : f32 to vector<8x128xf32>
      %c0_109 = arith.constant 0 : index
      %c0_110 = arith.constant 0 : index
      %294 = vector.load %arg5[%c0_109, %c0_110] : memref<8x128xf32, #tpu.memory_space<vmem>>, vector<8x128xf32>
      tpu.vector_store %arg5[%c0_109, %c0_110], %293 {strides = array<i32>} : memref<8x128xf32, #tpu.memory_space<vmem>>, vector<8x128xf32>,
    } else {
    }
    %c0 = arith.constant 0 : index
    %c0_1 = arith.constant 0 : index
    %3 = vector.load %arg2[%c0, %c0_1] : memref<128x384xf32, #tpu.memory_space<vmem>>, vector<128x384xf32>
    %c0_2 = arith.constant 0 : index
    %c0_3 = arith.constant 0 : index
    %4 = vector.load %arg3[%c0_2, %c0_3] : memref<1x384xf32, #tpu.memory_space<vmem>>, vector<1x384xf32>
    %c7 = arith.constant 7 : index
    %c0_4 = arith.constant 0 : index
    %c0_5 = arith.constant 0 : index
    %5 = vector.load %arg1[%c7, %c0_4, %c0_5] : memref<8x8x384xf32, #tpu.memory_space<vmem>>, vector<1x8x384xf32>
    %6 = vector.shape_cast %5 : vector<1x8x384xf32> to vector<8x384xf32>
    %c0_6 = arith.constant 0 : index
    %c0_7 = arith.constant 0 : index
    %7 = vector.load %arg5[%c0_6, %c0_7] : memref<8x128xf32, #tpu.memory_space<vmem>>, vector<8x128xf32>
    %cst = arith.constant dense<0.000000e+00> : vector<8x384xf32>
    %8 = tpu.matmul %7, %3, %cst {dimension_numbers = #tpu.dot_dimension_numbers<[1], [0], [0], [1], [0, 0, 1, 1], [], []>} : vector<8x128xf32>, vector<128x384xf32>, vector<8x384xf32> -> vector<8x384xf32>
    %9 = vector.broadcast %4 : vector<1x384xf32> to vector<8x384xf32>
    %10 = arith.addf %8, %9 : vector<8x384xf32>
    %11 = vector.extract_strided_slice %6 {offsets = [0, 0], sizes = [8, 128], strides = [1, 1]} : vector<8x384xf32> to vector<8x128xf32>
    %12 = vector.extract_strided_slice %10 {offsets = [0, 0], sizes = [8, 128], strides = [1, 1]} : vector<8x384xf32> to vector<8x128xf32>
    %13 = arith.addf %11, %12 : vector<8x128xf32>
    %14 = arith.negf %13 : vector<8x128xf32>
    %15 = math.exp %14 : vector<8x128xf32>
    %cst_8 = arith.constant 1.000000e+00 : f32
    %16 = vector.broadcast %cst_8 : f32 to vector<8x128xf32>
    %17 = arith.addf %16, %15 : vector<8x128xf32>
    %18 = arith.divf %16, %17 : vector<8x128xf32>
    %19 = vector.extract_strided_slice %6 {offsets = [0, 128], sizes = [8, 128], strides = [1, 1]} : vector<8x384xf32> to vector<8x128xf32>
    %20 = vector.extract_strided_slice %10 {offsets = [0, 128], sizes = [8, 128], strides = [1, 1]} : vector<8x384xf32> to vector<8x128xf32>
    %21 = arith.addf %19, %20 : vector<8x128xf32>
    %22 = arith.negf %21 : vector<8x128xf32>
    %23 = math.exp %22 : vector<8x128xf32>
    %cst_9 = arith.constant 1.000000e+00 : f32
    %24 = vector.broadcast %cst_9 : f32 to vector<8x128xf32>
    %25 = arith.addf %24, %23 : vector<8x128xf32>
    %26 = arith.divf %24, %25 : vector<8x128xf32>
    %27 = vector.extract_strided_slice %6 {offsets = [0, 256], sizes = [8, 128], strides = [1, 1]} : vector<8x384xf32> to vector<8x128xf32>
    %28 = vector.extract_strided_slice %10 {offsets = [0, 256], sizes = [8, 128], strides = [1, 1]} : vector<8x384xf32> to vector<8x128xf32>
    %29 = arith.mulf %18, %28 : vector<8x128xf32>
    %30 = arith.addf %27, %29 : vector<8x128xf32>
    %31 = math.tanh %30 : vector<8x128xf32>
    %cst_10 = arith.constant 1.000000e+00 : f32
    %32 = vector.broadcast %cst_10 : f32 to vector<8x128xf32>
    %33 = arith.subf %32, %26 : vector<8x128xf32>
    %34 = arith.mulf %33, %31 : vector<8x128xf32>
    %35 = arith.mulf %26, %7 : vector<8x128xf32>
    %36 = arith.addf %34, %35 : vector<8x128xf32>
    %c0_11 = arith.constant 0 : index
    %c0_12 = arith.constant 0 : index
    %37 = vector.load %arg5[%c0_11, %c0_12] : memref<8x128xf32, #tpu.memory_space<vmem>>, vector<8x128xf32>
    tpu.vector_store %arg5[%c0_11, %c0_12], %36 {strides = array<i32>} : memref<8x128xf32, #tpu.memory_space<vmem>>, vector<8x128xf32>,
    %c7_13 = arith.constant 7 : index
    %c0_14 = arith.constant 0 : index
    %c0_15 = arith.constant 0 : index
    %38 = vector.load %arg4[%c7_13, %c0_14, %c0_15] : memref<8x8x128xf32, #tpu.memory_space<vmem>>, vector<1x8x128xf32>
    %39 = vector.shape_cast %38 : vector<1x8x128xf32> to vector<8x128xf32>
    %40 = vector.shape_cast %36 : vector<8x128xf32> to vector<1x8x128xf32>
    tpu.vector_store %arg4[%c7_13, %c0_14, %c0_15], %40 {strides = array<i32>} : memref<8x8x128xf32, #tpu.memory_space<vmem>>, vector<1x8x128xf32>,
    %c6 = arith.constant 6 : index
    %c0_16 = arith.constant 0 : index
    %c0_17 = arith.constant 0 : index
    %41 = vector.load %arg1[%c6, %c0_16, %c0_17] : memref<8x8x384xf32, #tpu.memory_space<vmem>>, vector<1x8x384xf32>
    %42 = vector.shape_cast %41 : vector<1x8x384xf32> to vector<8x384xf32>
    %c0_18 = arith.constant 0 : index
    %c0_19 = arith.constant 0 : index
    %43 = vector.load %arg5[%c0_18, %c0_19] : memref<8x128xf32, #tpu.memory_space<vmem>>, vector<8x128xf32>
    %cst_20 = arith.constant dense<0.000000e+00> : vector<8x384xf32>
    %44 = tpu.matmul %43, %3, %cst_20 {dimension_numbers = #tpu.dot_dimension_numbers<[1], [0], [0], [1], [0, 0, 1, 1], [], []>} : vector<8x128xf32>, vector<128x384xf32>, vector<8x384xf32> -> vector<8x384xf32>
    %45 = vector.broadcast %4 : vector<1x384xf32> to vector<8x384xf32>
    %46 = arith.addf %44, %45 : vector<8x384xf32>
    %47 = vector.extract_strided_slice %42 {offsets = [0, 0], sizes = [8, 128], strides = [1, 1]} : vector<8x384xf32> to vector<8x128xf32>
    %48 = vector.extract_strided_slice %46 {offsets = [0, 0], sizes = [8, 128], strides = [1, 1]} : vector<8x384xf32> to vector<8x128xf32>
    %49 = arith.addf %47, %48 : vector<8x128xf32>
    %50 = arith.negf %49 : vector<8x128xf32>
    %51 = math.exp %50 : vector<8x128xf32>
    %cst_21 = arith.constant 1.000000e+00 : f32
    %52 = vector.broadcast %cst_21 : f32 to vector<8x128xf32>
    %53 = arith.addf %52, %51 : vector<8x128xf32>
    %54 = arith.divf %52, %53 : vector<8x128xf32>
    %55 = vector.extract_strided_slice %42 {offsets = [0, 128], sizes = [8, 128], strides = [1, 1]} : vector<8x384xf32> to vector<8x128xf32>
    %56 = vector.extract_strided_slice %46 {offsets = [0, 128], sizes = [8, 128], strides = [1, 1]} : vector<8x384xf32> to vector<8x128xf32>
    %57 = arith.addf %55, %56 : vector<8x128xf32>
    %58 = arith.negf %57 : vector<8x128xf32>
    %59 = math.exp %58 : vector<8x128xf32>
    %cst_22 = arith.constant 1.000000e+00 : f32
    %60 = vector.broadcast %cst_22 : f32 to vector<8x128xf32>
    %61 = arith.addf %60, %59 : vector<8x128xf32>
    %62 = arith.divf %60, %61 : vector<8x128xf32>
    %63 = vector.extract_strided_slice %42 {offsets = [0, 256], sizes = [8, 128], strides = [1, 1]} : vector<8x384xf32> to vector<8x128xf32>
    %64 = vector.extract_strided_slice %46 {offsets = [0, 256], sizes = [8, 128], strides = [1, 1]} : vector<8x384xf32> to vector<8x128xf32>
    %65 = arith.mulf %54, %64 : vector<8x128xf32>
    %66 = arith.addf %63, %65 : vector<8x128xf32>
    %67 = math.tanh %66 : vector<8x128xf32>
    %cst_23 = arith.constant 1.000000e+00 : f32
    %68 = vector.broadcast %cst_23 : f32 to vector<8x128xf32>
    %69 = arith.subf %68, %62 : vector<8x128xf32>
    %70 = arith.mulf %69, %67 : vector<8x128xf32>
    %71 = arith.mulf %62, %43 : vector<8x128xf32>
    %72 = arith.addf %70, %71 : vector<8x128xf32>
    %c0_24 = arith.constant 0 : index
    %c0_25 = arith.constant 0 : index
    %73 = vector.load %arg5[%c0_24, %c0_25] : memref<8x128xf32, #tpu.memory_space<vmem>>, vector<8x128xf32>
    tpu.vector_store %arg5[%c0_24, %c0_25], %72 {strides = array<i32>} : memref<8x128xf32, #tpu.memory_space<vmem>>, vector<8x128xf32>,
    %c6_26 = arith.constant 6 : index
    %c0_27 = arith.constant 0 : index
    %c0_28 = arith.constant 0 : index
    %74 = vector.load %arg4[%c6_26, %c0_27, %c0_28] : memref<8x8x128xf32, #tpu.memory_space<vmem>>, vector<1x8x128xf32>
    %75 = vector.shape_cast %74 : vector<1x8x128xf32> to vector<8x128xf32>
    %76 = vector.shape_cast %72 : vector<8x128xf32> to vector<1x8x128xf32>
    tpu.vector_store %arg4[%c6_26, %c0_27, %c0_28], %76 {strides = array<i32>} : memref<8x8x128xf32, #tpu.memory_space<vmem>>, vector<1x8x128xf32>,
    %c5 = arith.constant 5 : index
    %c0_29 = arith.constant 0 : index
    %c0_30 = arith.constant 0 : index
    %77 = vector.load %arg1[%c5, %c0_29, %c0_30] : memref<8x8x384xf32, #tpu.memory_space<vmem>>, vector<1x8x384xf32>
    %78 = vector.shape_cast %77 : vector<1x8x384xf32> to vector<8x384xf32>
    %c0_31 = arith.constant 0 : index
    %c0_32 = arith.constant 0 : index
    %79 = vector.load %arg5[%c0_31, %c0_32] : memref<8x128xf32, #tpu.memory_space<vmem>>, vector<8x128xf32>
    %cst_33 = arith.constant dense<0.000000e+00> : vector<8x384xf32>
    %80 = tpu.matmul %79, %3, %cst_33 {dimension_numbers = #tpu.dot_dimension_numbers<[1], [0], [0], [1], [0, 0, 1, 1], [], []>} : vector<8x128xf32>, vector<128x384xf32>, vector<8x384xf32> -> vector<8x384xf32>
    %81 = vector.broadcast %4 : vector<1x384xf32> to vector<8x384xf32>
    %82 = arith.addf %80, %81 : vector<8x384xf32>
    %83 = vector.extract_strided_slice %78 {offsets = [0, 0], sizes = [8, 128], strides = [1, 1]} : vector<8x384xf32> to vector<8x128xf32>
    %84 = vector.extract_strided_slice %82 {offsets = [0, 0], sizes = [8, 128], strides = [1, 1]} : vector<8x384xf32> to vector<8x128xf32>
    %85 = arith.addf %83, %84 : vector<8x128xf32>
    %86 = arith.negf %85 : vector<8x128xf32>
    %87 = math.exp %86 : vector<8x128xf32>
    %cst_34 = arith.constant 1.000000e+00 : f32
    %88 = vector.broadcast %cst_34 : f32 to vector<8x128xf32>
    %89 = arith.addf %88, %87 : vector<8x128xf32>
    %90 = arith.divf %88, %89 : vector<8x128xf32>
    %91 = vector.extract_strided_slice %78 {offsets = [0, 128], sizes = [8, 128], strides = [1, 1]} : vector<8x384xf32> to vector<8x128xf32>
    %92 = vector.extract_strided_slice %82 {offsets = [0, 128], sizes = [8, 128], strides = [1, 1]} : vector<8x384xf32> to vector<8x128xf32>
    %93 = arith.addf %91, %92 : vector<8x128xf32>
    %94 = arith.negf %93 : vector<8x128xf32>
    %95 = math.exp %94 : vector<8x128xf32>
    %cst_35 = arith.constant 1.000000e+00 : f32
    %96 = vector.broadcast %cst_35 : f32 to vector<8x128xf32>
    %97 = arith.addf %96, %95 : vector<8x128xf32>
    %98 = arith.divf %96, %97 : vector<8x128xf32>
    %99 = vector.extract_strided_slice %78 {offsets = [0, 256], sizes = [8, 128], strides = [1, 1]} : vector<8x384xf32> to vector<8x128xf32>
    %100 = vector.extract_strided_slice %82 {offsets = [0, 256], sizes = [8, 128], strides = [1, 1]} : vector<8x384xf32> to vector<8x128xf32>
    %101 = arith.mulf %90, %100 : vector<8x128xf32>
    %102 = arith.addf %99, %101 : vector<8x128xf32>
    %103 = math.tanh %102 : vector<8x128xf32>
    %cst_36 = arith.constant 1.000000e+00 : f32
    %104 = vector.broadcast %cst_36 : f32 to vector<8x128xf32>
    %105 = arith.subf %104, %98 : vector<8x128xf32>
    %106 = arith.mulf %105, %103 : vector<8x128xf32>
    %107 = arith.mulf %98, %79 : vector<8x128xf32>
    %108 = arith.addf %106, %107 : vector<8x128xf32>
    %c0_37 = arith.constant 0 : index
    %c0_38 = arith.constant 0 : index
    %109 = vector.load %arg5[%c0_37, %c0_38] : memref<8x128xf32, #tpu.memory_space<vmem>>, vector<8x128xf32>
    tpu.vector_store %arg5[%c0_37, %c0_38], %108 {strides = array<i32>} : memref<8x128xf32, #tpu.memory_space<vmem>>, vector<8x128xf32>,
    %c5_39 = arith.constant 5 : index
    %c0_40 = arith.constant 0 : index
    %c0_41 = arith.constant 0 : index
    %110 = vector.load %arg4[%c5_39, %c0_40, %c0_41] : memref<8x8x128xf32, #tpu.memory_space<vmem>>, vector<1x8x128xf32>
    %111 = vector.shape_cast %110 : vector<1x8x128xf32> to vector<8x128xf32>
    %112 = vector.shape_cast %108 : vector<8x128xf32> to vector<1x8x128xf32>
    tpu.vector_store %arg4[%c5_39, %c0_40, %c0_41], %112 {strides = array<i32>} : memref<8x8x128xf32, #tpu.memory_space<vmem>>, vector<1x8x128xf32>,
    %c4 = arith.constant 4 : index
    %c0_42 = arith.constant 0 : index
    %c0_43 = arith.constant 0 : index
    %113 = vector.load %arg1[%c4, %c0_42, %c0_43] : memref<8x8x384xf32, #tpu.memory_space<vmem>>, vector<1x8x384xf32>
    %114 = vector.shape_cast %113 : vector<1x8x384xf32> to vector<8x384xf32>
    %c0_44 = arith.constant 0 : index
    %c0_45 = arith.constant 0 : index
    %115 = vector.load %arg5[%c0_44, %c0_45] : memref<8x128xf32, #tpu.memory_space<vmem>>, vector<8x128xf32>
    %cst_46 = arith.constant dense<0.000000e+00> : vector<8x384xf32>
    %116 = tpu.matmul %115, %3, %cst_46 {dimension_numbers = #tpu.dot_dimension_numbers<[1], [0], [0], [1], [0, 0, 1, 1], [], []>} : vector<8x128xf32>, vector<128x384xf32>, vector<8x384xf32> -> vector<8x384xf32>
    %117 = vector.broadcast %4 : vector<1x384xf32> to vector<8x384xf32>
    %118 = arith.addf %116, %117 : vector<8x384xf32>
    %119 = vector.extract_strided_slice %114 {offsets = [0, 0], sizes = [8, 128], strides = [1, 1]} : vector<8x384xf32> to vector<8x128xf32>
    %120 = vector.extract_strided_slice %118 {offsets = [0, 0], sizes = [8, 128], strides = [1, 1]} : vector<8x384xf32> to vector<8x128xf32>
    %121 = arith.addf %119, %120 : vector<8x128xf32>
    %122 = arith.negf %121 : vector<8x128xf32>
    %123 = math.exp %122 : vector<8x128xf32>
    %cst_47 = arith.constant 1.000000e+00 : f32
    %124 = vector.broadcast %cst_47 : f32 to vector<8x128xf32>
    %125 = arith.addf %124, %123 : vector<8x128xf32>
    %126 = arith.divf %124, %125 : vector<8x128xf32>
    %127 = vector.extract_strided_slice %114 {offsets = [0, 128], sizes = [8, 128], strides = [1, 1]} : vector<8x384xf32> to vector<8x128xf32>
    %128 = vector.extract_strided_slice %118 {offsets = [0, 128], sizes = [8, 128], strides = [1, 1]} : vector<8x384xf32> to vector<8x128xf32>
    %129 = arith.addf %127, %128 : vector<8x128xf32>
    %130 = arith.negf %129 : vector<8x128xf32>
    %131 = math.exp %130 : vector<8x128xf32>
    %cst_48 = arith.constant 1.000000e+00 : f32
    %132 = vector.broadcast %cst_48 : f32 to vector<8x128xf32>
    %133 = arith.addf %132, %131 : vector<8x128xf32>
    %134 = arith.divf %132, %133 : vector<8x128xf32>
    %135 = vector.extract_strided_slice %114 {offsets = [0, 256], sizes = [8, 128], strides = [1, 1]} : vector<8x384xf32> to vector<8x128xf32>
    %136 = vector.extract_strided_slice %118 {offsets = [0, 256], sizes = [8, 128], strides = [1, 1]} : vector<8x384xf32> to vector<8x128xf32>
    %137 = arith.mulf %126, %136 : vector<8x128xf32>
    %138 = arith.addf %135, %137 : vector<8x128xf32>
    %139 = math.tanh %138 : vector<8x128xf32>
    %cst_49 = arith.constant 1.000000e+00 : f32
    %140 = vector.broadcast %cst_49 : f32 to vector<8x128xf32>
    %141 = arith.subf %140, %134 : vector<8x128xf32>
    %142 = arith.mulf %141, %139 : vector<8x128xf32>
    %143 = arith.mulf %134, %115 : vector<8x128xf32>
    %144 = arith.addf %142, %143 : vector<8x128xf32>
    %c0_50 = arith.constant 0 : index
    %c0_51 = arith.constant 0 : index
    %145 = vector.load %arg5[%c0_50, %c0_51] : memref<8x128xf32, #tpu.memory_space<vmem>>, vector<8x128xf32>
    tpu.vector_store %arg5[%c0_50, %c0_51], %144 {strides = array<i32>} : memref<8x128xf32, #tpu.memory_space<vmem>>, vector<8x128xf32>,
    %c4_52 = arith.constant 4 : index
    %c0_53 = arith.constant 0 : index
    %c0_54 = arith.constant 0 : index
    %146 = vector.load %arg4[%c4_52, %c0_53, %c0_54] : memref<8x8x128xf32, #tpu.memory_space<vmem>>, vector<1x8x128xf32>
    %147 = vector.shape_cast %146 : vector<1x8x128xf32> to vector<8x128xf32>
    %148 = vector.shape_cast %144 : vector<8x128xf32> to vector<1x8x128xf32>
    tpu.vector_store %arg4[%c4_52, %c0_53, %c0_54], %148 {strides = array<i32>} : memref<8x8x128xf32, #tpu.memory_space<vmem>>, vector<1x8x128xf32>,
    %c3 = arith.constant 3 : index
    %c0_55 = arith.constant 0 : index
    %c0_56 = arith.constant 0 : index
    %149 = vector.load %arg1[%c3, %c0_55, %c0_56] : memref<8x8x384xf32, #tpu.memory_space<vmem>>, vector<1x8x384xf32>
    %150 = vector.shape_cast %149 : vector<1x8x384xf32> to vector<8x384xf32>
    %c0_57 = arith.constant 0 : index
    %c0_58 = arith.constant 0 : index
    %151 = vector.load %arg5[%c0_57, %c0_58] : memref<8x128xf32, #tpu.memory_space<vmem>>, vector<8x128xf32>
    %cst_59 = arith.constant dense<0.000000e+00> : vector<8x384xf32>
    %152 = tpu.matmul %151, %3, %cst_59 {dimension_numbers = #tpu.dot_dimension_numbers<[1], [0], [0], [1], [0, 0, 1, 1], [], []>} : vector<8x128xf32>, vector<128x384xf32>, vector<8x384xf32> -> vector<8x384xf32>
    %153 = vector.broadcast %4 : vector<1x384xf32> to vector<8x384xf32>
    %154 = arith.addf %152, %153 : vector<8x384xf32>
    %155 = vector.extract_strided_slice %150 {offsets = [0, 0], sizes = [8, 128], strides = [1, 1]} : vector<8x384xf32> to vector<8x128xf32>
    %156 = vector.extract_strided_slice %154 {offsets = [0, 0], sizes = [8, 128], strides = [1, 1]} : vector<8x384xf32> to vector<8x128xf32>
    %157 = arith.addf %155, %156 : vector<8x128xf32>
    %158 = arith.negf %157 : vector<8x128xf32>
    %159 = math.exp %158 : vector<8x128xf32>
    %cst_60 = arith.constant 1.000000e+00 : f32
    %160 = vector.broadcast %cst_60 : f32 to vector<8x128xf32>
    %161 = arith.addf %160, %159 : vector<8x128xf32>
    %162 = arith.divf %160, %161 : vector<8x128xf32>
    %163 = vector.extract_strided_slice %150 {offsets = [0, 128], sizes = [8, 128], strides = [1, 1]} : vector<8x384xf32> to vector<8x128xf32>
    %164 = vector.extract_strided_slice %154 {offsets = [0, 128], sizes = [8, 128], strides = [1, 1]} : vector<8x384xf32> to vector<8x128xf32>
    %165 = arith.addf %163, %164 : vector<8x128xf32>
    %166 = arith.negf %165 : vector<8x128xf32>
    %167 = math.exp %166 : vector<8x128xf32>
    %cst_61 = arith.constant 1.000000e+00 : f32
    %168 = vector.broadcast %cst_61 : f32 to vector<8x128xf32>
    %169 = arith.addf %168, %167 : vector<8x128xf32>
    %170 = arith.divf %168, %169 : vector<8x128xf32>
    %171 = vector.extract_strided_slice %150 {offsets = [0, 256], sizes = [8, 128], strides = [1, 1]} : vector<8x384xf32> to vector<8x128xf32>
    %172 = vector.extract_strided_slice %154 {offsets = [0, 256], sizes = [8, 128], strides = [1, 1]} : vector<8x384xf32> to vector<8x128xf32>
    %173 = arith.mulf %162, %172 : vector<8x128xf32>
    %174 = arith.addf %171, %173 : vector<8x128xf32>
    %175 = math.tanh %174 : vector<8x128xf32>
    %cst_62 = arith.constant 1.000000e+00 : f32
    %176 = vector.broadcast %cst_62 : f32 to vector<8x128xf32>
    %177 = arith.subf %176, %170 : vector<8x128xf32>
    %178 = arith.mulf %177, %175 : vector<8x128xf32>
    %179 = arith.mulf %170, %151 : vector<8x128xf32>
    %180 = arith.addf %178, %179 : vector<8x128xf32>
    %c0_63 = arith.constant 0 : index
    %c0_64 = arith.constant 0 : index
    %181 = vector.load %arg5[%c0_63, %c0_64] : memref<8x128xf32, #tpu.memory_space<vmem>>, vector<8x128xf32>
    tpu.vector_store %arg5[%c0_63, %c0_64], %180 {strides = array<i32>} : memref<8x128xf32, #tpu.memory_space<vmem>>, vector<8x128xf32>,
    %c3_65 = arith.constant 3 : index
    %c0_66 = arith.constant 0 : index
    %c0_67 = arith.constant 0 : index
    %182 = vector.load %arg4[%c3_65, %c0_66, %c0_67] : memref<8x8x128xf32, #tpu.memory_space<vmem>>, vector<1x8x128xf32>
    %183 = vector.shape_cast %182 : vector<1x8x128xf32> to vector<8x128xf32>
    %184 = vector.shape_cast %180 : vector<8x128xf32> to vector<1x8x128xf32>
    tpu.vector_store %arg4[%c3_65, %c0_66, %c0_67], %184 {strides = array<i32>} : memref<8x8x128xf32, #tpu.memory_space<vmem>>, vector<1x8x128xf32>,
    %c2 = arith.constant 2 : index
    %c0_68 = arith.constant 0 : index
    %c0_69 = arith.constant 0 : index
    %185 = vector.load %arg1[%c2, %c0_68, %c0_69] : memref<8x8x384xf32, #tpu.memory_space<vmem>>, vector<1x8x384xf32>
    %186 = vector.shape_cast %185 : vector<1x8x384xf32> to vector<8x384xf32>
    %c0_70 = arith.constant 0 : index
    %c0_71 = arith.constant 0 : index
    %187 = vector.load %arg5[%c0_70, %c0_71] : memref<8x128xf32, #tpu.memory_space<vmem>>, vector<8x128xf32>
    %cst_72 = arith.constant dense<0.000000e+00> : vector<8x384xf32>
    %188 = tpu.matmul %187, %3, %cst_72 {dimension_numbers = #tpu.dot_dimension_numbers<[1], [0], [0], [1], [0, 0, 1, 1], [], []>} : vector<8x128xf32>, vector<128x384xf32>, vector<8x384xf32> -> vector<8x384xf32>
    %189 = vector.broadcast %4 : vector<1x384xf32> to vector<8x384xf32>
    %190 = arith.addf %188, %189 : vector<8x384xf32>
    %191 = vector.extract_strided_slice %186 {offsets = [0, 0], sizes = [8, 128], strides = [1, 1]} : vector<8x384xf32> to vector<8x128xf32>
    %192 = vector.extract_strided_slice %190 {offsets = [0, 0], sizes = [8, 128], strides = [1, 1]} : vector<8x384xf32> to vector<8x128xf32>
    %193 = arith.addf %191, %192 : vector<8x128xf32>
    %194 = arith.negf %193 : vector<8x128xf32>
    %195 = math.exp %194 : vector<8x128xf32>
    %cst_73 = arith.constant 1.000000e+00 : f32
    %196 = vector.broadcast %cst_73 : f32 to vector<8x128xf32>
    %197 = arith.addf %196, %195 : vector<8x128xf32>
    %198 = arith.divf %196, %197 : vector<8x128xf32>
    %199 = vector.extract_strided_slice %186 {offsets = [0, 128], sizes = [8, 128], strides = [1, 1]} : vector<8x384xf32> to vector<8x128xf32>
    %200 = vector.extract_strided_slice %190 {offsets = [0, 128], sizes = [8, 128], strides = [1, 1]} : vector<8x384xf32> to vector<8x128xf32>
    %201 = arith.addf %199, %200 : vector<8x128xf32>
    %202 = arith.negf %201 : vector<8x128xf32>
    %203 = math.exp %202 : vector<8x128xf32>
    %cst_74 = arith.constant 1.000000e+00 : f32
    %204 = vector.broadcast %cst_74 : f32 to vector<8x128xf32>
    %205 = arith.addf %204, %203 : vector<8x128xf32>
    %206 = arith.divf %204, %205 : vector<8x128xf32>
    %207 = vector.extract_strided_slice %186 {offsets = [0, 256], sizes = [8, 128], strides = [1, 1]} : vector<8x384xf32> to vector<8x128xf32>
    %208 = vector.extract_strided_slice %190 {offsets = [0, 256], sizes = [8, 128], strides = [1, 1]} : vector<8x384xf32> to vector<8x128xf32>
    %209 = arith.mulf %198, %208 : vector<8x128xf32>
    %210 = arith.addf %207, %209 : vector<8x128xf32>
    %211 = math.tanh %210 : vector<8x128xf32>
    %cst_75 = arith.constant 1.000000e+00 : f32
    %212 = vector.broadcast %cst_75 : f32 to vector<8x128xf32>
    %213 = arith.subf %212, %206 : vector<8x128xf32>
    %214 = arith.mulf %213, %211 : vector<8x128xf32>
    %215 = arith.mulf %206, %187 : vector<8x128xf32>
    %216 = arith.addf %214, %215 : vector<8x128xf32>
    %c0_76 = arith.constant 0 : index
    %c0_77 = arith.constant 0 : index
    %217 = vector.load %arg5[%c0_76, %c0_77] : memref<8x128xf32, #tpu.memory_space<vmem>>, vector<8x128xf32>
    tpu.vector_store %arg5[%c0_76, %c0_77], %216 {strides = array<i32>} : memref<8x128xf32, #tpu.memory_space<vmem>>, vector<8x128xf32>,
    %c2_78 = arith.constant 2 : index
    %c0_79 = arith.constant 0 : index
    %c0_80 = arith.constant 0 : index
    %218 = vector.load %arg4[%c2_78, %c0_79, %c0_80] : memref<8x8x128xf32, #tpu.memory_space<vmem>>, vector<1x8x128xf32>
    %219 = vector.shape_cast %218 : vector<1x8x128xf32> to vector<8x128xf32>
    %220 = vector.shape_cast %216 : vector<8x128xf32> to vector<1x8x128xf32>
    tpu.vector_store %arg4[%c2_78, %c0_79, %c0_80], %220 {strides = array<i32>} : memref<8x8x128xf32, #tpu.memory_space<vmem>>, vector<1x8x128xf32>,
    %c1 = arith.constant 1 : index
    %c0_81 = arith.constant 0 : index
    %c0_82 = arith.constant 0 : index
    %221 = vector.load %arg1[%c1, %c0_81, %c0_82] : memref<8x8x384xf32, #tpu.memory_space<vmem>>, vector<1x8x384xf32>
    %222 = vector.shape_cast %221 : vector<1x8x384xf32> to vector<8x384xf32>
    %c0_83 = arith.constant 0 : index
    %c0_84 = arith.constant 0 : index
    %223 = vector.load %arg5[%c0_83, %c0_84] : memref<8x128xf32, #tpu.memory_space<vmem>>, vector<8x128xf32>
    %cst_85 = arith.constant dense<0.000000e+00> : vector<8x384xf32>
    %224 = tpu.matmul %223, %3, %cst_85 {dimension_numbers = #tpu.dot_dimension_numbers<[1], [0], [0], [1], [0, 0, 1, 1], [], []>} : vector<8x128xf32>, vector<128x384xf32>, vector<8x384xf32> -> vector<8x384xf32>
    %225 = vector.broadcast %4 : vector<1x384xf32> to vector<8x384xf32>
    %226 = arith.addf %224, %225 : vector<8x384xf32>
    %227 = vector.extract_strided_slice %222 {offsets = [0, 0], sizes = [8, 128], strides = [1, 1]} : vector<8x384xf32> to vector<8x128xf32>
    %228 = vector.extract_strided_slice %226 {offsets = [0, 0], sizes = [8, 128], strides = [1, 1]} : vector<8x384xf32> to vector<8x128xf32>
    %229 = arith.addf %227, %228 : vector<8x128xf32>
    %230 = arith.negf %229 : vector<8x128xf32>
    %231 = math.exp %230 : vector<8x128xf32>
    %cst_86 = arith.constant 1.000000e+00 : f32
    %232 = vector.broadcast %cst_86 : f32 to vector<8x128xf32>
    %233 = arith.addf %232, %231 : vector<8x128xf32>
    %234 = arith.divf %232, %233 : vector<8x128xf32>
    %235 = vector.extract_strided_slice %222 {offsets = [0, 128], sizes = [8, 128], strides = [1, 1]} : vector<8x384xf32> to vector<8x128xf32>
    %236 = vector.extract_strided_slice %226 {offsets = [0, 128], sizes = [8, 128], strides = [1, 1]} : vector<8x384xf32> to vector<8x128xf32>
    %237 = arith.addf %235, %236 : vector<8x128xf32>
    %238 = arith.negf %237 : vector<8x128xf32>
    %239 = math.exp %238 : vector<8x128xf32>
    %cst_87 = arith.constant 1.000000e+00 : f32
    %240 = vector.broadcast %cst_87 : f32 to vector<8x128xf32>
    %241 = arith.addf %240, %239 : vector<8x128xf32>
    %242 = arith.divf %240, %241 : vector<8x128xf32>
    %243 = vector.extract_strided_slice %222 {offsets = [0, 256], sizes = [8, 128], strides = [1, 1]} : vector<8x384xf32> to vector<8x128xf32>
    %244 = vector.extract_strided_slice %226 {offsets = [0, 256], sizes = [8, 128], strides = [1, 1]} : vector<8x384xf32> to vector<8x128xf32>
    %245 = arith.mulf %234, %244 : vector<8x128xf32>
    %246 = arith.addf %243, %245 : vector<8x128xf32>
    %247 = math.tanh %246 : vector<8x128xf32>
    %cst_88 = arith.constant 1.000000e+00 : f32
    %248 = vector.broadcast %cst_88 : f32 to vector<8x128xf32>
    %249 = arith.subf %248, %242 : vector<8x128xf32>
    %250 = arith.mulf %249, %247 : vector<8x128xf32>
    %251 = arith.mulf %242, %223 : vector<8x128xf32>
    %252 = arith.addf %250, %251 : vector<8x128xf32>
    %c0_89 = arith.constant 0 : index
    %c0_90 = arith.constant 0 : index
    %253 = vector.load %arg5[%c0_89, %c0_90] : memref<8x128xf32, #tpu.memory_space<vmem>>, vector<8x128xf32>
    tpu.vector_store %arg5[%c0_89, %c0_90], %252 {strides = array<i32>} : memref<8x128xf32, #tpu.memory_space<vmem>>, vector<8x128xf32>,
    %c1_91 = arith.constant 1 : index
    %c0_92 = arith.constant 0 : index
    %c0_93 = arith.constant 0 : index
    %254 = vector.load %arg4[%c1_91, %c0_92, %c0_93] : memref<8x8x128xf32, #tpu.memory_space<vmem>>, vector<1x8x128xf32>
    %255 = vector.shape_cast %254 : vector<1x8x128xf32> to vector<8x128xf32>
    %256 = vector.shape_cast %252 : vector<8x128xf32> to vector<1x8x128xf32>
    tpu.vector_store %arg4[%c1_91, %c0_92, %c0_93], %256 {strides = array<i32>} : memref<8x8x128xf32, #tpu.memory_space<vmem>>, vector<1x8x128xf32>,
    %c0_94 = arith.constant 0 : index
    %c0_95 = arith.constant 0 : index
    %c0_96 = arith.constant 0 : index
    %257 = vector.load %arg1[%c0_94, %c0_95, %c0_96] : memref<8x8x384xf32, #tpu.memory_space<vmem>>, vector<1x8x384xf32>
    %258 = vector.shape_cast %257 : vector<1x8x384xf32> to vector<8x384xf32>
    %c0_97 = arith.constant 0 : index
    %c0_98 = arith.constant 0 : index
    %259 = vector.load %arg5[%c0_97, %c0_98] : memref<8x128xf32, #tpu.memory_space<vmem>>, vector<8x128xf32>
    %cst_99 = arith.constant dense<0.000000e+00> : vector<8x384xf32>
    %260 = tpu.matmul %259, %3, %cst_99 {dimension_numbers = #tpu.dot_dimension_numbers<[1], [0], [0], [1], [0, 0, 1, 1], [], []>} : vector<8x128xf32>, vector<128x384xf32>, vector<8x384xf32> -> vector<8x384xf32>
    %261 = vector.broadcast %4 : vector<1x384xf32> to vector<8x384xf32>
    %262 = arith.addf %260, %261 : vector<8x384xf32>
    %263 = vector.extract_strided_slice %258 {offsets = [0, 0], sizes = [8, 128], strides = [1, 1]} : vector<8x384xf32> to vector<8x128xf32>
    %264 = vector.extract_strided_slice %262 {offsets = [0, 0], sizes = [8, 128], strides = [1, 1]} : vector<8x384xf32> to vector<8x128xf32>
    %265 = arith.addf %263, %264 : vector<8x128xf32>
    %266 = arith.negf %265 : vector<8x128xf32>
    %267 = math.exp %266 : vector<8x128xf32>
    %cst_100 = arith.constant 1.000000e+00 : f32
    %268 = vector.broadcast %cst_100 : f32 to vector<8x128xf32>
    %269 = arith.addf %268, %267 : vector<8x128xf32>
    %270 = arith.divf %268, %269 : vector<8x128xf32>
    %271 = vector.extract_strided_slice %258 {offsets = [0, 128], sizes = [8, 128], strides = [1, 1]} : vector<8x384xf32> to vector<8x128xf32>
    %272 = vector.extract_strided_slice %262 {offsets = [0, 128], sizes = [8, 128], strides = [1, 1]} : vector<8x384xf32> to vector<8x128xf32>
    %273 = arith.addf %271, %272 : vector<8x128xf32>
    %274 = arith.negf %273 : vector<8x128xf32>
    %275 = math.exp %274 : vector<8x128xf32>
    %cst_101 = arith.constant 1.000000e+00 : f32
    %276 = vector.broadcast %cst_101 : f32 to vector<8x128xf32>
    %277 = arith.addf %276, %275 : vector<8x128xf32>
    %278 = arith.divf %276, %277 : vector<8x128xf32>
    %279 = vector.extract_strided_slice %258 {offsets = [0, 256], sizes = [8, 128], strides = [1, 1]} : vector<8x384xf32> to vector<8x128xf32>
    %280 = vector.extract_strided_slice %262 {offsets = [0, 256], sizes = [8, 128], strides = [1, 1]} : vector<8x384xf32> to vector<8x128xf32>
    %281 = arith.mulf %270, %280 : vector<8x128xf32>
    %282 = arith.addf %279, %281 : vector<8x128xf32>
    %283 = math.tanh %282 : vector<8x128xf32>
    %cst_102 = arith.constant 1.000000e+00 : f32
    %284 = vector.broadcast %cst_102 : f32 to vector<8x128xf32>
    %285 = arith.subf %284, %278 : vector<8x128xf32>
    %286 = arith.mulf %285, %283 : vector<8x128xf32>
    %287 = arith.mulf %278, %259 : vector<8x128xf32>
    %288 = arith.addf %286, %287 : vector<8x128xf32>
    %c0_103 = arith.constant 0 : index
    %c0_104 = arith.constant 0 : index
    %289 = vector.load %arg5[%c0_103, %c0_104] : memref<8x128xf32, #tpu.memory_space<vmem>>, vector<8x128xf32>
    tpu.vector_store %arg5[%c0_103, %c0_104], %288 {strides = array<i32>} : memref<8x128xf32, #tpu.memory_space<vmem>>, vector<8x128xf32>,
    %c0_105 = arith.constant 0 : index
    %c0_106 = arith.constant 0 : index
    %c0_107 = arith.constant 0 : index
    %290 = vector.load %arg4[%c0_105, %c0_106, %c0_107] : memref<8x8x128xf32, #tpu.memory_space<vmem>>, vector<1x8x128xf32>
    %291 = vector.shape_cast %290 : vector<1x8x128xf32> to vector<8x128xf32>
    %292 = vector.shape_cast %288 : vector<8x128xf32> to vector<1x8x128xf32>
    tpu.vector_store %arg4[%c0_105, %c0_106, %c0_107], %292 {strides = array<i32>} : memref<8x8x128xf32, #tpu.memory_space<vmem>>, vector<1x8x128xf32>,
    return
  }
  func.func @transform_0(%arg0: i32) -> (i32, i32, i32) {
    %c1_i32 = arith.constant 1 : i32
    %0 = arith.subi %c1_i32, %arg0 : i32
    %c0_i32 = arith.constant 0 : i32
    %c0_i32_0 = arith.constant 0 : i32
    %c0_i32_1 = arith.constant 0 : i32
    return %0, %c0_i32, %c0_i32_0 : i32, i32, i32
  }
  func.func @transform_1(%arg0: i32) -> (i32, i32) {
    %c0_i32 = arith.constant 0 : i32
    %c0_i32_0 = arith.constant 0 : i32
    %c0_i32_1 = arith.constant 0 : i32
    return %c0_i32, %c0_i32_0 : i32, i32
  }
  func.func @transform_2(%arg0: i32) -> (i32, i32) {
    %c0_i32 = arith.constant 0 : i32
    %c0_i32_0 = arith.constant 0 : i32
    %c0_i32_1 = arith.constant 0 : i32
    return %c0_i32, %c0_i32_0 : i32, i32
  }
  func.func @transform_3(%arg0: i32) -> (i32, i32, i32) {
    %c1_i32 = arith.constant 1 : i32
    %0 = arith.subi %c1_i32, %arg0 : i32
    %c0_i32 = arith.constant 0 : i32
    %c0_i32_0 = arith.constant 0 : i32
    %c0_i32_1 = arith.constant 0 : i32
    return %0, %c0_i32, %c0_i32_0 : i32, i32, i32
  }
}

module attributes {stable_mosaic.version = 11 : i64} {
  func.func @_fc_logsoftmax_kernel(%arg0: memref<8x128xf32, #tpu.memory_space<vmem>>, %arg1: memref<8x128xf32, #tpu.memory_space<vmem>>, %arg2: memref<128x128xf32, #tpu.memory_space<vmem>>, %arg3: memref<128x128xf32, #tpu.memory_space<vmem>>, %arg4: memref<1x128xf32, #tpu.memory_space<vmem>>, %arg5: memref<8x128xf32, #tpu.memory_space<vmem>>) attributes {dimension_semantics = [], scalar_prefetch = 0 : i64, scratch_operands = 0 : i64, tpu.core_type = #tpu.core_type<tc>} {
    %c0 = arith.constant 0 : index
    %c0_0 = arith.constant 0 : index
    %0 = vector.load %arg0[%c0, %c0_0] : memref<8x128xf32, #tpu.memory_space<vmem>>, vector<8x128xf32>
    %c0_1 = arith.constant 0 : index
    %c0_2 = arith.constant 0 : index
    %1 = vector.load %arg2[%c0_1, %c0_2] : memref<128x128xf32, #tpu.memory_space<vmem>>, vector<128x128xf32>
    %cst = arith.constant dense<0.000000e+00> : vector<8x128xf32>
    %2 = tpu.matmul %0, %1, %cst {dimension_numbers = #tpu.dot_dimension_numbers<[1], [0], [0], [1], [0, 0, 1, 1], [], []>} : vector<8x128xf32>, vector<128x128xf32>, vector<8x128xf32> -> vector<8x128xf32>
    %c0_3 = arith.constant 0 : index
    %c0_4 = arith.constant 0 : index
    %3 = vector.load %arg1[%c0_3, %c0_4] : memref<8x128xf32, #tpu.memory_space<vmem>>, vector<8x128xf32>
    %c0_5 = arith.constant 0 : index
    %c0_6 = arith.constant 0 : index
    %4 = vector.load %arg3[%c0_5, %c0_6] : memref<128x128xf32, #tpu.memory_space<vmem>>, vector<128x128xf32>
    %cst_7 = arith.constant dense<0.000000e+00> : vector<8x128xf32>
    %5 = tpu.matmul %3, %4, %cst_7 {dimension_numbers = #tpu.dot_dimension_numbers<[1], [0], [0], [1], [0, 0, 1, 1], [], []>} : vector<8x128xf32>, vector<128x128xf32>, vector<8x128xf32> -> vector<8x128xf32>
    %6 = arith.addf %2, %5 : vector<8x128xf32>
    %c0_8 = arith.constant 0 : index
    %c0_9 = arith.constant 0 : index
    %7 = vector.load %arg4[%c0_8, %c0_9] : memref<1x128xf32, #tpu.memory_space<vmem>>, vector<1x128xf32>
    %8 = vector.broadcast %7 : vector<1x128xf32> to vector<8x128xf32>
    %9 = arith.addf %6, %8 : vector<8x128xf32>
    %cst_10 = arith.constant dense<0xFF800000> : vector<8xf32>
    %10 = vector.multi_reduction <maximumf>, %9, %cst_10 [1] : vector<8x128xf32> to vector<8xf32>
    %11 = vector.shape_cast %10 : vector<8xf32> to vector<8x1xf32>
    %12 = vector.broadcast %11 : vector<8x1xf32> to vector<8x128xf32>
    %13 = arith.subf %9, %12 : vector<8x128xf32>
    %14 = math.exp %13 : vector<8x128xf32>
    %cst_11 = arith.constant dense<0.000000e+00> : vector<8xf32>
    %15 = vector.multi_reduction <add>, %14, %cst_11 [1] : vector<8x128xf32> to vector<8xf32>
    %16 = vector.shape_cast %15 : vector<8xf32> to vector<8x1xf32>
    %17 = math.log %16 : vector<8x1xf32>
    %18 = vector.broadcast %17 : vector<8x1xf32> to vector<8x128xf32>
    %19 = arith.subf %13, %18 : vector<8x128xf32>
    %c0_12 = arith.constant 0 : index
    %c0_13 = arith.constant 0 : index
    %20 = vector.load %arg5[%c0_12, %c0_13] : memref<8x128xf32, #tpu.memory_space<vmem>>, vector<8x128xf32>
    tpu.vector_store %arg5[%c0_12, %c0_13], %19 {strides = array<i32>} : memref<8x128xf32, #tpu.memory_space<vmem>>, vector<8x128xf32>,
    return
  }
}

</mosaic_0001>

<llo_original>
// kernel: bigru_forward.6
$region0: #{bigru_forward.6}
  #allocation0 [shape = 'u32[]', space=smem, size = 0x4, offset = 0x4, fixed_abs, tag = 'smem constant byte address 0x4 - core index']
  #allocation1 [shape = 'u32[144,128]{1,0:T(1,128)}', space=vmem, size = 0x12000, scoped, tag = 'internal scratch']
  #allocation2 [shape = 'f32[8,128]{1,0:T(8,128)}', space=vmem, size = 0x1000, scoped, tag = 'scratch operand']
  %s0 = inlined_call_operand.vmem [shape: f32[16,8,384], index: 0, kind: input, shape index: {}]
  %s1 = inlined_call_operand.vmem [shape: f32[128,384], index: 1, kind: input, shape index: {}]
  %s2 = inlined_call_operand.vmem [shape: f32[1,384], index: 2, kind: input, shape index: {}]
  %s3 = inlined_call_operand.vmem [shape: f32[16,8,128], index: 3, kind: output, shape index: {}]
  %s4 = sld [smem:[#allocation0]]
  $region49: #{bigru_forward.6} parent=0
    _
  %s6 = ssub.s32 1, %s4
  %s7 = scalar_select 0, %s6, %s4
  loop: start=0, step=1, limit=4
  $region2: #{bigru_forward.6} parent=0 // loop_pre_header
    _
  $region3: #{bigru_forward.6} parent=0 // loop_header
    %s9 = sphi 0, %s13
    %p10 = scmp.ge.s32.totalorder %s9, 4
    %s21 = sphi 0, %s23
    %s24 = sphi 0, %s21
    %s25 = sphi 0, %s24
    %s41 = sphi 0, %s25
    %s45 = sphi 0, %s45
    %s47 = sphi 0, %s45
    %s48 = sphi 0, %s47
    %s62 = sphi 0, %s48
    %s66 = sphi 0, %s66
    %s68 = sphi 0, %s66
    %s69 = sphi 0, %s68
    %s83 = sphi 0, %s69
    %s91 = sphi 0, %s93
    %s94 = sphi 0, %s91
    %s95 = sphi 0, %s94
    %s111 = sphi 0, %s95
  $region4: #{bigru_forward.6} parent=0 // loop_header_branch
    %12 = sbr.rel (%p10) target = $region8
  $region5: #{bigru_forward.6} parent=0 // loop_body
    %s14 = ssub.s32 %s9, 1
    %s15 = ssub.s32 %s9, 2
    %s16 = sadd.s32 %s9, 1
    %s17 = ssub.s32 1, %s9
    %s18 = ssub.s32 1, %s16
    %s19 = ssub.s32 %s17, %s18
    %p20 = scmp.eq.s32.totalorder %s19, 0
    %s22 = sadd.s32 %s21, 1
    %s23 = scalar_select %p20, %s21, %s22
    %p26 = pneg %p20
    %p27 = scmp.eq.s32.totalorder %s9, 1
    %p28 = por %p26, %p27
    %p29 = scmp.ne.s32.totalorder %s21, %s24
    %p30 = scmp.eq.s32.totalorder %s9, 0
    %p31 = por %p29, %p30
    %p32 = scmp.ne.s32.totalorder %s21, %s24
    %p33 = scmp.eq.s32.totalorder %s14, 1
    %p34 = por %p32, %p33
    %p35 = scmp.ne.s32.totalorder %s24, %s25
    %p36 = scmp.eq.s32.totalorder %s14, 0
    %p37 = por %p35, %p36
    %p38 = scmp.ne.s32.totalorder %s24, %s25
    %p39 = scmp.eq.s32.totalorder %s15, 1
    %p40 = por %p38, %p39
    %p42 = scmp.ne.s32.totalorder %s25, %s41
    %p43 = scmp.eq.s32.totalorder %s15, 0
    %p44 = por %p42, %p43
    %s46 = sadd.s32 %s45, 1
    %p49 = scmp.eq.s32.totalorder %s9, 1
    %p50 = scmp.ne.s32.totalorder %s45, %s47
    %p51 = scmp.eq.s32.totalorder %s9, 0
    %p52 = por %p50, %p51
    %p53 = scmp.ne.s32.totalorder %s45, %s47
    %p54 = scmp.eq.s32.totalorder %s14, 1
    %p55 = por %p53, %p54
    %p56 = scmp.ne.s32.totalorder %s47, %s48
    %p57 = scmp.eq.s32.totalorder %s14, 0
    %p58 = por %p56, %p57
    %p59 = scmp.ne.s32.totalorder %s47, %s48
    %p60 = scmp.eq.s32.totalorder %s15, 1
    %p61 = por %p59, %p60
    %p63 = scmp.ne.s32.totalorder %s48, %s62
    %p64 = scmp.eq.s32.totalorder %s15, 0
    %p65 = por %p63, %p64
    %s67 = sadd.s32 %s66, 1
    %p70 = scmp.eq.s32.totalorder %s9, 1
    %p71 = scmp.ne.s32.totalorder %s66, %s68
    %p72 = scmp.eq.s32.totalorder %s9, 0
    %p73 = por %p71, %p72
    %p74 = scmp.ne.s32.totalorder %s66, %s68
    %p75 = scmp.eq.s32.totalorder %s14, 1
    %p76 = por %p74, %p75
    %p77 = scmp.ne.s32.totalorder %s68, %s69
    %p78 = scmp.eq.s32.totalorder %s14, 0
    %p79 = por %p77, %p78
    %p80 = scmp.ne.s32.totalorder %s68, %s69
    %p81 = scmp.eq.s32.totalorder %s15, 1
    %p82 = por %p80, %p81
    %p84 = scmp.ne.s32.totalorder %s69, %s83
    %p85 = scmp.eq.s32.totalorder %s15, 0
    %p86 = por %p84, %p85
    %s87 = ssub.s32 1, %s9
    %s88 = ssub.s32 1, %s16
    %s89 = ssub.s32 %s87, %s88
    %p90 = scmp.eq.s32.totalorder %s89, 0
    %s92 = sadd.s32 %s91, 1
    %s93 = scalar_select %p90, %s91, %s92
    %p96 = pneg %p90
    %p97 = scmp.eq.s32.totalorder %s9, 1
    %p98 = por %p96, %p97
    %p99 = scmp.ne.s32.totalorder %s91, %s94
    %p100 = scmp.eq.s32.totalorder %s9, 0
    %p101 = por %p99, %p100
    %p102 = scmp.ne.s32.totalorder %s91, %s94
    %p103 = scmp.eq.s32.totalorder %s14, 1
    %p104 = por %p102, %p103
    %p105 = scmp.ne.s32.totalorder %s94, %s95
    %p106 = scmp.eq.s32.totalorder %s14, 0
    %p107 = por %p105, %p106
    %p108 = scmp.ne.s32.totalorder %s94, %s95
    %p109 = scmp.eq.s32.totalorder %s15, 1
    %p110 = por %p108, %p109
    %p112 = scmp.ne.s32.totalorder %s95, %s111
    %p113 = scmp.eq.s32.totalorder %s15, 0
    %p114 = por %p112, %p113
    %p115 = scmp.le.s32.totalorder 1, %s9
    %p116 = scmp.lt.s32.totalorder %s9, 3
    %p117 = pnand %p115, %p116
    %p118 = pneg %p117
    // Predicated region
    $region9: #{bigru_forward.6} parent=5 // pred_check
      _
    $region10: #{bigru_forward.6} parent=5 // pred_check_branch
      %120 = sbr.rel (%p117) target = $region12
    $region11: #{bigru_forward.6} parent=5 // pred_region
      %s121 = ssub.s32 %s9, 1
      // Predicated region
      $region13: #{bigru_forward.6} parent=11 // pred_check
        %p122 = pneg %p58
      $region14: #{bigru_forward.6} parent=11 // pred_check_branch
        %124 = sbr.rel (%p122) target = $region16
      $region15: #{bigru_forward.6} parent=11 // pred_region
        _
      $region16: #{bigru_forward.6} parent=11 // pred_fallthru
        _
      // Predicated region
      $region17: #{bigru_forward.6} parent=11 // pred_check
        %p125 = pneg %p79
      $region18: #{bigru_forward.6} parent=11 // pred_check_branch
        %127 = sbr.rel (%p125) target = $region20
      $region19: #{bigru_forward.6} parent=11 // pred_region
        _
      $region20: #{bigru_forward.6} parent=11 // pred_fallthru
        _
    $region12: #{bigru_forward.6} parent=5 // pred_fallthru
      _
    %p128 = scmp.lt.s32.totalorder %s9, 2
    // Predicated region
    $region21: #{bigru_forward.6} parent=5 // pred_check
      %p129 = pneg %p128
    $region22: #{bigru_forward.6} parent=5 // pred_check_branch
      %131 = sbr.rel (%p129) target = $region24
    $region23: #{bigru_forward.6} parent=5 // pred_region
      // Predicated region
      $region25: #{bigru_forward.6} parent=23 // pred_check
        %p132 = pneg %p31
      $region26: #{bigru_forward.6} parent=23 // pred_check_branch
        %134 = sbr.rel (%p132) target = $region28
      $region27: #{bigru_forward.6} parent=23 // pred_region
        %s135 = ssub.s32 1, %s9
        %s136 = smul.u32 8, %s135
        %p137 = scmp.lt.s32.totalorder %s136, 15
        %s138 = scalar_select %p137, %s136, 15
        %s139 = smul.addr %s138, 3
        %s140 = smul.addr %s139, 8
        %s141 = scalar_lea.vmem %s0, %s140
        %s142 = ssub.s32 1, %s9
        %s143 = smul.u32 8, %s142
      $region28: #{bigru_forward.6} parent=23 // pred_fallthru
        _
    $region24: #{bigru_forward.6} parent=5 // pred_fallthru
      _
    %p144 = scmp.le.s32.totalorder 1, %s9
    %p145 = scmp.lt.s32.totalorder %s9, 3
    %p146 = pnand %p144, %p145
    %p147 = pneg %p146
    // Predicated region
    $region29: #{bigru_forward.6} parent=5 // pred_check
      _
    $region30: #{bigru_forward.6} parent=5 // pred_check_branch
      %149 = sbr.rel (%p146) target = $region32
    $region31: #{bigru_forward.6} parent=5 // pred_region
      %s150 = ssub.s32 %s9, 1
      %s151 = ssub.s32 1, %s14
      %s152 = smul.u32 8, %s151
      %p153 = scmp.lt.s32.totalorder %s152, 15
      %s154 = scalar_select %p153, %s152, 15
      %s155 = smul.addr %s154, 3
      %s156 = smul.addr %s155, 8
      %s157 = scalar_lea.vmem %s0, %s156
      %p158 = pneg %p37
      %p159 = pneg %p34
      %p160 = pneg %p58
      %p161 = pneg %p55
      %p162 = pneg %p79
      %p163 = pneg %p76
      %p164 = pneg %p107
      %p165 = pneg %p104
      %s166 = ssub.s32 1, %s14
      %s167 = smul.u32 8, %s166
      %p168 = scmp.lt.s32.totalorder %s167, 15
      %s169 = scalar_select %p168, %s167, 15
      %s170 = smul.addr %s169, 8
      %s171 = scalar_lea.vmem %s3, %s170
      %s172 = ssub.s32 1, %s14
      %s173 = smul.u32 8, %s172
      %p174 = scmp.lt.s32.totalorder %s173, 15
      %s175 = scalar_select %p174, %s173, 15
      %s176 = smul.addr %s175, 3
      %s177 = smul.addr %s176, 8
      %s178 = scalar_lea.vmem %s0, %s177
      %s179 = ssub.s32 1, %s14
      %s180 = smul.u32 8, %s179
      %s181 = ssub.s32 1, %s14
      %s182 = smul.u32 8, %s181
      %p183 = scmp.lt.s32.totalorder %s182, 15
      %s184 = scalar_select %p183, %s182, 15
      %s185 = smul.addr %s184, 8
      %s186 = scalar_lea.vmem %s3, %s185
      %s187 = ssub.s32 1, %s14
      %s188 = smul.u32 8, %s187
      %p189 = scmp.eq.s32.totalorder %s14, 0
      // Predicated region
      $region33: #{bigru_forward.6} parent=31 // pred_check
        %p190 = pneg %p189
      $region34: #{bigru_forward.6} parent=31 // pred_check_branch
        %192 = sbr.rel (%p190) target = $region36
      $region35: #{bigru_forward.6} parent=31 // pred_region
        %193 = vst [vmem:[#allocation2] sm:$0xff] 0.0
      $region36: #{bigru_forward.6} parent=31 // pred_fallthru
        _
      %v194 = vld [vmem:[%s1] sm:$0xff]
      %v195 = vld [vmem:[%s1 + $0x8] sm:$0xff]
      %v196 = vld [vmem:[%s1 + $0x10] sm:$0xff]
      %v197 = vld [vmem:[%s1 + $0x18] sm:$0xff]
      %v198 = vld [vmem:[%s1 + $0x20] sm:$0xff]
      %v199 = vld [vmem:[%s1 + $0x28] sm:$0xff]
      %v200 = vld [vmem:[%s1 + $0x30] sm:$0xff]
      %v201 = vld [vmem:[%s1 + $0x38] sm:$0xff]
      %v202 = vld [vmem:[%s1 + $0x40] sm:$0xff]
      %v203 = vld [vmem:[%s1 + $0x48] sm:$0xff]
      %v204 = vld [vmem:[%s1 + $0x50] sm:$0xff]
      %v205 = vld [vmem:[%s1 + $0x58] sm:$0xff]
      %v206 = vld [vmem:[%s1 + $0x60] sm:$0xff]
      %v207 = vld [vmem:[%s1 + $0x68] sm:$0xff]
      %v208 = vld [vmem:[%s1 + $0x70] sm:$0xff]
      %v209 = vld [vmem:[%s1 + $0x78] sm:$0xff]
      %v210 = vld [vmem:[%s1 + $0x80] sm:$0xff]
      %v211 = vld [vmem:[%s1 + $0x88] sm:$0xff]
      %v212 = vld [vmem:[%s1 + $0x90] sm:$0xff]
      %v213 = vld [vmem:[%s1 + $0x98] sm:$0xff]
      %v214 = vld [vmem:[%s1 + $0xa0] sm:$0xff]
      %v215 = vld [vmem:[%s1 + $0xa8] sm:$0xff]
      %v216 = vld [vmem:[%s1 + $0xb0] sm:$0xff]
      %v217 = vld [vmem:[%s1 + $0xb8] sm:$0xff]
      %v218 = vld [vmem:[%s1 + $0xc0] sm:$0xff]
      %v219 = vld [vmem:[%s1 + $0xc8] sm:$0xff]
      %v220 = vld [vmem:[%s1 + $0xd0] sm:$0xff]
      %v221 = vld [vmem:[%s1 + $0xd8] sm:$0xff]
      %v222 = vld [vmem:[%s1 + $0xe0] sm:$0xff]
      %v223 = vld [vmem:[%s1 + $0xe8] sm:$0xff]
      %v224 = vld [vmem:[%s1 + $0xf0] sm:$0xff]
      %v225 = vld [vmem:[%s1 + $0xf8] sm:$0xff]
      %v226 = vld [vmem:[%s1 + $0x100] sm:$0xff]
      %v227 = vld [vmem:[%s1 + $0x108] sm:$0xff]
      %v228 = vld [vmem:[%s1 + $0x110] sm:$0xff]
      %v229 = vld [vmem:[%s1 + $0x118] sm:$0xff]
      %v230 = vld [vmem:[%s1 + $0x120] sm:$0xff]
      %v231 = vld [vmem:[%s1 + $0x128] sm:$0xff]
      %v232 = vld [vmem:[%s1 + $0x130] sm:$0xff]
      %v233 = vld [vmem:[%s1 + $0x138] sm:$0xff]
      %v234 = vld [vmem:[%s1 + $0x140] sm:$0xff]
      %v235 = vld [vmem:[%s1 + $0x148] sm:$0xff]
      %v236 = vld [vmem:[%s1 + $0x150] sm:$0xff]
      %v237 = vld [vmem:[%s1 + $0x158] sm:$0xff]
      %v238 = vld [vmem:[%s1 + $0x160] sm:$0xff]
      %v239 = vld [vmem:[%s1 + $0x168] sm:$0xff]
      %v240 = vld [vmem:[%s1 + $0x170] sm:$0xff]
      %v241 = vld [vmem:[%s1 + $0x178] sm:$0xff]
      %v242 = vld [vmem:[%s2] sm:$0x7]
      %s243 = scalar_lea.vmem %s178, 168
      %v244 = vld [vmem:[%s243] sm:$0xff]
      %v245 = vld [vmem:[%s243 + $0x8] sm:$0xff]
      %v246 = vld [vmem:[%s243 + $0x10] sm:$0xff]
      %v247 = vld [vmem:[#allocation2] sm:$0xff]
      %v249 = vlaneseq
      %v250 = vshrl.u32 %v249, 7
      %v251 = vsub.s32 0, %v250
      %v252 = vrot.slane %v242, %v251
      %v253 = vlaneseq
      %v254 = vshrl.u32 %v253, 7
      %v255 = vsub.s32 1, %v254
      %v256 = vrot.slane %v242, %v255
      %v257 = vlaneseq
      %v258 = vshrl.u32 %v257, 7
      %v259 = vsub.s32 2, %v258
      %v260 = vrot.slane %v242, %v259
      %264 = vmatprep.subr.mxu0 %v195
      %265 = vmatpush1.msra.mxu0 %v194
      %266 = vmatprep.subr.mxu0 %v198
      %267 = vmatpush1.msra.mxu0 %v197
      %268 = vmatprep.subr.mxu0 %v201
      %269 = vmatpush1.msra.mxu0 %v200
      %270 = vmatprep.subr.mxu0 %v204
      %271 = vmatpush1.msra.mxu0 %v203
      %272 = vmatprep.subr.mxu0 %v207
      %273 = vmatpush1.msra.mxu0 %v206
      %274 = vmatprep.subr.mxu0 %v210
      %275 = vmatpush1.msra.mxu0 %v209
      %276 = vmatprep.subr.mxu0 %v213
      %277 = vmatpush1.msra.mxu0 %v212
      %278 = vmatprep.subr.mxu0 %v216
      %279 = vmatpush1.msra.mxu0 %v215
      %280 = vmatprep.subr.mxu0 %v219
      %281 = vmatpush1.msra.mxu0 %v218
      %282 = vmatprep.subr.mxu0 %v222
      %283 = vmatpush1.msra.mxu0 %v221
      %284 = vmatprep.subr.mxu0 %v225
      %285 = vmatpush1.msra.mxu0 %v224
      %286 = vmatprep.subr.mxu0 %v228
      %287 = vmatpush1.msra.mxu0 %v227
      %288 = vmatprep.subr.mxu0 %v231
      %289 = vmatpush1.msra.mxu0 %v230
      %290 = vmatprep.subr.mxu0 %v234
      %291 = vmatpush1.msra.mxu0 %v233
      %292 = vmatprep.subr.mxu0 %v237
      %293 = vmatpush1.msra.mxu0 %v236
      %294 = vmatprep.subr.mxu0 %v240
      %295 = vmatpush1.msra.mxu0 %v239
      %296 = vmatprep.subr.mxu0 0.0
      %297 = vmatpush1.msra.mxu0 0.0
      %298 = vmatprep.subr.mxu0 0.0
      %299 = vmatpush1.msra.mxu0 0.0
      %300 = vmatprep.subr.mxu0 0.0
      %301 = vmatpush1.msra.mxu0 0.0
      %302 = vmatprep.subr.mxu0 0.0
      %303 = vmatpush1.msra.mxu0 0.0
      %304 = vmatprep.subr.mxu0 0.0
      %305 = vmatpush1.msra.mxu0 0.0
      %306 = vmatprep.subr.mxu0 0.0
      %307 = vmatpush1.msra.mxu0 0.0
      %308 = vmatprep.subr.mxu0 0.0
      %309 = vmatpush1.msra.mxu0 0.0
      %310 = vmatprep.subr.mxu0 0.0
      %311 = vmatpush1.msra.mxu0 0.0
      %312 = vmatprep.subr.mxu0 0.0
      %313 = vmatpush1.msra.mxu0 0.0
      %314 = vmatprep.subr.mxu0 0.0
      %315 = vmatpush1.msra.mxu0 0.0
      %316 = vmatprep.subr.mxu0 0.0
      %317 = vmatpush1.msra.mxu0 0.0
      %318 = vmatprep.subr.mxu0 0.0
      %319 = vmatpush1.msra.mxu0 0.0
      %320 = vmatprep.subr.mxu0 0.0
      %321 = vmatpush1.msra.mxu0 0.0
      %322 = vmatprep.subr.mxu0 0.0
      %323 = vmatpush1.msra.mxu0 0.0
      %324 = vmatprep.subr.mxu0 0.0
      %325 = vmatpush1.msra.mxu0 0.0
      %326 = vmatprep.subr.mxu0 0.0
      %327 = vmatpush1.msra.mxu0 0.0
      %328 = vmatprep.mubr.f32.mxu0 0.0
      %329 = vmatmul.mubr.f32.gmra.mrb[0].mxu0 %v247
      %v330 = vpop.f32.mrb[0].mxu0
      %v331 = vadd.f32 %v252, %v330
      %v332 = vpop.f32.mrb[0].mxu0
      %v333 = vadd.f32 %v256, %v332
      %334 = vdwg.mxu0
      %335 = vmatprep.subr.mxu0 0.0
      %336 = vmatpush1.msra.mxu0 %v196
      %337 = vmatprep.subr.mxu0 0.0
      %338 = vmatpush1.msra.mxu0 %v199
      %339 = vmatprep.subr.mxu0 0.0
      %340 = vmatpush1.msra.mxu0 %v202
      %341 = vmatprep.subr.mxu0 0.0
      %342 = vmatpush1.msra.mxu0 %v205
      %343 = vmatprep.subr.mxu0 0.0
      %344 = vmatpush1.msra.mxu0 %v208
      %345 = vmatprep.subr.mxu0 0.0
      %346 = vmatpush1.msra.mxu0 %v211
      %347 = vmatprep.subr.mxu0 0.0
      %348 = vmatpush1.msra.mxu0 %v214
      %349 = vmatprep.subr.mxu0 0.0
      %350 = vmatpush1.msra.mxu0 %v217
      %351 = vmatprep.subr.mxu0 0.0
      %352 = vmatpush1.msra.mxu0 %v220
      %353 = vmatprep.subr.mxu0 0.0
      %354 = vmatpush1.msra.mxu0 %v223
      %355 = vmatprep.subr.mxu0 0.0
      %356 = vmatpush1.msra.mxu0 %v226
      %357 = vmatprep.subr.mxu0 0.0
      %358 = vmatpush1.msra.mxu0 %v229
      %359 = vmatprep.subr.mxu0 0.0
      %360 = vmatpush1.msra.mxu0 %v232
      %361 = vmatprep.subr.mxu0 0.0
      %362 = vmatpush1.msra.mxu0 %v235
      %363 = vmatprep.subr.mxu0 0.0
      %364 = vmatpush1.msra.mxu0 %v238
      %365 = vmatprep.subr.mxu0 0.0
      %366 = vmatpush1.msra.mxu0 %v241
      %367 = vmatprep.subr.mxu0 0.0
      %368 = vmatpush1.msra.mxu0 0.0
      %369 = vmatprep.subr.mxu0 0.0
      %370 = vmatpush1.msra.mxu0 0.0
      %371 = vmatprep.subr.mxu0 0.0
      %372 = vmatpush1.msra.mxu0 0.0
      %373 = vmatprep.subr.mxu0 0.0
      %374 = vmatpush1.msra.mxu0 0.0
      %375 = vmatprep.subr.mxu0 0.0
      %376 = vmatpush1.msra.mxu0 0.0
      %377 = vmatprep.subr.mxu0 0.0
      %378 = vmatpush1.msra.mxu0 0.0
      %379 = vmatprep.subr.mxu0 0.0
      %380 = vmatpush1.msra.mxu0 0.0
      %381 = vmatprep.subr.mxu0 0.0
      %382 = vmatpush1.msra.mxu0 0.0
      %383 = vmatprep.subr.mxu0 0.0
      %384 = vmatpush1.msra.mxu0 0.0
      %385 = vmatprep.subr.mxu0 0.0
      %386 = vmatpush1.msra.mxu0 0.0
      %387 = vmatprep.subr.mxu0 0.0
      %388 = vmatpush1.msra.mxu0 0.0
      %389 = vmatprep.subr.mxu0 0.0
      %390 = vmatpush1.msra.mxu0 0.0
      %391 = vmatprep.subr.mxu0 0.0
      %392 = vmatpush1.msra.mxu0 0.0
      %393 = vmatprep.subr.mxu0 0.0
      %394 = vmatpush1.msra.mxu0 0.0
      %395 = vmatprep.subr.mxu0 0.0
      %396 = vmatpush1.msra.mxu0 0.0
      %397 = vmatprep.subr.mxu0 0.0
      %398 = vmatpush1.msra.mxu0 0.0
      %399 = vmatprep.mubr.f32.mxu0 0.0
      %400 = vmatmul.mubr.f32.gmra.mrb[0].mxu0 %v247
      %v401 = vpop.f32.mrb[0].mxu0
      %v402 = vadd.f32 %v260, %v401
      %v403 = vpop.f32.mrb[0].mxu0
      %404 = vdwg.mxu0
      %v405 = vadd.f32 %v244, %v331
      %v406 = vxor.u32 %v405, 2147483648
      %v407 = vmul.f32 %v406, 1.442695
      %v408 = vpow.pop %v407
      %v409 = vadd.f32 %v408, 1.0
      %v410 = vrcp.pop %v409
      %v411 = vmul.f32 1.0, %v410
      %v412 = vadd.f32 %v245, %v333
      %v413 = vxor.u32 %v412, 2147483648
      %v414 = vmul.f32 %v413, 1.442695
      %v415 = vpow.pop %v414
      %v416 = vadd.f32 %v415, 1.0
      %v417 = vrcp.pop %v416
      %v418 = vmul.f32 1.0, %v417
      %v419 = vmul.f32 %v411, %v402
      %v420 = vadd.f32 %v246, %v419
      %v421 = vtanh.pop %v420
      %v422 = vsub.f32 1.0, %v418
      %v423 = vmul.f32 %v422, %v421
      %v424 = vmul.f32 %v418, %v247
      %v425 = vadd.f32 %v423, %v424
      %426 = vst [vmem:[#allocation2] sm:$0xff] %v425
      %s427 = scalar_lea.vmem %s186, 56
      %428 = vst [vmem:[%s427] sm:$0xff] %v425
      %s429 = scalar_lea.vmem %s178, 144
      %v430 = vld [vmem:[%s429] sm:$0xff]
      %v431 = vld [vmem:[%s429 + $0x8] sm:$0xff]
      %v432 = vld [vmem:[%s429 + $0x10] sm:$0xff]
      %v433 = vld [vmem:[#allocation2] sm:$0xff]
      %434 = vmatprep.subr.mxu0 %v195
      %435 = vmatpush1.msra.mxu0 %v194
      %436 = vmatprep.subr.mxu0 %v198
      %437 = vmatpush1.msra.mxu0 %v197
      %438 = vmatprep.subr.mxu0 %v201
      %439 = vmatpush1.msra.mxu0 %v200
      %440 = vmatprep.subr.mxu0 %v204
      %441 = vmatpush1.msra.mxu0 %v203
      %442 = vmatprep.subr.mxu0 %v207
      %443 = vmatpush1.msra.mxu0 %v206
      %444 = vmatprep.subr.mxu0 %v210
      %445 = vmatpush1.msra.mxu0 %v209
      %446 = vmatprep.subr.mxu0 %v213
      %447 = vmatpush1.msra.mxu0 %v212
      %448 = vmatprep.subr.mxu0 %v216
      %449 = vmatpush1.msra.mxu0 %v215
      %450 = vmatprep.subr.mxu0 %v219
      %451 = vmatpush1.msra.mxu0 %v218
      %452 = vmatprep.subr.mxu0 %v222
      %453 = vmatpush1.msra.mxu0 %v221
      %454 = vmatprep.subr.mxu0 %v225
      %455 = vmatpush1.msra.mxu0 %v224
      %456 = vmatprep.subr.mxu0 %v228
      %457 = vmatpush1.msra.mxu0 %v227
      %458 = vmatprep.subr.mxu0 %v231
      %459 = vmatpush1.msra.mxu0 %v230
      %460 = vmatprep.subr.mxu0 %v234
      %461 = vmatpush1.msra.mxu0 %v233
      %462 = vmatprep.subr.mxu0 %v237
      %463 = vmatpush1.msra.mxu0 %v236
      %464 = vmatprep.subr.mxu0 %v240
      %465 = vmatpush1.msra.mxu0 %v239
      %466 = vmatprep.subr.mxu0 0.0
      %467 = vmatpush1.msra.mxu0 0.0
      %468 = vmatprep.subr.mxu0 0.0
      %469 = vmatpush1.msra.mxu0 0.0
      %470 = vmatprep.subr.mxu0 0.0
      %471 = vmatpush1.msra.mxu0 0.0
      %472 = vmatprep.subr.mxu0 0.0
      %473 = vmatpush1.msra.mxu0 0.0
      %474 = vmatprep.subr.mxu0 0.0
      %475 = vmatpush1.msra.mxu0 0.0
      %476 = vmatprep.subr.mxu0 0.0
      %477 = vmatpush1.msra.mxu0 0.0
      %478 = vmatprep.subr.mxu0 0.0
      %479 = vmatpush1.msra.mxu0 0.0
      %480 = vmatprep.subr.mxu0 0.0
      %481 = vmatpush1.msra.mxu0 0.0
      %482 = vmatprep.subr.mxu0 0.0
      %483 = vmatpush1.msra.mxu0 0.0
      %484 = vmatprep.subr.mxu0 0.0
      %485 = vmatpush1.msra.mxu0 0.0
      %486 = vmatprep.subr.mxu0 0.0
      %487 = vmatpush1.msra.mxu0 0.0
      %488 = vmatprep.subr.mxu0 0.0
      %489 = vmatpush1.msra.mxu0 0.0
      %490 = vmatprep.subr.mxu0 0.0
      %491 = vmatpush1.msra.mxu0 0.0
      %492 = vmatprep.subr.mxu0 0.0
      %493 = vmatpush1.msra.mxu0 0.0
      %494 = vmatprep.subr.mxu0 0.0
      %495 = vmatpush1.msra.mxu0 0.0
      %496 = vmatprep.subr.mxu0 0.0
      %497 = vmatpush1.msra.mxu0 0.0
      %498 = vmatprep.mubr.f32.mxu0 0.0
      %499 = vmatmul.mubr.f32.gmra.mrb[0].mxu0 %v433
      %v500 = vpop.f32.mrb[0].mxu0
      %v501 = vadd.f32 %v252, %v500
      %v502 = vpop.f32.mrb[0].mxu0
      %v503 = vadd.f32 %v256, %v502
      %504 = vdwg.mxu0
      %505 = vmatprep.subr.mxu0 0.0
      %506 = vmatpush1.msra.mxu0 %v196
      %507 = vmatprep.subr.mxu0 0.0
      %508 = vmatpush1.msra.mxu0 %v199
      %509 = vmatprep.subr.mxu0 0.0
      %510 = vmatpush1.msra.mxu0 %v202
      %511 = vmatprep.subr.mxu0 0.0
      %512 = vmatpush1.msra.mxu0 %v205
      %513 = vmatprep.subr.mxu0 0.0
      %514 = vmatpush1.msra.mxu0 %v208
      %515 = vmatprep.subr.mxu0 0.0
      %516 = vmatpush1.msra.mxu0 %v211
      %517 = vmatprep.subr.mxu0 0.0
      %518 = vmatpush1.msra.mxu0 %v214
      %519 = vmatprep.subr.mxu0 0.0
      %520 = vmatpush1.msra.mxu0 %v217
      %521 = vmatprep.subr.mxu0 0.0
      %522 = vmatpush1.msra.mxu0 %v220
      %523 = vmatprep.subr.mxu0 0.0
      %524 = vmatpush1.msra.mxu0 %v223
      %525 = vmatprep.subr.mxu0 0.0
      %526 = vmatpush1.msra.mxu0 %v226
      %527 = vmatprep.subr.mxu0 0.0
      %528 = vmatpush1.msra.mxu0 %v229
      %529 = vmatprep.subr.mxu0 0.0
      %530 = vmatpush1.msra.mxu0 %v232
      %531 = vmatprep.subr.mxu0 0.0
      %532 = vmatpush1.msra.mxu0 %v235
      %533 = vmatprep.subr.mxu0 0.0
      %534 = vmatpush1.msra.mxu0 %v238
      %535 = vmatprep.subr.mxu0 0.0
      %536 = vmatpush1.msra.mxu0 %v241
      %537 = vmatprep.subr.mxu0 0.0
      %538 = vmatpush1.msra.mxu0 0.0
      %539 = vmatprep.subr.mxu0 0.0
      %540 = vmatpush1.msra.mxu0 0.0
      %541 = vmatprep.subr.mxu0 0.0
      %542 = vmatpush1.msra.mxu0 0.0
      %543 = vmatprep.subr.mxu0 0.0
      %544 = vmatpush1.msra.mxu0 0.0
      %545 = vmatprep.subr.mxu0 0.0
      %546 = vmatpush1.msra.mxu0 0.0
      %547 = vmatprep.subr.mxu0 0.0
      %548 = vmatpush1.msra.mxu0 0.0
      %549 = vmatprep.subr.mxu0 0.0
      %550 = vmatpush1.msra.mxu0 0.0
      %551 = vmatprep.subr.mxu0 0.0
      %552 = vmatpush1.msra.mxu0 0.0
      %553 = vmatprep.subr.mxu0 0.0
      %554 = vmatpush1.msra.mxu0 0.0
      %555 = vmatprep.subr.mxu0 0.0
      %556 = vmatpush1.msra.mxu0 0.0
      %557 = vmatprep.subr.mxu0 0.0
      %558 = vmatpush1.msra.mxu0 0.0
      %559 = vmatprep.subr.mxu0 0.0
      %560 = vmatpush1.msra.mxu0 0.0
      %561 = vmatprep.subr.mxu0 0.0
      %562 = vmatpush1.msra.mxu0 0.0
      %563 = vmatprep.subr.mxu0 0.0
      %564 = vmatpush1.msra.mxu0 0.0
      %565 = vmatprep.subr.mxu0 0.0
      %566 = vmatpush1.msra.mxu0 0.0
      %567 = vmatprep.subr.mxu0 0.0
      %568 = vmatpush1.msra.mxu0 0.0
      %569 = vmatprep.mubr.f32.mxu0 0.0
      %570 = vmatmul.mubr.f32.gmra.mrb[0].mxu0 %v433
      %v571 = vpop.f32.mrb[0].mxu0
      %v572 = vadd.f32 %v260, %v571
      %v573 = vpop.f32.mrb[0].mxu0
      %574 = vdwg.mxu0
      %v575 = vadd.f32 %v430, %v501
      %v576 = vxor.u32 %v575, 2147483648
      %v577 = vmul.f32 %v576, 1.442695
      %v578 = vpow.pop %v577
      %v579 = vadd.f32 %v578, 1.0
      %v580 = vrcp.pop %v579
      %v581 = vmul.f32 1.0, %v580
      %v582 = vadd.f32 %v431, %v503
      %v583 = vxor.u32 %v582, 2147483648
      %v584 = vmul.f32 %v583, 1.442695
      %v585 = vpow.pop %v584
      %v586 = vadd.f32 %v585, 1.0
      %v587 = vrcp.pop %v586
      %v588 = vmul.f32 1.0, %v587
      %v589 = vmul.f32 %v581, %v572
      %v590 = vadd.f32 %v432, %v589
      %v591 = vtanh.pop %v590
      %v592 = vsub.f32 1.0, %v588
      %v593 = vmul.f32 %v592, %v591
      %v594 = vmul.f32 %v588, %v433
      %v595 = vadd.f32 %v593, %v594
      %596 = vst [vmem:[#allocation2] sm:$0xff] %v595
      %s597 = scalar_lea.vmem %s186, 48
      %598 = vst [vmem:[%s597] sm:$0xff] %v595
      %s599 = scalar_lea.vmem %s178, 120
      %v600 = vld [vmem:[%s599] sm:$0xff]
      %v601 = vld [vmem:[%s599 + $0x8] sm:$0xff]
      %v602 = vld [vmem:[%s599 + $0x10] sm:$0xff]
      %v603 = vld [vmem:[#allocation2] sm:$0xff]
      %604 = vmatprep.subr.mxu0 %v195
      %605 = vmatpush1.msra.mxu0 %v194
      %606 = vmatprep.subr.mxu0 %v198
      %607 = vmatpush1.msra.mxu0 %v197
      %608 = vmatprep.subr.mxu0 %v201
      %609 = vmatpush1.msra.mxu0 %v200
      %610 = vmatprep.subr.mxu0 %v204
      %611 = vmatpush1.msra.mxu0 %v203
      %612 = vmatprep.subr.mxu0 %v207
      %613 = vmatpush1.msra.mxu0 %v206
      %614 = vmatprep.subr.mxu0 %v210
      %615 = vmatpush1.msra.mxu0 %v209
      %616 = vmatprep.subr.mxu0 %v213
      %617 = vmatpush1.msra.mxu0 %v212
      %618 = vmatprep.subr.mxu0 %v216
      %619 = vmatpush1.msra.mxu0 %v215
      %620 = vmatprep.subr.mxu0 %v219
      %621 = vmatpush1.msra.mxu0 %v218
      %622 = vmatprep.subr.mxu0 %v222
      %623 = vmatpush1.msra.mxu0 %v221
      %624 = vmatprep.subr.mxu0 %v225
      %625 = vmatpush1.msra.mxu0 %v224
      %626 = vmatprep.subr.mxu0 %v228
      %627 = vmatpush1.msra.mxu0 %v227
      %628 = vmatprep.subr.mxu0 %v231
      %629 = vmatpush1.msra.mxu0 %v230
      %630 = vmatprep.subr.mxu0 %v234
      %631 = vmatpush1.msra.mxu0 %v233
      %632 = vmatprep.subr.mxu0 %v237
      %633 = vmatpush1.msra.mxu0 %v236
      %634 = vmatprep.subr.mxu0 %v240
      %635 = vmatpush1.msra.mxu0 %v239
      %636 = vmatprep.subr.mxu0 0.0
      %637 = vmatpush1.msra.mxu0 0.0
      %638 = vmatprep.subr.mxu0 0.0
      %639 = vmatpush1.msra.mxu0 0.0
      %640 = vmatprep.subr.mxu0 0.0
      %641 = vmatpush1.msra.mxu0 0.0
      %642 = vmatprep.subr.mxu0 0.0
      %643 = vmatpush1.msra.mxu0 0.0
      %644 = vmatprep.subr.mxu0 0.0
      %645 = vmatpush1.msra.mxu0 0.0
      %646 = vmatprep.subr.mxu0 0.0
      %647 = vmatpush1.msra.mxu0 0.0
      %648 = vmatprep.subr.mxu0 0.0
      %649 = vmatpush1.msra.mxu0 0.0
      %650 = vmatprep.subr.mxu0 0.0
      %651 = vmatpush1.msra.mxu0 0.0
      %652 = vmatprep.subr.mxu0 0.0
      %653 = vmatpush1.msra.mxu0 0.0
      %654 = vmatprep.subr.mxu0 0.0
      %655 = vmatpush1.msra.mxu0 0.0
      %656 = vmatprep.subr.mxu0 0.0
      %657 = vmatpush1.msra.mxu0 0.0
      %658 = vmatprep.subr.mxu0 0.0
      %659 = vmatpush1.msra.mxu0 0.0
      %660 = vmatprep.subr.mxu0 0.0
      %661 = vmatpush1.msra.mxu0 0.0
      %662 = vmatprep.subr.mxu0 0.0
      %663 = vmatpush1.msra.mxu0 0.0
      %664 = vmatprep.subr.mxu0 0.0
      %665 = vmatpush1.msra.mxu0 0.0
      %666 = vmatprep.subr.mxu0 0.0
      %667 = vmatpush1.msra.mxu0 0.0
      %668 = vmatprep.mubr.f32.mxu0 0.0
      %669 = vmatmul.mubr.f32.gmra.mrb[0].mxu0 %v603
      %v670 = vpop.f32.mrb[0].mxu0
      %v671 = vadd.f32 %v252, %v670
      %v672 = vpop.f32.mrb[0].mxu0
      %v673 = vadd.f32 %v256, %v672
      %674 = vdwg.mxu0
      %675 = vmatprep.subr.mxu0 0.0
      %676 = vmatpush1.msra.mxu0 %v196
      %677 = vmatprep.subr.mxu0 0.0
      %678 = vmatpush1.msra.mxu0 %v199
      %679 = vmatprep.subr.mxu0 0.0
      %680 = vmatpush1.msra.mxu0 %v202
      %681 = vmatprep.subr.mxu0 0.0
      %682 = vmatpush1.msra.mxu0 %v205
      %683 = vmatprep.subr.mxu0 0.0
      %684 = vmatpush1.msra.mxu0 %v208
      %685 = vmatprep.subr.mxu0 0.0
      %686 = vmatpush1.msra.mxu0 %v211
      %687 = vmatprep.subr.mxu0 0.0
      %688 = vmatpush1.msra.mxu0 %v214
      %689 = vmatprep.subr.mxu0 0.0
      %690 = vmatpush1.msra.mxu0 %v217
      %691 = vmatprep.subr.mxu0 0.0
      %692 = vmatpush1.msra.mxu0 %v220
      %693 = vmatprep.subr.mxu0 0.0
      %694 = vmatpush1.msra.mxu0 %v223
      %695 = vmatprep.subr.mxu0 0.0
      %696 = vmatpush1.msra.mxu0 %v226
      %697 = vmatprep.subr.mxu0 0.0
      %698 = vmatpush1.msra.mxu0 %v229
      %699 = vmatprep.subr.mxu0 0.0
      %700 = vmatpush1.msra.mxu0 %v232
      %701 = vmatprep.subr.mxu0 0.0
      %702 = vmatpush1.msra.mxu0 %v235
      %703 = vmatprep.subr.mxu0 0.0
      %704 = vmatpush1.msra.mxu0 %v238
      %705 = vmatprep.subr.mxu0 0.0
      %706 = vmatpush1.msra.mxu0 %v241
      %707 = vmatprep.subr.mxu0 0.0
      %708 = vmatpush1.msra.mxu0 0.0
      %709 = vmatprep.subr.mxu0 0.0
      %710 = vmatpush1.msra.mxu0 0.0
      %711 = vmatprep.subr.mxu0 0.0
      %712 = vmatpush1.msra.mxu0 0.0
      %713 = vmatprep.subr.mxu0 0.0
      %714 = vmatpush1.msra.mxu0 0.0
      %715 = vmatprep.subr.mxu0 0.0
      %716 = vmatpush1.msra.mxu0 0.0
      %717 = vmatprep.subr.mxu0 0.0
      %718 = vmatpush1.msra.mxu0 0.0
      %719 = vmatprep.subr.mxu0 0.0
      %720 = vmatpush1.msra.mxu0 0.0
      %721 = vmatprep.subr.mxu0 0.0
      %722 = vmatpush1.msra.mxu0 0.0
      %723 = vmatprep.subr.mxu0 0.0
      %724 = vmatpush1.msra.mxu0 0.0
      %725 = vmatprep.subr.mxu0 0.0
      %726 = vmatpush1.msra.mxu0 0.0
      %727 = vmatprep.subr.mxu0 0.0
      %728 = vmatpush1.msra.mxu0 0.0
      %729 = vmatprep.subr.mxu0 0.0
      %730 = vmatpush1.msra.mxu0 0.0
      %731 = vmatprep.subr.mxu0 0.0
      %732 = vmatpush1.msra.mxu0 0.0
      %733 = vmatprep.subr.mxu0 0.0
      %734 = vmatpush1.msra.mxu0 0.0
      %735 = vmatprep.subr.mxu0 0.0
      %736 = vmatpush1.msra.mxu0 0.0
      %737 = vmatprep.subr.mxu0 0.0
      %738 = vmatpush1.msra.mxu0 0.0
      %739 = vmatprep.mubr.f32.mxu0 0.0
      %740 = vmatmul.mubr.f32.gmra.mrb[0].mxu0 %v603
      %v741 = vpop.f32.mrb[0].mxu0
      %v742 = vadd.f32 %v260, %v741
      %v743 = vpop.f32.mrb[0].mxu0
      %744 = vdwg.mxu0
      %v745 = vadd.f32 %v600, %v671
      %v746 = vxor.u32 %v745, 2147483648
      %v747 = vmul.f32 %v746, 1.442695
      %v748 = vpow.pop %v747
      %v749 = vadd.f32 %v748, 1.0
      %v750 = vrcp.pop %v749
      %v751 = vmul.f32 1.0, %v750
      %v752 = vadd.f32 %v601, %v673
      %v753 = vxor.u32 %v752, 2147483648
      %v754 = vmul.f32 %v753, 1.442695
      %v755 = vpow.pop %v754
      %v756 = vadd.f32 %v755, 1.0
      %v757 = vrcp.pop %v756
      %v758 = vmul.f32 1.0, %v757
      %v759 = vmul.f32 %v751, %v742
      %v760 = vadd.f32 %v602, %v759
      %v761 = vtanh.pop %v760
      %v762 = vsub.f32 1.0, %v758
      %v763 = vmul.f32 %v762, %v761
      %v764 = vmul.f32 %v758, %v603
      %v765 = vadd.f32 %v763, %v764
      %766 = vst [vmem:[#allocation2] sm:$0xff] %v765
      %s767 = scalar_lea.vmem %s186, 40
      %768 = vst [vmem:[%s767] sm:$0xff] %v765
      %s769 = scalar_lea.vmem %s178, 96
      %v770 = vld [vmem:[%s769] sm:$0xff]
      %v771 = vld [vmem:[%s769 + $0x8] sm:$0xff]
      %v772 = vld [vmem:[%s769 + $0x10] sm:$0xff]
      %v773 = vld [vmem:[#allocation2] sm:$0xff]
      %774 = vmatprep.subr.mxu0 %v195
      %775 = vmatpush1.msra.mxu0 %v194
      %776 = vmatprep.subr.mxu0 %v198
      %777 = vmatpush1.msra.mxu0 %v197
      %778 = vmatprep.subr.mxu0 %v201
      %779 = vmatpush1.msra.mxu0 %v200
      %780 = vmatprep.subr.mxu0 %v204
      %781 = vmatpush1.msra.mxu0 %v203
      %782 = vmatprep.subr.mxu0 %v207
      %783 = vmatpush1.msra.mxu0 %v206
      %784 = vmatprep.subr.mxu0 %v210
      %785 = vmatpush1.msra.mxu0 %v209
      %786 = vmatprep.subr.mxu0 %v213
      %787 = vmatpush1.msra.mxu0 %v212
      %788 = vmatprep.subr.mxu0 %v216
      %789 = vmatpush1.msra.mxu0 %v215
      %790 = vmatprep.subr.mxu0 %v219
      %791 = vmatpush1.msra.mxu0 %v218
      %792 = vmatprep.subr.mxu0 %v222
      %793 = vmatpush1.msra.mxu0 %v221
      %794 = vmatprep.subr.mxu0 %v225
      %795 = vmatpush1.msra.mxu0 %v224
      %796 = vmatprep.subr.mxu0 %v228
      %797 = vmatpush1.msra.mxu0 %v227
      %798 = vmatprep.subr.mxu0 %v231
      %799 = vmatpush1.msra.mxu0 %v230
      %800 = vmatprep.subr.mxu0 %v234
      %801 = vmatpush1.msra.mxu0 %v233
      %802 = vmatprep.subr.mxu0 %v237
      %803 = vmatpush1.msra.mxu0 %v236
      %804 = vmatprep.subr.mxu0 %v240
      %805 = vmatpush1.msra.mxu0 %v239
      %806 = vmatprep.subr.mxu0 0.0
      %807 = vmatpush1.msra.mxu0 0.0
      %808 = vmatprep.subr.mxu0 0.0
      %809 = vmatpush1.msra.mxu0 0.0
      %810 = vmatprep.subr.mxu0 0.0
      %811 = vmatpush1.msra.mxu0 0.0
      %812 = vmatprep.subr.mxu0 0.0
      %813 = vmatpush1.msra.mxu0 0.0
      %814 = vmatprep.subr.mxu0 0.0
      %815 = vmatpush1.msra.mxu0 0.0
      %816 = vmatprep.subr.mxu0 0.0
      %817 = vmatpush1.msra.mxu0 0.0
      %818 = vmatprep.subr.mxu0 0.0
      %819 = vmatpush1.msra.mxu0 0.0
      %820 = vmatprep.subr.mxu0 0.0
      %821 = vmatpush1.msra.mxu0 0.0
      %822 = vmatprep.subr.mxu0 0.0
      %823 = vmatpush1.msra.mxu0 0.0
      %824 = vmatprep.subr.mxu0 0.0
      %825 = vmatpush1.msra.mxu0 0.0
      %826 = vmatprep.subr.mxu0 0.0
      %827 = vmatpush1.msra.mxu0 0.0
      %828 = vmatprep.subr.mxu0 0.0
      %829 = vmatpush1.msra.mxu0 0.0
      %830 = vmatprep.subr.mxu0 0.0
      %831 = vmatpush1.msra.mxu0 0.0
      %832 = vmatprep.subr.mxu0 0.0
      %833 = vmatpush1.msra.mxu0 0.0
      %834 = vmatprep.subr.mxu0 0.0
      %835 = vmatpush1.msra.mxu0 0.0
      %836 = vmatprep.subr.mxu0 0.0
      %837 = vmatpush1.msra.mxu0 0.0
      %838 = vmatprep.mubr.f32.mxu0 0.0
      %839 = vmatmul.mubr.f32.gmra.mrb[0].mxu0 %v773
      %v840 = vpop.f32.mrb[0].mxu0
      %v841 = vadd.f32 %v252, %v840
      %v842 = vpop.f32.mrb[0].mxu0
      %v843 = vadd.f32 %v256, %v842
      %844 = vdwg.mxu0
      %845 = vmatprep.subr.mxu0 0.0
      %846 = vmatpush1.msra.mxu0 %v196
      %847 = vmatprep.subr.mxu0 0.0
      %848 = vmatpush1.msra.mxu0 %v199
      %849 = vmatprep.subr.mxu0 0.0
      %850 = vmatpush1.msra.mxu0 %v202
      %851 = vmatprep.subr.mxu0 0.0
      %852 = vmatpush1.msra.mxu0 %v205
      %853 = vmatprep.subr.mxu0 0.0
      %854 = vmatpush1.msra.mxu0 %v208
      %855 = vmatprep.subr.mxu0 0.0
      %856 = vmatpush1.msra.mxu0 %v211
      %857 = vmatprep.subr.mxu0 0.0
      %858 = vmatpush1.msra.mxu0 %v214
      %859 = vmatprep.subr.mxu0 0.0
      %860 = vmatpush1.msra.mxu0 %v217
      %861 = vmatprep.subr.mxu0 0.0
      %862 = vmatpush1.msra.mxu0 %v220
      %863 = vmatprep.subr.mxu0 0.0
      %864 = vmatpush1.msra.mxu0 %v223
      %865 = vmatprep.subr.mxu0 0.0
      %866 = vmatpush1.msra.mxu0 %v226
      %867 = vmatprep.subr.mxu0 0.0
      %868 = vmatpush1.msra.mxu0 %v229
      %869 = vmatprep.subr.mxu0 0.0
      %870 = vmatpush1.msra.mxu0 %v232
      %871 = vmatprep.subr.mxu0 0.0
      %872 = vmatpush1.msra.mxu0 %v235
      %873 = vmatprep.subr.mxu0 0.0
      %874 = vmatpush1.msra.mxu0 %v238
      %875 = vmatprep.subr.mxu0 0.0
      %876 = vmatpush1.msra.mxu0 %v241
      %877 = vmatprep.subr.mxu0 0.0
      %878 = vmatpush1.msra.mxu0 0.0
      %879 = vmatprep.subr.mxu0 0.0
      %880 = vmatpush1.msra.mxu0 0.0
      %881 = vmatprep.subr.mxu0 0.0
      %882 = vmatpush1.msra.mxu0 0.0
      %883 = vmatprep.subr.mxu0 0.0
      %884 = vmatpush1.msra.mxu0 0.0
      %885 = vmatprep.subr.mxu0 0.0
      %886 = vmatpush1.msra.mxu0 0.0
      %887 = vmatprep.subr.mxu0 0.0
      %888 = vmatpush1.msra.mxu0 0.0
      %889 = vmatprep.subr.mxu0 0.0
      %890 = vmatpush1.msra.mxu0 0.0
      %891 = vmatprep.subr.mxu0 0.0
      %892 = vmatpush1.msra.mxu0 0.0
      %893 = vmatprep.subr.mxu0 0.0
      %894 = vmatpush1.msra.mxu0 0.0
      %895 = vmatprep.subr.mxu0 0.0
      %896 = vmatpush1.msra.mxu0 0.0
      %897 = vmatprep.subr.mxu0 0.0
      %898 = vmatpush1.msra.mxu0 0.0
      %899 = vmatprep.subr.mxu0 0.0
      %900 = vmatpush1.msra.mxu0 0.0
      %901 = vmatprep.subr.mxu0 0.0
      %902 = vmatpush1.msra.mxu0 0.0
      %903 = vmatprep.subr.mxu0 0.0
      %904 = vmatpush1.msra.mxu0 0.0
      %905 = vmatprep.subr.mxu0 0.0
      %906 = vmatpush1.msra.mxu0 0.0
      %907 = vmatprep.subr.mxu0 0.0
      %908 = vmatpush1.msra.mxu0 0.0
      %909 = vmatprep.mubr.f32.mxu0 0.0
      %910 = vmatmul.mubr.f32.gmra.mrb[0].mxu0 %v773
      %v911 = vpop.f32.mrb[0].mxu0
      %v912 = vadd.f32 %v260, %v911
      %v913 = vpop.f32.mrb[0].mxu0
      %914 = vdwg.mxu0
      %v915 = vadd.f32 %v770, %v841
      %v916 = vxor.u32 %v915, 2147483648
      %v917 = vmul.f32 %v916, 1.442695
      %v918 = vpow.pop %v917
      %v919 = vadd.f32 %v918, 1.0
      %v920 = vrcp.pop %v919
      %v921 = vmul.f32 1.0, %v920
      %v922 = vadd.f32 %v771, %v843
      %v923 = vxor.u32 %v922, 2147483648
      %v924 = vmul.f32 %v923, 1.442695
      %v925 = vpow.pop %v924
      %v926 = vadd.f32 %v925, 1.0
      %v927 = vrcp.pop %v926
      %v928 = vmul.f32 1.0, %v927
      %v929 = vmul.f32 %v921, %v912
      %v930 = vadd.f32 %v772, %v929
      %v931 = vtanh.pop %v930
      %v932 = vsub.f32 1.0, %v928
      %v933 = vmul.f32 %v932, %v931
      %v934 = vmul.f32 %v928, %v773
      %v935 = vadd.f32 %v933, %v934
      %936 = vst [vmem:[#allocation2] sm:$0xff] %v935
      %s937 = scalar_lea.vmem %s186, 32
      %938 = vst [vmem:[%s937] sm:$0xff] %v935
      %s939 = scalar_lea.vmem %s178, 72
      %v940 = vld [vmem:[%s939] sm:$0xff]
      %v941 = vld [vmem:[%s939 + $0x8] sm:$0xff]
      %v942 = vld [vmem:[%s939 + $0x10] sm:$0xff]
      %v943 = vld [vmem:[#allocation2] sm:$0xff]
      %944 = vmatprep.subr.mxu0 %v195
      %945 = vmatpush1.msra.mxu0 %v194
      %946 = vmatprep.subr.mxu0 %v198
      %947 = vmatpush1.msra.mxu0 %v197
      %948 = vmatprep.subr.mxu0 %v201
      %949 = vmatpush1.msra.mxu0 %v200
      %950 = vmatprep.subr.mxu0 %v204
      %951 = vmatpush1.msra.mxu0 %v203
      %952 = vmatprep.subr.mxu0 %v207
      %953 = vmatpush1.msra.mxu0 %v206
      %954 = vmatprep.subr.mxu0 %v210
      %955 = vmatpush1.msra.mxu0 %v209
      %956 = vmatprep.subr.mxu0 %v213
      %957 = vmatpush1.msra.mxu0 %v212
      %958 = vmatprep.subr.mxu0 %v216
      %959 = vmatpush1.msra.mxu0 %v215
      %960 = vmatprep.subr.mxu0 %v219
      %961 = vmatpush1.msra.mxu0 %v218
      %962 = vmatprep.subr.mxu0 %v222
      %963 = vmatpush1.msra.mxu0 %v221
      %964 = vmatprep.subr.mxu0 %v225
      %965 = vmatpush1.msra.mxu0 %v224
      %966 = vmatprep.subr.mxu0 %v228
      %967 = vmatpush1.msra.mxu0 %v227
      %968 = vmatprep.subr.mxu0 %v231
      %969 = vmatpush1.msra.mxu0 %v230
      %970 = vmatprep.subr.mxu0 %v234
      %971 = vmatpush1.msra.mxu0 %v233
      %972 = vmatprep.subr.mxu0 %v237
      %973 = vmatpush1.msra.mxu0 %v236
      %974 = vmatprep.subr.mxu0 %v240
      %975 = vmatpush1.msra.mxu0 %v239
      %976 = vmatprep.subr.mxu0 0.0
      %977 = vmatpush1.msra.mxu0 0.0
      %978 = vmatprep.subr.mxu0 0.0
      %979 = vmatpush1.msra.mxu0 0.0
      %980 = vmatprep.subr.mxu0 0.0
      %981 = vmatpush1.msra.mxu0 0.0
      %982 = vmatprep.subr.mxu0 0.0
      %983 = vmatpush1.msra.mxu0 0.0
      %984 = vmatprep.subr.mxu0 0.0
      %985 = vmatpush1.msra.mxu0 0.0
      %986 = vmatprep.subr.mxu0 0.0
      %987 = vmatpush1.msra.mxu0 0.0
      %988 = vmatprep.subr.mxu0 0.0
      %989 = vmatpush1.msra.mxu0 0.0
      %990 = vmatprep.subr.mxu0 0.0
      %991 = vmatpush1.msra.mxu0 0.0
      %992 = vmatprep.subr.mxu0 0.0
      %993 = vmatpush1.msra.mxu0 0.0
      %994 = vmatprep.subr.mxu0 0.0
      %995 = vmatpush1.msra.mxu0 0.0
      %996 = vmatprep.subr.mxu0 0.0
      %997 = vmatpush1.msra.mxu0 0.0
      %998 = vmatprep.subr.mxu0 0.0
      %999 = vmatpush1.msra.mxu0 0.0
      %1000 = vmatprep.subr.mxu0 0.0
      %1001 = vmatpush1.msra.mxu0 0.0
      %1002 = vmatprep.subr.mxu0 0.0
      %1003 = vmatpush1.msra.mxu0 0.0
      %1004 = vmatprep.subr.mxu0 0.0
      %1005 = vmatpush1.msra.mxu0 0.0
      %1006 = vmatprep.subr.mxu0 0.0
      %1007 = vmatpush1.msra.mxu0 0.0
      %1008 = vmatprep.mubr.f32.mxu0 0.0
      %1009 = vmatmul.mubr.f32.gmra.mrb[0].mxu0 %v943
      %v1010 = vpop.f32.mrb[0].mxu0
      %v1011 = vadd.f32 %v252, %v1010
      %v1012 = vpop.f32.mrb[0].mxu0
      %v1013 = vadd.f32 %v256, %v1012
      %1014 = vdwg.mxu0
      %1015 = vmatprep.subr.mxu0 0.0
      %1016 = vmatpush1.msra.mxu0 %v196
      %1017 = vmatprep.subr.mxu0 0.0
      %1018 = vmatpush1.msra.mxu0 %v199
      %1019 = vmatprep.subr.mxu0 0.0
      %1020 = vmatpush1.msra.mxu0 %v202
      %1021 = vmatprep.subr.mxu0 0.0
      %1022 = vmatpush1.msra.mxu0 %v205
      %1023 = vmatprep.subr.mxu0 0.0
      %1024 = vmatpush1.msra.mxu0 %v208
      %1025 = vmatprep.subr.mxu0 0.0
      %1026 = vmatpush1.msra.mxu0 %v211
      %1027 = vmatprep.subr.mxu0 0.0
      %1028 = vmatpush1.msra.mxu0 %v214
      %1029 = vmatprep.subr.mxu0 0.0
      %1030 = vmatpush1.msra.mxu0 %v217
      %1031 = vmatprep.subr.mxu0 0.0
      %1032 = vmatpush1.msra.mxu0 %v220
      %1033 = vmatprep.subr.mxu0 0.0
      %1034 = vmatpush1.msra.mxu0 %v223
      %1035 = vmatprep.subr.mxu0 0.0
      %1036 = vmatpush1.msra.mxu0 %v226
      %1037 = vmatprep.subr.mxu0 0.0
      %1038 = vmatpush1.msra.mxu0 %v229
      %1039 = vmatprep.subr.mxu0 0.0
      %1040 = vmatpush1.msra.mxu0 %v232
      %1041 = vmatprep.subr.mxu0 0.0
      %1042 = vmatpush1.msra.mxu0 %v235
      %1043 = vmatprep.subr.mxu0 0.0
      %1044 = vmatpush1.msra.mxu0 %v238
      %1045 = vmatprep.subr.mxu0 0.0
      %1046 = vmatpush1.msra.mxu0 %v241
      %1047 = vmatprep.subr.mxu0 0.0
      %1048 = vmatpush1.msra.mxu0 0.0
      %1049 = vmatprep.subr.mxu0 0.0
      %1050 = vmatpush1.msra.mxu0 0.0
      %1051 = vmatprep.subr.mxu0 0.0
      %1052 = vmatpush1.msra.mxu0 0.0
      %1053 = vmatprep.subr.mxu0 0.0
      %1054 = vmatpush1.msra.mxu0 0.0
      %1055 = vmatprep.subr.mxu0 0.0
      %1056 = vmatpush1.msra.mxu0 0.0
      %1057 = vmatprep.subr.mxu0 0.0
      %1058 = vmatpush1.msra.mxu0 0.0
      %1059 = vmatprep.subr.mxu0 0.0
      %1060 = vmatpush1.msra.mxu0 0.0
      %1061 = vmatprep.subr.mxu0 0.0
      %1062 = vmatpush1.msra.mxu0 0.0
      %1063 = vmatprep.subr.mxu0 0.0
      %1064 = vmatpush1.msra.mxu0 0.0
      %1065 = vmatprep.subr.mxu0 0.0
      %1066 = vmatpush1.msra.mxu0 0.0
      %1067 = vmatprep.subr.mxu0 0.0
      %1068 = vmatpush1.msra.mxu0 0.0
      %1069 = vmatprep.subr.mxu0 0.0
      %1070 = vmatpush1.msra.mxu0 0.0
      %1071 = vmatprep.subr.mxu0 0.0
      %1072 = vmatpush1.msra.mxu0 0.0
      %1073 = vmatprep.subr.mxu0 0.0
      %1074 = vmatpush1.msra.mxu0 0.0
      %1075 = vmatprep.subr.mxu0 0.0
      %1076 = vmatpush1.msra.mxu0 0.0
      %1077 = vmatprep.subr.mxu0 0.0
      %1078 = vmatpush1.msra.mxu0 0.0
      %1079 = vmatprep.mubr.f32.mxu0 0.0
      %1080 = vmatmul.mubr.f32.gmra.mrb[0].mxu0 %v943
      %v1081 = vpop.f32.mrb[0].mxu0
      %v1082 = vadd.f32 %v260, %v1081
      %v1083 = vpop.f32.mrb[0].mxu0
      %1084 = vdwg.mxu0
      %v1085 = vadd.f32 %v940, %v1011
      %v1086 = vxor.u32 %v1085, 2147483648
      %v1087 = vmul.f32 %v1086, 1.442695
      %v1088 = vpow.pop %v1087
      %v1089 = vadd.f32 %v1088, 1.0
      %v1090 = vrcp.pop %v1089
      %v1091 = vmul.f32 1.0, %v1090
      %v1092 = vadd.f32 %v941, %v1013
      %v1093 = vxor.u32 %v1092, 2147483648
      %v1094 = vmul.f32 %v1093, 1.442695
      %v1095 = vpow.pop %v1094
      %v1096 = vadd.f32 %v1095, 1.0
      %v1097 = vrcp.pop %v1096
      %v1098 = vmul.f32 1.0, %v1097
      %v1099 = vmul.f32 %v1091, %v1082
      %v1100 = vadd.f32 %v942, %v1099
      %v1101 = vtanh.pop %v1100
      %v1102 = vsub.f32 1.0, %v1098
      %v1103 = vmul.f32 %v1102, %v1101
      %v1104 = vmul.f32 %v1098, %v943
      %v1105 = vadd.f32 %v1103, %v1104
      %1106 = vst [vmem:[#allocation2] sm:$0xff] %v1105
      %s1107 = scalar_lea.vmem %s186, 24
      %1108 = vst [vmem:[%s1107] sm:$0xff] %v1105
      %s1109 = scalar_lea.vmem %s178, 48
      %v1110 = vld [vmem:[%s1109] sm:$0xff]
      %v1111 = vld [vmem:[%s1109 + $0x8] sm:$0xff]
      %v1112 = vld [vmem:[%s1109 + $0x10] sm:$0xff]
      %v1113 = vld [vmem:[#allocation2] sm:$0xff]
      %1114 = vmatprep.subr.mxu0 %v195
      %1115 = vmatpush1.msra.mxu0 %v194
      %1116 = vmatprep.subr.mxu0 %v198
      %1117 = vmatpush1.msra.mxu0 %v197
      %1118 = vmatprep.subr.mxu0 %v201
      %1119 = vmatpush1.msra.mxu0 %v200
      %1120 = vmatprep.subr.mxu0 %v204
      %1121 = vmatpush1.msra.mxu0 %v203
      %1122 = vmatprep.subr.mxu0 %v207
      %1123 = vmatpush1.msra.mxu0 %v206
      %1124 = vmatprep.subr.mxu0 %v210
      %1125 = vmatpush1.msra.mxu0 %v209
      %1126 = vmatprep.subr.mxu0 %v213
      %1127 = vmatpush1.msra.mxu0 %v212
      %1128 = vmatprep.subr.mxu0 %v216
      %1129 = vmatpush1.msra.mxu0 %v215
      %1130 = vmatprep.subr.mxu0 %v219
      %1131 = vmatpush1.msra.mxu0 %v218
      %1132 = vmatprep.subr.mxu0 %v222
      %1133 = vmatpush1.msra.mxu0 %v221
      %1134 = vmatprep.subr.mxu0 %v225
      %1135 = vmatpush1.msra.mxu0 %v224
      %1136 = vmatprep.subr.mxu0 %v228
      %1137 = vmatpush1.msra.mxu0 %v227
      %1138 = vmatprep.subr.mxu0 %v231
      %1139 = vmatpush1.msra.mxu0 %v230
      %1140 = vmatprep.subr.mxu0 %v234
      %1141 = vmatpush1.msra.mxu0 %v233
      %1142 = vmatprep.subr.mxu0 %v237
      %1143 = vmatpush1.msra.mxu0 %v236
      %1144 = vmatprep.subr.mxu0 %v240
      %1145 = vmatpush1.msra.mxu0 %v239
      %1146 = vmatprep.subr.mxu0 0.0
      %1147 = vmatpush1.msra.mxu0 0.0
      %1148 = vmatprep.subr.mxu0 0.0
      %1149 = vmatpush1.msra.mxu0 0.0
      %1150 = vmatprep.subr.mxu0 0.0
      %1151 = vmatpush1.msra.mxu0 0.0
      %1152 = vmatprep.subr.mxu0 0.0
      %1153 = vmatpush1.msra.mxu0 0.0
      %1154 = vmatprep.subr.mxu0 0.0
      %1155 = vmatpush1.msra.mxu0 0.0
      %1156 = vmatprep.subr.mxu0 0.0
      %1157 = vmatpush1.msra.mxu0 0.0
      %1158 = vmatprep.subr.mxu0 0.0
      %1159 = vmatpush1.msra.mxu0 0.0
      %1160 = vmatprep.subr.mxu0 0.0
      %1161 = vmatpush1.msra.mxu0 0.0
      %1162 = vmatprep.subr.mxu0 0.0
      %1163 = vmatpush1.msra.mxu0 0.0
      %1164 = vmatprep.subr.mxu0 0.0
      %1165 = vmatpush1.msra.mxu0 0.0
      %1166 = vmatprep.subr.mxu0 0.0
      %1167 = vmatpush1.msra.mxu0 0.0
      %1168 = vmatprep.subr.mxu0 0.0
      %1169 = vmatpush1.msra.mxu0 0.0
      %1170 = vmatprep.subr.mxu0 0.0
      %1171 = vmatpush1.msra.mxu0 0.0
      %1172 = vmatprep.subr.mxu0 0.0
      %1173 = vmatpush1.msra.mxu0 0.0
      %1174 = vmatprep.subr.mxu0 0.0
      %1175 = vmatpush1.msra.mxu0 0.0
      %1176 = vmatprep.subr.mxu0 0.0
      %1177 = vmatpush1.msra.mxu0 0.0
      %1178 = vmatprep.mubr.f32.mxu0 0.0
      %1179 = vmatmul.mubr.f32.gmra.mrb[0].mxu0 %v1113
      %v1180 = vpop.f32.mrb[0].mxu0
      %v1181 = vadd.f32 %v252, %v1180
      %v1182 = vpop.f32.mrb[0].mxu0
      %v1183 = vadd.f32 %v256, %v1182
      %1184 = vdwg.mxu0
      %1185 = vmatprep.subr.mxu0 0.0
      %1186 = vmatpush1.msra.mxu0 %v196
      %1187 = vmatprep.subr.mxu0 0.0
      %1188 = vmatpush1.msra.mxu0 %v199
      %1189 = vmatprep.subr.mxu0 0.0
      %1190 = vmatpush1.msra.mxu0 %v202
      %1191 = vmatprep.subr.mxu0 0.0
      %1192 = vmatpush1.msra.mxu0 %v205
      %1193 = vmatprep.subr.mxu0 0.0
      %1194 = vmatpush1.msra.mxu0 %v208
      %1195 = vmatprep.subr.mxu0 0.0
      %1196 = vmatpush1.msra.mxu0 %v211
      %1197 = vmatprep.subr.mxu0 0.0
      %1198 = vmatpush1.msra.mxu0 %v214
      %1199 = vmatprep.subr.mxu0 0.0
      %1200 = vmatpush1.msra.mxu0 %v217
      %1201 = vmatprep.subr.mxu0 0.0
      %1202 = vmatpush1.msra.mxu0 %v220
      %1203 = vmatprep.subr.mxu0 0.0
      %1204 = vmatpush1.msra.mxu0 %v223
      %1205 = vmatprep.subr.mxu0 0.0
      %1206 = vmatpush1.msra.mxu0 %v226
      %1207 = vmatprep.subr.mxu0 0.0
      %1208 = vmatpush1.msra.mxu0 %v229
      %1209 = vmatprep.subr.mxu0 0.0
      %1210 = vmatpush1.msra.mxu0 %v232
      %1211 = vmatprep.subr.mxu0 0.0
      %1212 = vmatpush1.msra.mxu0 %v235
      %1213 = vmatprep.subr.mxu0 0.0
      %1214 = vmatpush1.msra.mxu0 %v238
      %1215 = vmatprep.subr.mxu0 0.0
      %1216 = vmatpush1.msra.mxu0 %v241
      %1217 = vmatprep.subr.mxu0 0.0
      %1218 = vmatpush1.msra.mxu0 0.0
      %1219 = vmatprep.subr.mxu0 0.0
      %1220 = vmatpush1.msra.mxu0 0.0
      %1221 = vmatprep.subr.mxu0 0.0
      %1222 = vmatpush1.msra.mxu0 0.0
      %1223 = vmatprep.subr.mxu0 0.0
      %1224 = vmatpush1.msra.mxu0 0.0
      %1225 = vmatprep.subr.mxu0 0.0
      %1226 = vmatpush1.msra.mxu0 0.0
      %1227 = vmatprep.subr.mxu0 0.0
      %1228 = vmatpush1.msra.mxu0 0.0
      %1229 = vmatprep.subr.mxu0 0.0
      %1230 = vmatpush1.msra.mxu0 0.0
      %1231 = vmatprep.subr.mxu0 0.0
      %1232 = vmatpush1.msra.mxu0 0.0
      %1233 = vmatprep.subr.mxu0 0.0
      %1234 = vmatpush1.msra.mxu0 0.0
      %1235 = vmatprep.subr.mxu0 0.0
      %1236 = vmatpush1.msra.mxu0 0.0
      %1237 = vmatprep.subr.mxu0 0.0
      %1238 = vmatpush1.msra.mxu0 0.0
      %1239 = vmatprep.subr.mxu0 0.0
      %1240 = vmatpush1.msra.mxu0 0.0
      %1241 = vmatprep.subr.mxu0 0.0
      %1242 = vmatpush1.msra.mxu0 0.0
      %1243 = vmatprep.subr.mxu0 0.0
      %1244 = vmatpush1.msra.mxu0 0.0
      %1245 = vmatprep.subr.mxu0 0.0
      %1246 = vmatpush1.msra.mxu0 0.0
      %1247 = vmatprep.subr.mxu0 0.0
      %1248 = vmatpush1.msra.mxu0 0.0
      %1249 = vmatprep.mubr.f32.mxu0 0.0
      %1250 = vmatmul.mubr.f32.gmra.mrb[0].mxu0 %v1113
      %v1251 = vpop.f32.mrb[0].mxu0
      %v1252 = vadd.f32 %v260, %v1251
      %v1253 = vpop.f32.mrb[0].mxu0
      %1254 = vdwg.mxu0
      %v1255 = vadd.f32 %v1110, %v1181
      %v1256 = vxor.u32 %v1255, 2147483648
      %v1257 = vmul.f32 %v1256, 1.442695
      %v1258 = vpow.pop %v1257
      %v1259 = vadd.f32 %v1258, 1.0
      %v1260 = vrcp.pop %v1259
      %v1261 = vmul.f32 1.0, %v1260
      %v1262 = vadd.f32 %v1111, %v1183
      %v1263 = vxor.u32 %v1262, 2147483648
      %v1264 = vmul.f32 %v1263, 1.442695
      %v1265 = vpow.pop %v1264
      %v1266 = vadd.f32 %v1265, 1.0
      %v1267 = vrcp.pop %v1266
      %v1268 = vmul.f32 1.0, %v1267
      %v1269 = vmul.f32 %v1261, %v1252
      %v1270 = vadd.f32 %v1112, %v1269
      %v1271 = vtanh.pop %v1270
      %v1272 = vsub.f32 1.0, %v1268
      %v1273 = vmul.f32 %v1272, %v1271
      %v1274 = vmul.f32 %v1268, %v1113
      %v1275 = vadd.f32 %v1273, %v1274
      %1276 = vst [vmem:[#allocation2] sm:$0xff] %v1275
      %s1277 = scalar_lea.vmem %s186, 16
      %1278 = vst [vmem:[%s1277] sm:$0xff] %v1275
      %s1279 = scalar_lea.vmem %s178, 24
      %v1280 = vld [vmem:[%s1279] sm:$0xff]
      %v1281 = vld [vmem:[%s1279 + $0x8] sm:$0xff]
      %v1282 = vld [vmem:[%s1279 + $0x10] sm:$0xff]
      %v1283 = vld [vmem:[#allocation2] sm:$0xff]
      %1284 = vmatprep.subr.mxu0 %v195
      %1285 = vmatpush1.msra.mxu0 %v194
      %1286 = vmatprep.subr.mxu0 %v198
      %1287 = vmatpush1.msra.mxu0 %v197
      %1288 = vmatprep.subr.mxu0 %v201
      %1289 = vmatpush1.msra.mxu0 %v200
      %1290 = vmatprep.subr.mxu0 %v204
      %1291 = vmatpush1.msra.mxu0 %v203
      %1292 = vmatprep.subr.mxu0 %v207
      %1293 = vmatpush1.msra.mxu0 %v206
      %1294 = vmatprep.subr.mxu0 %v210
      %1295 = vmatpush1.msra.mxu0 %v209
      %1296 = vmatprep.subr.mxu0 %v213
      %1297 = vmatpush1.msra.mxu0 %v212
      %1298 = vmatprep.subr.mxu0 %v216
      %1299 = vmatpush1.msra.mxu0 %v215
      %1300 = vmatprep.subr.mxu0 %v219
      %1301 = vmatpush1.msra.mxu0 %v218
      %1302 = vmatprep.subr.mxu0 %v222
      %1303 = vmatpush1.msra.mxu0 %v221
      %1304 = vmatprep.subr.mxu0 %v225
      %1305 = vmatpush1.msra.mxu0 %v224
      %1306 = vmatprep.subr.mxu0 %v228
      %1307 = vmatpush1.msra.mxu0 %v227
      %1308 = vmatprep.subr.mxu0 %v231
      %1309 = vmatpush1.msra.mxu0 %v230
      %1310 = vmatprep.subr.mxu0 %v234
      %1311 = vmatpush1.msra.mxu0 %v233
      %1312 = vmatprep.subr.mxu0 %v237
      %1313 = vmatpush1.msra.mxu0 %v236
      %1314 = vmatprep.subr.mxu0 %v240
      %1315 = vmatpush1.msra.mxu0 %v239
      %1316 = vmatprep.subr.mxu0 0.0
      %1317 = vmatpush1.msra.mxu0 0.0
      %1318 = vmatprep.subr.mxu0 0.0
      %1319 = vmatpush1.msra.mxu0 0.0
      %1320 = vmatprep.subr.mxu0 0.0
      %1321 = vmatpush1.msra.mxu0 0.0
      %1322 = vmatprep.subr.mxu0 0.0
      %1323 = vmatpush1.msra.mxu0 0.0
      %1324 = vmatprep.subr.mxu0 0.0
      %1325 = vmatpush1.msra.mxu0 0.0
      %1326 = vmatprep.subr.mxu0 0.0
      %1327 = vmatpush1.msra.mxu0 0.0
      %1328 = vmatprep.subr.mxu0 0.0
      %1329 = vmatpush1.msra.mxu0 0.0
      %1330 = vmatprep.subr.mxu0 0.0
      %1331 = vmatpush1.msra.mxu0 0.0
      %1332 = vmatprep.subr.mxu0 0.0
      %1333 = vmatpush1.msra.mxu0 0.0
      %1334 = vmatprep.subr.mxu0 0.0
      %1335 = vmatpush1.msra.mxu0 0.0
      %1336 = vmatprep.subr.mxu0 0.0
      %1337 = vmatpush1.msra.mxu0 0.0
      %1338 = vmatprep.subr.mxu0 0.0
      %1339 = vmatpush1.msra.mxu0 0.0
      %1340 = vmatprep.subr.mxu0 0.0
      %1341 = vmatpush1.msra.mxu0 0.0
      %1342 = vmatprep.subr.mxu0 0.0
      %1343 = vmatpush1.msra.mxu0 0.0
      %1344 = vmatprep.subr.mxu0 0.0
      %1345 = vmatpush1.msra.mxu0 0.0
      %1346 = vmatprep.subr.mxu0 0.0
      %1347 = vmatpush1.msra.mxu0 0.0
      %1348 = vmatprep.mubr.f32.mxu0 0.0
      %1349 = vmatmul.mubr.f32.gmra.mrb[0].mxu0 %v1283
      %v1350 = vpop.f32.mrb[0].mxu0
      %v1351 = vadd.f32 %v252, %v1350
      %v1352 = vpop.f32.mrb[0].mxu0
      %v1353 = vadd.f32 %v256, %v1352
      %1354 = vdwg.mxu0
      %1355 = vmatprep.subr.mxu0 0.0
      %1356 = vmatpush1.msra.mxu0 %v196
      %1357 = vmatprep.subr.mxu0 0.0
      %1358 = vmatpush1.msra.mxu0 %v199
      %1359 = vmatprep.subr.mxu0 0.0
      %1360 = vmatpush1.msra.mxu0 %v202
      %1361 = vmatprep.subr.mxu0 0.0
      %1362 = vmatpush1.msra.mxu0 %v205
      %1363 = vmatprep.subr.mxu0 0.0
      %1364 = vmatpush1.msra.mxu0 %v208
      %1365 = vmatprep.subr.mxu0 0.0
      %1366 = vmatpush1.msra.mxu0 %v211
      %1367 = vmatprep.subr.mxu0 0.0
      %1368 = vmatpush1.msra.mxu0 %v214
      %1369 = vmatprep.subr.mxu0 0.0
      %1370 = vmatpush1.msra.mxu0 %v217
      %1371 = vmatprep.subr.mxu0 0.0
      %1372 = vmatpush1.msra.mxu0 %v220
      %1373 = vmatprep.subr.mxu0 0.0
      %1374 = vmatpush1.msra.mxu0 %v223
      %1375 = vmatprep.subr.mxu0 0.0
      %1376 = vmatpush1.msra.mxu0 %v226
      %1377 = vmatprep.subr.mxu0 0.0
      %1378 = vmatpush1.msra.mxu0 %v229
      %1379 = vmatprep.subr.mxu0 0.0
      %1380 = vmatpush1.msra.mxu0 %v232
      %1381 = vmatprep.subr.mxu0 0.0
      %1382 = vmatpush1.msra.mxu0 %v235
      %1383 = vmatprep.subr.mxu0 0.0
      %1384 = vmatpush1.msra.mxu0 %v238
      %1385 = vmatprep.subr.mxu0 0.0
      %1386 = vmatpush1.msra.mxu0 %v241
      %1387 = vmatprep.subr.mxu0 0.0
      %1388 = vmatpush1.msra.mxu0 0.0
      %1389 = vmatprep.subr.mxu0 0.0
      %1390 = vmatpush1.msra.mxu0 0.0
      %1391 = vmatprep.subr.mxu0 0.0
      %1392 = vmatpush1.msra.mxu0 0.0
      %1393 = vmatprep.subr.mxu0 0.0
      %1394 = vmatpush1.msra.mxu0 0.0
      %1395 = vmatprep.subr.mxu0 0.0
      %1396 = vmatpush1.msra.mxu0 0.0
      %1397 = vmatprep.subr.mxu0 0.0
      %1398 = vmatpush1.msra.mxu0 0.0
      %1399 = vmatprep.subr.mxu0 0.0
      %1400 = vmatpush1.msra.mxu0 0.0
      %1401 = vmatprep.subr.mxu0 0.0
      %1402 = vmatpush1.msra.mxu0 0.0
      %1403 = vmatprep.subr.mxu0 0.0
      %1404 = vmatpush1.msra.mxu0 0.0
      %1405 = vmatprep.subr.mxu0 0.0
      %1406 = vmatpush1.msra.mxu0 0.0
      %1407 = vmatprep.subr.mxu0 0.0
      %1408 = vmatpush1.msra.mxu0 0.0
      %1409 = vmatprep.subr.mxu0 0.0
      %1410 = vmatpush1.msra.mxu0 0.0
      %1411 = vmatprep.subr.mxu0 0.0
      %1412 = vmatpush1.msra.mxu0 0.0
      %1413 = vmatprep.subr.mxu0 0.0
      %1414 = vmatpush1.msra.mxu0 0.0
      %1415 = vmatprep.subr.mxu0 0.0
      %1416 = vmatpush1.msra.mxu0 0.0
      %1417 = vmatprep.subr.mxu0 0.0
      %1418 = vmatpush1.msra.mxu0 0.0
      %1419 = vmatprep.mubr.f32.mxu0 0.0
      %1420 = vmatmul.mubr.f32.gmra.mrb[0].mxu0 %v1283
      %v1421 = vpop.f32.mrb[0].mxu0
      %v1422 = vadd.f32 %v260, %v1421
      %v1423 = vpop.f32.mrb[0].mxu0
      %1424 = vdwg.mxu0
      %v1425 = vadd.f32 %v1280, %v1351
      %v1426 = vxor.u32 %v1425, 2147483648
      %v1427 = vmul.f32 %v1426, 1.442695
      %v1428 = vpow.pop %v1427
      %v1429 = vadd.f32 %v1428, 1.0
      %v1430 = vrcp.pop %v1429
      %v1431 = vmul.f32 1.0, %v1430
      %v1432 = vadd.f32 %v1281, %v1353
      %v1433 = vxor.u32 %v1432, 2147483648
      %v1434 = vmul.f32 %v1433, 1.442695
      %v1435 = vpow.pop %v1434
      %v1436 = vadd.f32 %v1435, 1.0
      %v1437 = vrcp.pop %v1436
      %v1438 = vmul.f32 1.0, %v1437
      %v1439 = vmul.f32 %v1431, %v1422
      %v1440 = vadd.f32 %v1282, %v1439
      %v1441 = vtanh.pop %v1440
      %v1442 = vsub.f32 1.0, %v1438
      %v1443 = vmul.f32 %v1442, %v1441
      %v1444 = vmul.f32 %v1438, %v1283
      %v1445 = vadd.f32 %v1443, %v1444
      %1446 = vst [vmem:[#allocation2] sm:$0xff] %v1445
      %s1447 = scalar_lea.vmem %s186, 8
      %1448 = vst [vmem:[%s1447] sm:$0xff] %v1445
      %v1449 = vld [vmem:[%s178] sm:$0xff]
      %v1450 = vld [vmem:[%s178 + $0x8] sm:$0xff]
      %v1451 = vld [vmem:[%s178 + $0x10] sm:$0xff]
      %v1452 = vld [vmem:[#allocation2] sm:$0xff]
      %1453 = vmatprep.subr.mxu0 %v195
      %1454 = vmatpush1.msra.mxu0 %v194
      %1455 = vmatprep.subr.mxu0 %v198
      %1456 = vmatpush1.msra.mxu0 %v197
      %1457 = vmatprep.subr.mxu0 %v201
      %1458 = vmatpush1.msra.mxu0 %v200
      %1459 = vmatprep.subr.mxu0 %v204
      %1460 = vmatpush1.msra.mxu0 %v203
      %1461 = vmatprep.subr.mxu0 %v207
      %1462 = vmatpush1.msra.mxu0 %v206
      %1463 = vmatprep.subr.mxu0 %v210
      %1464 = vmatpush1.msra.mxu0 %v209
      %1465 = vmatprep.subr.mxu0 %v213
      %1466 = vmatpush1.msra.mxu0 %v212
      %1467 = vmatprep.subr.mxu0 %v216
      %1468 = vmatpush1.msra.mxu0 %v215
      %1469 = vmatprep.subr.mxu0 %v219
      %1470 = vmatpush1.msra.mxu0 %v218
      %1471 = vmatprep.subr.mxu0 %v222
      %1472 = vmatpush1.msra.mxu0 %v221
      %1473 = vmatprep.subr.mxu0 %v225
      %1474 = vmatpush1.msra.mxu0 %v224
      %1475 = vmatprep.subr.mxu0 %v228
      %1476 = vmatpush1.msra.mxu0 %v227
      %1477 = vmatprep.subr.mxu0 %v231
      %1478 = vmatpush1.msra.mxu0 %v230
      %1479 = vmatprep.subr.mxu0 %v234
      %1480 = vmatpush1.msra.mxu0 %v233
      %1481 = vmatprep.subr.mxu0 %v237
      %1482 = vmatpush1.msra.mxu0 %v236
      %1483 = vmatprep.subr.mxu0 %v240
      %1484 = vmatpush1.msra.mxu0 %v239
      %1485 = vmatprep.subr.mxu0 0.0
      %1486 = vmatpush1.msra.mxu0 0.0
      %1487 = vmatprep.subr.mxu0 0.0
      %1488 = vmatpush1.msra.mxu0 0.0
      %1489 = vmatprep.subr.mxu0 0.0
      %1490 = vmatpush1.msra.mxu0 0.0
      %1491 = vmatprep.subr.mxu0 0.0
      %1492 = vmatpush1.msra.mxu0 0.0
      %1493 = vmatprep.subr.mxu0 0.0
      %1494 = vmatpush1.msra.mxu0 0.0
      %1495 = vmatprep.subr.mxu0 0.0
      %1496 = vmatpush1.msra.mxu0 0.0
      %1497 = vmatprep.subr.mxu0 0.0
      %1498 = vmatpush1.msra.mxu0 0.0
      %1499 = vmatprep.subr.mxu0 0.0
      %1500 = vmatpush1.msra.mxu0 0.0
      %1501 = vmatprep.subr.mxu0 0.0
      %1502 = vmatpush1.msra.mxu0 0.0
      %1503 = vmatprep.subr.mxu0 0.0
      %1504 = vmatpush1.msra.mxu0 0.0
      %1505 = vmatprep.subr.mxu0 0.0
      %1506 = vmatpush1.msra.mxu0 0.0
      %1507 = vmatprep.subr.mxu0 0.0
      %1508 = vmatpush1.msra.mxu0 0.0
      %1509 = vmatprep.subr.mxu0 0.0
      %1510 = vmatpush1.msra.mxu0 0.0
      %1511 = vmatprep.subr.mxu0 0.0
      %1512 = vmatpush1.msra.mxu0 0.0
      %1513 = vmatprep.subr.mxu0 0.0
      %1514 = vmatpush1.msra.mxu0 0.0
      %1515 = vmatprep.subr.mxu0 0.0
      %1516 = vmatpush1.msra.mxu0 0.0
      %1517 = vmatprep.mubr.f32.mxu0 0.0
      %1518 = vmatmul.mubr.f32.gmra.mrb[0].mxu0 %v1452
      %v1519 = vpop.f32.mrb[0].mxu0
      %v1520 = vadd.f32 %v252, %v1519
      %v1521 = vpop.f32.mrb[0].mxu0
      %v1522 = vadd.f32 %v256, %v1521
      %1523 = vdwg.mxu0
      %1524 = vmatprep.subr.mxu0 0.0
      %1525 = vmatpush1.msra.mxu0 %v196
      %1526 = vmatprep.subr.mxu0 0.0
      %1527 = vmatpush1.msra.mxu0 %v199
      %1528 = vmatprep.subr.mxu0 0.0
      %1529 = vmatpush1.msra.mxu0 %v202
      %1530 = vmatprep.subr.mxu0 0.0
      %1531 = vmatpush1.msra.mxu0 %v205
      %1532 = vmatprep.subr.mxu0 0.0
      %1533 = vmatpush1.msra.mxu0 %v208
      %1534 = vmatprep.subr.mxu0 0.0
      %1535 = vmatpush1.msra.mxu0 %v211
      %1536 = vmatprep.subr.mxu0 0.0
      %1537 = vmatpush1.msra.mxu0 %v214
      %1538 = vmatprep.subr.mxu0 0.0
      %1539 = vmatpush1.msra.mxu0 %v217
      %1540 = vmatprep.subr.mxu0 0.0
      %1541 = vmatpush1.msra.mxu0 %v220
      %1542 = vmatprep.subr.mxu0 0.0
      %1543 = vmatpush1.msra.mxu0 %v223
      %1544 = vmatprep.subr.mxu0 0.0
      %1545 = vmatpush1.msra.mxu0 %v226
      %1546 = vmatprep.subr.mxu0 0.0
      %1547 = vmatpush1.msra.mxu0 %v229
      %1548 = vmatprep.subr.mxu0 0.0
      %1549 = vmatpush1.msra.mxu0 %v232
      %1550 = vmatprep.subr.mxu0 0.0
      %1551 = vmatpush1.msra.mxu0 %v235
      %1552 = vmatprep.subr.mxu0 0.0
      %1553 = vmatpush1.msra.mxu0 %v238
      %1554 = vmatprep.subr.mxu0 0.0
      %1555 = vmatpush1.msra.mxu0 %v241
      %1556 = vmatprep.subr.mxu0 0.0
      %1557 = vmatpush1.msra.mxu0 0.0
      %1558 = vmatprep.subr.mxu0 0.0
      %1559 = vmatpush1.msra.mxu0 0.0
      %1560 = vmatprep.subr.mxu0 0.0
      %1561 = vmatpush1.msra.mxu0 0.0
      %1562 = vmatprep.subr.mxu0 0.0
      %1563 = vmatpush1.msra.mxu0 0.0
      %1564 = vmatprep.subr.mxu0 0.0
      %1565 = vmatpush1.msra.mxu0 0.0
      %1566 = vmatprep.subr.mxu0 0.0
      %1567 = vmatpush1.msra.mxu0 0.0
      %1568 = vmatprep.subr.mxu0 0.0
      %1569 = vmatpush1.msra.mxu0 0.0
      %1570 = vmatprep.subr.mxu0 0.0
      %1571 = vmatpush1.msra.mxu0 0.0
      %1572 = vmatprep.subr.mxu0 0.0
      %1573 = vmatpush1.msra.mxu0 0.0
      %1574 = vmatprep.subr.mxu0 0.0
      %1575 = vmatpush1.msra.mxu0 0.0
      %1576 = vmatprep.subr.mxu0 0.0
      %1577 = vmatpush1.msra.mxu0 0.0
      %1578 = vmatprep.subr.mxu0 0.0
      %1579 = vmatpush1.msra.mxu0 0.0
      %1580 = vmatprep.subr.mxu0 0.0
      %1581 = vmatpush1.msra.mxu0 0.0
      %1582 = vmatprep.subr.mxu0 0.0
      %1583 = vmatpush1.msra.mxu0 0.0
      %1584 = vmatprep.subr.mxu0 0.0
      %1585 = vmatpush1.msra.mxu0 0.0
      %1586 = vmatprep.subr.mxu0 0.0
      %1587 = vmatpush1.msra.mxu0 0.0
      %1588 = vmatprep.mubr.f32.mxu0 0.0
      %1589 = vmatmul.mubr.f32.gmra.mrb[0].mxu0 %v1452
      %v1590 = vpop.f32.mrb[0].mxu0
      %v1591 = vadd.f32 %v260, %v1590
      %v1592 = vpop.f32.mrb[0].mxu0
      %1593 = vdwg.mxu0
      %v1594 = vadd.f32 %v1449, %v1520
      %v1595 = vxor.u32 %v1594, 2147483648
      %v1596 = vmul.f32 %v1595, 1.442695
      %v1597 = vpow.pop %v1596
      %v1598 = vadd.f32 %v1597, 1.0
      %v1599 = vrcp.pop %v1598
      %v1600 = vmul.f32 1.0, %v1599
      %v1601 = vadd.f32 %v1450, %v1522
      %v1602 = vxor.u32 %v1601, 2147483648
      %v1603 = vmul.f32 %v1602, 1.442695
      %v1604 = vpow.pop %v1603
      %v1605 = vadd.f32 %v1604, 1.0
      %v1606 = vrcp.pop %v1605
      %v1607 = vmul.f32 1.0, %v1606
      %v1608 = vmul.f32 %v1600, %v1591
      %v1609 = vadd.f32 %v1451, %v1608
      %v1610 = vtanh.pop %v1609
      %v1611 = vsub.f32 1.0, %v1607
      %v1612 = vmul.f32 %v1611, %v1610
      %v1613 = vmul.f32 %v1607, %v1452
      %v1614 = vadd.f32 %v1612, %v1613
      %1615 = vst [vmem:[#allocation2] sm:$0xff] %v1614
      %1616 = vst [vmem:[%s186] sm:$0xff] %v1614
      %s1617 = ssub.s32 1, %s14
      %s1618 = smul.u32 8, %s1617
      %p1619 = scmp.lt.s32.totalorder %s1618, 15
      %s1620 = scalar_select %p1619, %s1618, 15
      %s1621 = smul.addr %s1620, 8
      %s1622 = scalar_lea.vmem %s3, %s1621
      // Predicated region
      $region37: #{bigru_forward.6} parent=31 // pred_check
        %p1623 = pneg %p104
      $region38: #{bigru_forward.6} parent=31 // pred_check_branch
        %1625 = sbr.rel (%p1623) target = $region40
      $region39: #{bigru_forward.6} parent=31 // pred_region
        %s1626 = ssub.s32 1, %s14
        %s1627 = smul.u32 8, %s1626
      $region40: #{bigru_forward.6} parent=31 // pred_fallthru
        _
    $region32: #{bigru_forward.6} parent=5 // pred_fallthru
      _
    %p1628 = scmp.le.s32.totalorder 2, %s9
    // Predicated region
    $region41: #{bigru_forward.6} parent=5 // pred_check
      %p1629 = pneg %p1628
    $region42: #{bigru_forward.6} parent=5 // pred_check_branch
      %1631 = sbr.rel (%p1629) target = $region44
    $region43: #{bigru_forward.6} parent=5 // pred_region
      %s1632 = ssub.s32 %s9, 2
      // Predicated region
      $region45: #{bigru_forward.6} parent=43 // pred_check
        %p1633 = pneg %p110
      $region46: #{bigru_forward.6} parent=43 // pred_check_branch
        %1635 = sbr.rel (%p1633) target = $region48
      $region47: #{bigru_forward.6} parent=43 // pred_region
        %s1636 = ssub.s32 1, %s15
        %s1637 = smul.u32 8, %s1636
        %p1638 = scmp.lt.s32.totalorder %s1637, 15
        %s1639 = scalar_select %p1638, %s1637, 15
        %s1640 = smul.addr %s1639, 8
        %s1641 = scalar_lea.vmem %s3, %s1640
      $region48: #{bigru_forward.6} parent=43 // pred_fallthru
        _
    $region44: #{bigru_forward.6} parent=5 // pred_fallthru
      _
  $region6: #{bigru_forward.6} parent=0 // loop_footer
    %s13 = sadd.s32 1, %s9
  $region7: #{bigru_forward.6} parent=0 // loop_footer_branch
    %8 = sbr.rel target = $region3
  $region8: #{bigru_forward.6} parent=0 // loop_exit
    _

// kernel: bigru_forward.5
$region0: #{bigru_forward.5}
  #allocation0 [shape = 'u32[]', space=smem, size = 0x4, offset = 0x4, fixed_abs, tag = 'smem constant byte address 0x4 - core index']
  #allocation1 [shape = 'u32[144,128]{1,0:T(1,128)}', space=vmem, size = 0x12000, scoped, tag = 'internal scratch']
  #allocation2 [shape = 'f32[8,128]{1,0:T(8,128)}', space=vmem, size = 0x1000, scoped, tag = 'scratch operand']
  %s0 = inlined_call_operand.vmem [shape: f32[16,8,384], index: 0, kind: input, shape index: {}]
  %s1 = inlined_call_operand.vmem [shape: f32[128,384], index: 1, kind: input, shape index: {}]
  %s2 = inlined_call_operand.vmem [shape: f32[1,384], index: 2, kind: input, shape index: {}]
  %s3 = inlined_call_operand.vmem [shape: f32[16,8,128], index: 3, kind: output, shape index: {}]
  %s4 = sld [smem:[#allocation0]]
  $region49: #{bigru_forward.5} parent=0
    _
  %s6 = ssub.s32 1, %s4
  %s7 = scalar_select 0, %s6, %s4
  loop: start=0, step=1, limit=4
  $region2: #{bigru_forward.5} parent=0 // loop_pre_header
    _
  $region3: #{bigru_forward.5} parent=0 // loop_header
    %s9 = sphi 0, %s13
    %p10 = scmp.ge.s32.totalorder %s9, 4
    %s19 = sphi 0, %s21
    %s22 = sphi 0, %s19
    %s23 = sphi 0, %s22
    %s39 = sphi 0, %s23
    %s43 = sphi 0, %s43
    %s45 = sphi 0, %s43
    %s46 = sphi 0, %s45
    %s60 = sphi 0, %s46
    %s64 = sphi 0, %s64
    %s66 = sphi 0, %s64
    %s67 = sphi 0, %s66
    %s81 = sphi 0, %s67
    %s87 = sphi 0, %s89
    %s90 = sphi 0, %s87
    %s91 = sphi 0, %s90
    %s107 = sphi 0, %s91
  $region4: #{bigru_forward.5} parent=0 // loop_header_branch
    %12 = sbr.rel (%p10) target = $region8
  $region5: #{bigru_forward.5} parent=0 // loop_body
    %s14 = ssub.s32 %s9, 1
    %s15 = ssub.s32 %s9, 2
    %s16 = sadd.s32 %s9, 1
    %s17 = ssub.s32 %s9, %s16
    %p18 = scmp.eq.s32.totalorder %s17, 0
    %s20 = sadd.s32 %s19, 1
    %s21 = scalar_select %p18, %s19, %s20
    %p24 = pneg %p18
    %p25 = scmp.eq.s32.totalorder %s9, 1
    %p26 = por %p24, %p25
    %p27 = scmp.ne.s32.totalorder %s19, %s22
    %p28 = scmp.eq.s32.totalorder %s9, 0
    %p29 = por %p27, %p28
    %p30 = scmp.ne.s32.totalorder %s19, %s22
    %p31 = scmp.eq.s32.totalorder %s14, 1
    %p32 = por %p30, %p31
    %p33 = scmp.ne.s32.totalorder %s22, %s23
    %p34 = scmp.eq.s32.totalorder %s14, 0
    %p35 = por %p33, %p34
    %p36 = scmp.ne.s32.totalorder %s22, %s23
    %p37 = scmp.eq.s32.totalorder %s15, 1
    %p38 = por %p36, %p37
    %p40 = scmp.ne.s32.totalorder %s23, %s39
    %p41 = scmp.eq.s32.totalorder %s15, 0
    %p42 = por %p40, %p41
    %s44 = sadd.s32 %s43, 1
    %p47 = scmp.eq.s32.totalorder %s9, 1
    %p48 = scmp.ne.s32.totalorder %s43, %s45
    %p49 = scmp.eq.s32.totalorder %s9, 0
    %p50 = por %p48, %p49
    %p51 = scmp.ne.s32.totalorder %s43, %s45
    %p52 = scmp.eq.s32.totalorder %s14, 1
    %p53 = por %p51, %p52
    %p54 = scmp.ne.s32.totalorder %s45, %s46
    %p55 = scmp.eq.s32.totalorder %s14, 0
    %p56 = por %p54, %p55
    %p57 = scmp.ne.s32.totalorder %s45, %s46
    %p58 = scmp.eq.s32.totalorder %s15, 1
    %p59 = por %p57, %p58
    %p61 = scmp.ne.s32.totalorder %s46, %s60
    %p62 = scmp.eq.s32.totalorder %s15, 0
    %p63 = por %p61, %p62
    %s65 = sadd.s32 %s64, 1
    %p68 = scmp.eq.s32.totalorder %s9, 1
    %p69 = scmp.ne.s32.totalorder %s64, %s66
    %p70 = scmp.eq.s32.totalorder %s9, 0
    %p71 = por %p69, %p70
    %p72 = scmp.ne.s32.totalorder %s64, %s66
    %p73 = scmp.eq.s32.totalorder %s14, 1
    %p74 = por %p72, %p73
    %p75 = scmp.ne.s32.totalorder %s66, %s67
    %p76 = scmp.eq.s32.totalorder %s14, 0
    %p77 = por %p75, %p76
    %p78 = scmp.ne.s32.totalorder %s66, %s67
    %p79 = scmp.eq.s32.totalorder %s15, 1
    %p80 = por %p78, %p79
    %p82 = scmp.ne.s32.totalorder %s67, %s81
    %p83 = scmp.eq.s32.totalorder %s15, 0
    %p84 = por %p82, %p83
    %s85 = ssub.s32 %s9, %s16
    %p86 = scmp.eq.s32.totalorder %s85, 0
    %s88 = sadd.s32 %s87, 1
    %s89 = scalar_select %p86, %s87, %s88
    %p92 = pneg %p86
    %p93 = scmp.eq.s32.totalorder %s9, 1
    %p94 = por %p92, %p93
    %p95 = scmp.ne.s32.totalorder %s87, %s90
    %p96 = scmp.eq.s32.totalorder %s9, 0
    %p97 = por %p95, %p96
    %p98 = scmp.ne.s32.totalorder %s87, %s90
    %p99 = scmp.eq.s32.totalorder %s14, 1
    %p100 = por %p98, %p99
    %p101 = scmp.ne.s32.totalorder %s90, %s91
    %p102 = scmp.eq.s32.totalorder %s14, 0
    %p103 = por %p101, %p102
    %p104 = scmp.ne.s32.totalorder %s90, %s91
    %p105 = scmp.eq.s32.totalorder %s15, 1
    %p106 = por %p104, %p105
    %p108 = scmp.ne.s32.totalorder %s91, %s107
    %p109 = scmp.eq.s32.totalorder %s15, 0
    %p110 = por %p108, %p109
    %p111 = scmp.le.s32.totalorder 1, %s9
    %p112 = scmp.lt.s32.totalorder %s9, 3
    %p113 = pnand %p111, %p112
    %p114 = pneg %p113
    // Predicated region
    $region9: #{bigru_forward.5} parent=5 // pred_check
      _
    $region10: #{bigru_forward.5} parent=5 // pred_check_branch
      %116 = sbr.rel (%p113) target = $region12
    $region11: #{bigru_forward.5} parent=5 // pred_region
      %s117 = ssub.s32 %s9, 1
      // Predicated region
      $region13: #{bigru_forward.5} parent=11 // pred_check
        %p118 = pneg %p56
      $region14: #{bigru_forward.5} parent=11 // pred_check_branch
        %120 = sbr.rel (%p118) target = $region16
      $region15: #{bigru_forward.5} parent=11 // pred_region
        _
      $region16: #{bigru_forward.5} parent=11 // pred_fallthru
        _
      // Predicated region
      $region17: #{bigru_forward.5} parent=11 // pred_check
        %p121 = pneg %p77
      $region18: #{bigru_forward.5} parent=11 // pred_check_branch
        %123 = sbr.rel (%p121) target = $region20
      $region19: #{bigru_forward.5} parent=11 // pred_region
        _
      $region20: #{bigru_forward.5} parent=11 // pred_fallthru
        _
    $region12: #{bigru_forward.5} parent=5 // pred_fallthru
      _
    %p124 = scmp.lt.s32.totalorder %s9, 2
    // Predicated region
    $region21: #{bigru_forward.5} parent=5 // pred_check
      %p125 = pneg %p124
    $region22: #{bigru_forward.5} parent=5 // pred_check_branch
      %127 = sbr.rel (%p125) target = $region24
    $region23: #{bigru_forward.5} parent=5 // pred_region
      // Predicated region
      $region25: #{bigru_forward.5} parent=23 // pred_check
        %p128 = pneg %p29
      $region26: #{bigru_forward.5} parent=23 // pred_check_branch
        %130 = sbr.rel (%p128) target = $region28
      $region27: #{bigru_forward.5} parent=23 // pred_region
        %s131 = smul.u32 8, %s9
        %p132 = scmp.lt.s32.totalorder %s131, 15
        %s133 = scalar_select %p132, %s131, 15
        %s134 = smul.addr %s133, 3
        %s135 = smul.addr %s134, 8
        %s136 = scalar_lea.vmem %s0, %s135
        %s137 = smul.u32 8, %s9
      $region28: #{bigru_forward.5} parent=23 // pred_fallthru
        _
    $region24: #{bigru_forward.5} parent=5 // pred_fallthru
      _
    %p138 = scmp.le.s32.totalorder 1, %s9
    %p139 = scmp.lt.s32.totalorder %s9, 3
    %p140 = pnand %p138, %p139
    %p141 = pneg %p140
    // Predicated region
    $region29: #{bigru_forward.5} parent=5 // pred_check
      _
    $region30: #{bigru_forward.5} parent=5 // pred_check_branch
      %143 = sbr.rel (%p140) target = $region32
    $region31: #{bigru_forward.5} parent=5 // pred_region
      %s144 = ssub.s32 %s9, 1
      %s145 = smul.u32 8, %s14
      %p146 = scmp.lt.s32.totalorder %s145, 15
      %s147 = scalar_select %p146, %s145, 15
      %s148 = smul.addr %s147, 3
      %s149 = smul.addr %s148, 8
      %s150 = scalar_lea.vmem %s0, %s149
      %p151 = pneg %p35
      %p152 = pneg %p32
      %p153 = pneg %p56
      %p154 = pneg %p53
      %p155 = pneg %p77
      %p156 = pneg %p74
      %p157 = pneg %p103
      %p158 = pneg %p100
      %s159 = smul.u32 8, %s14
      %p160 = scmp.lt.s32.totalorder %s159, 15
      %s161 = scalar_select %p160, %s159, 15
      %s162 = smul.addr %s161, 8
      %s163 = scalar_lea.vmem %s3, %s162
      %s164 = smul.u32 8, %s14
      %p165 = scmp.lt.s32.totalorder %s164, 15
      %s166 = scalar_select %p165, %s164, 15
      %s167 = smul.addr %s166, 3
      %s168 = smul.addr %s167, 8
      %s169 = scalar_lea.vmem %s0, %s168
      %s170 = smul.u32 8, %s14
      %s171 = smul.u32 8, %s14
      %p172 = scmp.lt.s32.totalorder %s171, 15
      %s173 = scalar_select %p172, %s171, 15
      %s174 = smul.addr %s173, 8
      %s175 = scalar_lea.vmem %s3, %s174
      %s176 = smul.u32 8, %s14
      %p177 = scmp.eq.s32.totalorder %s14, 0
      // Predicated region
      $region33: #{bigru_forward.5} parent=31 // pred_check
        %p178 = pneg %p177
      $region34: #{bigru_forward.5} parent=31 // pred_check_branch
        %180 = sbr.rel (%p178) target = $region36
      $region35: #{bigru_forward.5} parent=31 // pred_region
        %181 = vst [vmem:[#allocation2] sm:$0xff] 0.0
      $region36: #{bigru_forward.5} parent=31 // pred_fallthru
        _
      %v182 = vld [vmem:[%s1] sm:$0xff]
      %v183 = vld [vmem:[%s1 + $0x8] sm:$0xff]
      %v184 = vld [vmem:[%s1 + $0x10] sm:$0xff]
      %v185 = vld [vmem:[%s1 + $0x18] sm:$0xff]
      %v186 = vld [vmem:[%s1 + $0x20] sm:$0xff]
      %v187 = vld [vmem:[%s1 + $0x28] sm:$0xff]
      %v188 = vld [vmem:[%s1 + $0x30] sm:$0xff]
      %v189 = vld [vmem:[%s1 + $0x38] sm:$0xff]
      %v190 = vld [vmem:[%s1 + $0x40] sm:$0xff]
      %v191 = vld [vmem:[%s1 + $0x48] sm:$0xff]
      %v192 = vld [vmem:[%s1 + $0x50] sm:$0xff]
      %v193 = vld [vmem:[%s1 + $0x58] sm:$0xff]
      %v194 = vld [vmem:[%s1 + $0x60] sm:$0xff]
      %v195 = vld [vmem:[%s1 + $0x68] sm:$0xff]
      %v196 = vld [vmem:[%s1 + $0x70] sm:$0xff]
      %v197 = vld [vmem:[%s1 + $0x78] sm:$0xff]
      %v198 = vld [vmem:[%s1 + $0x80] sm:$0xff]
      %v199 = vld [vmem:[%s1 + $0x88] sm:$0xff]
      %v200 = vld [vmem:[%s1 + $0x90] sm:$0xff]
      %v201 = vld [vmem:[%s1 + $0x98] sm:$0xff]
      %v202 = vld [vmem:[%s1 + $0xa0] sm:$0xff]
      %v203 = vld [vmem:[%s1 + $0xa8] sm:$0xff]
      %v204 = vld [vmem:[%s1 + $0xb0] sm:$0xff]
      %v205 = vld [vmem:[%s1 + $0xb8] sm:$0xff]
      %v206 = vld [vmem:[%s1 + $0xc0] sm:$0xff]
      %v207 = vld [vmem:[%s1 + $0xc8] sm:$0xff]
      %v208 = vld [vmem:[%s1 + $0xd0] sm:$0xff]
      %v209 = vld [vmem:[%s1 + $0xd8] sm:$0xff]
      %v210 = vld [vmem:[%s1 + $0xe0] sm:$0xff]
      %v211 = vld [vmem:[%s1 + $0xe8] sm:$0xff]
      %v212 = vld [vmem:[%s1 + $0xf0] sm:$0xff]
      %v213 = vld [vmem:[%s1 + $0xf8] sm:$0xff]
      %v214 = vld [vmem:[%s1 + $0x100] sm:$0xff]
      %v215 = vld [vmem:[%s1 + $0x108] sm:$0xff]
      %v216 = vld [vmem:[%s1 + $0x110] sm:$0xff]
      %v217 = vld [vmem:[%s1 + $0x118] sm:$0xff]
      %v218 = vld [vmem:[%s1 + $0x120] sm:$0xff]
      %v219 = vld [vmem:[%s1 + $0x128] sm:$0xff]
      %v220 = vld [vmem:[%s1 + $0x130] sm:$0xff]
      %v221 = vld [vmem:[%s1 + $0x138] sm:$0xff]
      %v222 = vld [vmem:[%s1 + $0x140] sm:$0xff]
      %v223 = vld [vmem:[%s1 + $0x148] sm:$0xff]
      %v224 = vld [vmem:[%s1 + $0x150] sm:$0xff]
      %v225 = vld [vmem:[%s1 + $0x158] sm:$0xff]
      %v226 = vld [vmem:[%s1 + $0x160] sm:$0xff]
      %v227 = vld [vmem:[%s1 + $0x168] sm:$0xff]
      %v228 = vld [vmem:[%s1 + $0x170] sm:$0xff]
      %v229 = vld [vmem:[%s1 + $0x178] sm:$0xff]
      %v230 = vld [vmem:[%s2] sm:$0x7]
      %v231 = vld [vmem:[%s169] sm:$0xff]
      %v232 = vld [vmem:[%s169 + $0x8] sm:$0xff]
      %v233 = vld [vmem:[%s169 + $0x10] sm:$0xff]
      %v234 = vld [vmem:[#allocation2] sm:$0xff]
      %v236 = vlaneseq
      %v237 = vshrl.u32 %v236, 7
      %v238 = vsub.s32 0, %v237
      %v239 = vrot.slane %v230, %v238
      %v240 = vlaneseq
      %v241 = vshrl.u32 %v240, 7
      %v242 = vsub.s32 1, %v241
      %v243 = vrot.slane %v230, %v242
      %v244 = vlaneseq
      %v245 = vshrl.u32 %v244, 7
      %v246 = vsub.s32 2, %v245
      %v247 = vrot.slane %v230, %v246
      %251 = vmatprep.subr.mxu0 %v183
      %252 = vmatpush1.msra.mxu0 %v182
      %253 = vmatprep.subr.mxu0 %v186
      %254 = vmatpush1.msra.mxu0 %v185
      %255 = vmatprep.subr.mxu0 %v189
      %256 = vmatpush1.msra.mxu0 %v188
      %257 = vmatprep.subr.mxu0 %v192
      %258 = vmatpush1.msra.mxu0 %v191
      %259 = vmatprep.subr.mxu0 %v195
      %260 = vmatpush1.msra.mxu0 %v194
      %261 = vmatprep.subr.mxu0 %v198
      %262 = vmatpush1.msra.mxu0 %v197
      %263 = vmatprep.subr.mxu0 %v201
      %264 = vmatpush1.msra.mxu0 %v200
      %265 = vmatprep.subr.mxu0 %v204
      %266 = vmatpush1.msra.mxu0 %v203
      %267 = vmatprep.subr.mxu0 %v207
      %268 = vmatpush1.msra.mxu0 %v206
      %269 = vmatprep.subr.mxu0 %v210
      %270 = vmatpush1.msra.mxu0 %v209
      %271 = vmatprep.subr.mxu0 %v213
      %272 = vmatpush1.msra.mxu0 %v212
      %273 = vmatprep.subr.mxu0 %v216
      %274 = vmatpush1.msra.mxu0 %v215
      %275 = vmatprep.subr.mxu0 %v219
      %276 = vmatpush1.msra.mxu0 %v218
      %277 = vmatprep.subr.mxu0 %v222
      %278 = vmatpush1.msra.mxu0 %v221
      %279 = vmatprep.subr.mxu0 %v225
      %280 = vmatpush1.msra.mxu0 %v224
      %281 = vmatprep.subr.mxu0 %v228
      %282 = vmatpush1.msra.mxu0 %v227
      %283 = vmatprep.subr.mxu0 0.0
      %284 = vmatpush1.msra.mxu0 0.0
      %285 = vmatprep.subr.mxu0 0.0
      %286 = vmatpush1.msra.mxu0 0.0
      %287 = vmatprep.subr.mxu0 0.0
      %288 = vmatpush1.msra.mxu0 0.0
      %289 = vmatprep.subr.mxu0 0.0
      %290 = vmatpush1.msra.mxu0 0.0
      %291 = vmatprep.subr.mxu0 0.0
      %292 = vmatpush1.msra.mxu0 0.0
      %293 = vmatprep.subr.mxu0 0.0
      %294 = vmatpush1.msra.mxu0 0.0
      %295 = vmatprep.subr.mxu0 0.0
      %296 = vmatpush1.msra.mxu0 0.0
      %297 = vmatprep.subr.mxu0 0.0
      %298 = vmatpush1.msra.mxu0 0.0
      %299 = vmatprep.subr.mxu0 0.0
      %300 = vmatpush1.msra.mxu0 0.0
      %301 = vmatprep.subr.mxu0 0.0
      %302 = vmatpush1.msra.mxu0 0.0
      %303 = vmatprep.subr.mxu0 0.0
      %304 = vmatpush1.msra.mxu0 0.0
      %305 = vmatprep.subr.mxu0 0.0
      %306 = vmatpush1.msra.mxu0 0.0
      %307 = vmatprep.subr.mxu0 0.0
      %308 = vmatpush1.msra.mxu0 0.0
      %309 = vmatprep.subr.mxu0 0.0
      %310 = vmatpush1.msra.mxu0 0.0
      %311 = vmatprep.subr.mxu0 0.0
      %312 = vmatpush1.msra.mxu0 0.0
      %313 = vmatprep.subr.mxu0 0.0
      %314 = vmatpush1.msra.mxu0 0.0
      %315 = vmatprep.mubr.f32.mxu0 0.0
      %316 = vmatmul.mubr.f32.gmra.mrb[0].mxu0 %v234
      %v317 = vpop.f32.mrb[0].mxu0
      %v318 = vadd.f32 %v239, %v317
      %v319 = vpop.f32.mrb[0].mxu0
      %v320 = vadd.f32 %v243, %v319
      %321 = vdwg.mxu0
      %322 = vmatprep.subr.mxu0 0.0
      %323 = vmatpush1.msra.mxu0 %v184
      %324 = vmatprep.subr.mxu0 0.0
      %325 = vmatpush1.msra.mxu0 %v187
      %326 = vmatprep.subr.mxu0 0.0
      %327 = vmatpush1.msra.mxu0 %v190
      %328 = vmatprep.subr.mxu0 0.0
      %329 = vmatpush1.msra.mxu0 %v193
      %330 = vmatprep.subr.mxu0 0.0
      %331 = vmatpush1.msra.mxu0 %v196
      %332 = vmatprep.subr.mxu0 0.0
      %333 = vmatpush1.msra.mxu0 %v199
      %334 = vmatprep.subr.mxu0 0.0
      %335 = vmatpush1.msra.mxu0 %v202
      %336 = vmatprep.subr.mxu0 0.0
      %337 = vmatpush1.msra.mxu0 %v205
      %338 = vmatprep.subr.mxu0 0.0
      %339 = vmatpush1.msra.mxu0 %v208
      %340 = vmatprep.subr.mxu0 0.0
      %341 = vmatpush1.msra.mxu0 %v211
      %342 = vmatprep.subr.mxu0 0.0
      %343 = vmatpush1.msra.mxu0 %v214
      %344 = vmatprep.subr.mxu0 0.0
      %345 = vmatpush1.msra.mxu0 %v217
      %346 = vmatprep.subr.mxu0 0.0
      %347 = vmatpush1.msra.mxu0 %v220
      %348 = vmatprep.subr.mxu0 0.0
      %349 = vmatpush1.msra.mxu0 %v223
      %350 = vmatprep.subr.mxu0 0.0
      %351 = vmatpush1.msra.mxu0 %v226
      %352 = vmatprep.subr.mxu0 0.0
      %353 = vmatpush1.msra.mxu0 %v229
      %354 = vmatprep.subr.mxu0 0.0
      %355 = vmatpush1.msra.mxu0 0.0
      %356 = vmatprep.subr.mxu0 0.0
      %357 = vmatpush1.msra.mxu0 0.0
      %358 = vmatprep.subr.mxu0 0.0
      %359 = vmatpush1.msra.mxu0 0.0
      %360 = vmatprep.subr.mxu0 0.0
      %361 = vmatpush1.msra.mxu0 0.0
      %362 = vmatprep.subr.mxu0 0.0
      %363 = vmatpush1.msra.mxu0 0.0
      %364 = vmatprep.subr.mxu0 0.0
      %365 = vmatpush1.msra.mxu0 0.0
      %366 = vmatprep.subr.mxu0 0.0
      %367 = vmatpush1.msra.mxu0 0.0
      %368 = vmatprep.subr.mxu0 0.0
      %369 = vmatpush1.msra.mxu0 0.0
      %370 = vmatprep.subr.mxu0 0.0
      %371 = vmatpush1.msra.mxu0 0.0
      %372 = vmatprep.subr.mxu0 0.0
      %373 = vmatpush1.msra.mxu0 0.0
      %374 = vmatprep.subr.mxu0 0.0
      %375 = vmatpush1.msra.mxu0 0.0
      %376 = vmatprep.subr.mxu0 0.0
      %377 = vmatpush1.msra.mxu0 0.0
      %378 = vmatprep.subr.mxu0 0.0
      %379 = vmatpush1.msra.mxu0 0.0
      %380 = vmatprep.subr.mxu0 0.0
      %381 = vmatpush1.msra.mxu0 0.0
      %382 = vmatprep.subr.mxu0 0.0
      %383 = vmatpush1.msra.mxu0 0.0
      %384 = vmatprep.subr.mxu0 0.0
      %385 = vmatpush1.msra.mxu0 0.0
      %386 = vmatprep.mubr.f32.mxu0 0.0
      %387 = vmatmul.mubr.f32.gmra.mrb[0].mxu0 %v234
      %v388 = vpop.f32.mrb[0].mxu0
      %v389 = vadd.f32 %v247, %v388
      %v390 = vpop.f32.mrb[0].mxu0
      %391 = vdwg.mxu0
      %v392 = vadd.f32 %v231, %v318
      %v393 = vxor.u32 %v392, 2147483648
      %v394 = vmul.f32 %v393, 1.442695
      %v395 = vpow.pop %v394
      %v396 = vadd.f32 %v395, 1.0
      %v397 = vrcp.pop %v396
      %v398 = vmul.f32 1.0, %v397
      %v399 = vadd.f32 %v232, %v320
      %v400 = vxor.u32 %v399, 2147483648
      %v401 = vmul.f32 %v400, 1.442695
      %v402 = vpow.pop %v401
      %v403 = vadd.f32 %v402, 1.0
      %v404 = vrcp.pop %v403
      %v405 = vmul.f32 1.0, %v404
      %v406 = vmul.f32 %v398, %v389
      %v407 = vadd.f32 %v233, %v406
      %v408 = vtanh.pop %v407
      %v409 = vsub.f32 1.0, %v405
      %v410 = vmul.f32 %v409, %v408
      %v411 = vmul.f32 %v405, %v234
      %v412 = vadd.f32 %v410, %v411
      %413 = vst [vmem:[#allocation2] sm:$0xff] %v412
      %414 = vst [vmem:[%s175] sm:$0xff] %v412
      %s415 = scalar_lea.vmem %s169, 24
      %v416 = vld [vmem:[%s415] sm:$0xff]
      %v417 = vld [vmem:[%s415 + $0x8] sm:$0xff]
      %v418 = vld [vmem:[%s415 + $0x10] sm:$0xff]
      %v419 = vld [vmem:[#allocation2] sm:$0xff]
      %420 = vmatprep.subr.mxu0 %v183
      %421 = vmatpush1.msra.mxu0 %v182
      %422 = vmatprep.subr.mxu0 %v186
      %423 = vmatpush1.msra.mxu0 %v185
      %424 = vmatprep.subr.mxu0 %v189
      %425 = vmatpush1.msra.mxu0 %v188
      %426 = vmatprep.subr.mxu0 %v192
      %427 = vmatpush1.msra.mxu0 %v191
      %428 = vmatprep.subr.mxu0 %v195
      %429 = vmatpush1.msra.mxu0 %v194
      %430 = vmatprep.subr.mxu0 %v198
      %431 = vmatpush1.msra.mxu0 %v197
      %432 = vmatprep.subr.mxu0 %v201
      %433 = vmatpush1.msra.mxu0 %v200
      %434 = vmatprep.subr.mxu0 %v204
      %435 = vmatpush1.msra.mxu0 %v203
      %436 = vmatprep.subr.mxu0 %v207
      %437 = vmatpush1.msra.mxu0 %v206
      %438 = vmatprep.subr.mxu0 %v210
      %439 = vmatpush1.msra.mxu0 %v209
      %440 = vmatprep.subr.mxu0 %v213
      %441 = vmatpush1.msra.mxu0 %v212
      %442 = vmatprep.subr.mxu0 %v216
      %443 = vmatpush1.msra.mxu0 %v215
      %444 = vmatprep.subr.mxu0 %v219
      %445 = vmatpush1.msra.mxu0 %v218
      %446 = vmatprep.subr.mxu0 %v222
      %447 = vmatpush1.msra.mxu0 %v221
      %448 = vmatprep.subr.mxu0 %v225
      %449 = vmatpush1.msra.mxu0 %v224
      %450 = vmatprep.subr.mxu0 %v228
      %451 = vmatpush1.msra.mxu0 %v227
      %452 = vmatprep.subr.mxu0 0.0
      %453 = vmatpush1.msra.mxu0 0.0
      %454 = vmatprep.subr.mxu0 0.0
      %455 = vmatpush1.msra.mxu0 0.0
      %456 = vmatprep.subr.mxu0 0.0
      %457 = vmatpush1.msra.mxu0 0.0
      %458 = vmatprep.subr.mxu0 0.0
      %459 = vmatpush1.msra.mxu0 0.0
      %460 = vmatprep.subr.mxu0 0.0
      %461 = vmatpush1.msra.mxu0 0.0
      %462 = vmatprep.subr.mxu0 0.0
      %463 = vmatpush1.msra.mxu0 0.0
      %464 = vmatprep.subr.mxu0 0.0
      %465 = vmatpush1.msra.mxu0 0.0
      %466 = vmatprep.subr.mxu0 0.0
      %467 = vmatpush1.msra.mxu0 0.0
      %468 = vmatprep.subr.mxu0 0.0
      %469 = vmatpush1.msra.mxu0 0.0
      %470 = vmatprep.subr.mxu0 0.0
      %471 = vmatpush1.msra.mxu0 0.0
      %472 = vmatprep.subr.mxu0 0.0
      %473 = vmatpush1.msra.mxu0 0.0
      %474 = vmatprep.subr.mxu0 0.0
      %475 = vmatpush1.msra.mxu0 0.0
      %476 = vmatprep.subr.mxu0 0.0
      %477 = vmatpush1.msra.mxu0 0.0
      %478 = vmatprep.subr.mxu0 0.0
      %479 = vmatpush1.msra.mxu0 0.0
      %480 = vmatprep.subr.mxu0 0.0
      %481 = vmatpush1.msra.mxu0 0.0
      %482 = vmatprep.subr.mxu0 0.0
      %483 = vmatpush1.msra.mxu0 0.0
      %484 = vmatprep.mubr.f32.mxu0 0.0
      %485 = vmatmul.mubr.f32.gmra.mrb[0].mxu0 %v419
      %v486 = vpop.f32.mrb[0].mxu0
      %v487 = vadd.f32 %v239, %v486
      %v488 = vpop.f32.mrb[0].mxu0
      %v489 = vadd.f32 %v243, %v488
      %490 = vdwg.mxu0
      %491 = vmatprep.subr.mxu0 0.0
      %492 = vmatpush1.msra.mxu0 %v184
      %493 = vmatprep.subr.mxu0 0.0
      %494 = vmatpush1.msra.mxu0 %v187
      %495 = vmatprep.subr.mxu0 0.0
      %496 = vmatpush1.msra.mxu0 %v190
      %497 = vmatprep.subr.mxu0 0.0
      %498 = vmatpush1.msra.mxu0 %v193
      %499 = vmatprep.subr.mxu0 0.0
      %500 = vmatpush1.msra.mxu0 %v196
      %501 = vmatprep.subr.mxu0 0.0
      %502 = vmatpush1.msra.mxu0 %v199
      %503 = vmatprep.subr.mxu0 0.0
      %504 = vmatpush1.msra.mxu0 %v202
      %505 = vmatprep.subr.mxu0 0.0
      %506 = vmatpush1.msra.mxu0 %v205
      %507 = vmatprep.subr.mxu0 0.0
      %508 = vmatpush1.msra.mxu0 %v208
      %509 = vmatprep.subr.mxu0 0.0
      %510 = vmatpush1.msra.mxu0 %v211
      %511 = vmatprep.subr.mxu0 0.0
      %512 = vmatpush1.msra.mxu0 %v214
      %513 = vmatprep.subr.mxu0 0.0
      %514 = vmatpush1.msra.mxu0 %v217
      %515 = vmatprep.subr.mxu0 0.0
      %516 = vmatpush1.msra.mxu0 %v220
      %517 = vmatprep.subr.mxu0 0.0
      %518 = vmatpush1.msra.mxu0 %v223
      %519 = vmatprep.subr.mxu0 0.0
      %520 = vmatpush1.msra.mxu0 %v226
      %521 = vmatprep.subr.mxu0 0.0
      %522 = vmatpush1.msra.mxu0 %v229
      %523 = vmatprep.subr.mxu0 0.0
      %524 = vmatpush1.msra.mxu0 0.0
      %525 = vmatprep.subr.mxu0 0.0
      %526 = vmatpush1.msra.mxu0 0.0
      %527 = vmatprep.subr.mxu0 0.0
      %528 = vmatpush1.msra.mxu0 0.0
      %529 = vmatprep.subr.mxu0 0.0
      %530 = vmatpush1.msra.mxu0 0.0
      %531 = vmatprep.subr.mxu0 0.0
      %532 = vmatpush1.msra.mxu0 0.0
      %533 = vmatprep.subr.mxu0 0.0
      %534 = vmatpush1.msra.mxu0 0.0
      %535 = vmatprep.subr.mxu0 0.0
      %536 = vmatpush1.msra.mxu0 0.0
      %537 = vmatprep.subr.mxu0 0.0
      %538 = vmatpush1.msra.mxu0 0.0
      %539 = vmatprep.subr.mxu0 0.0
      %540 = vmatpush1.msra.mxu0 0.0
      %541 = vmatprep.subr.mxu0 0.0
      %542 = vmatpush1.msra.mxu0 0.0
      %543 = vmatprep.subr.mxu0 0.0
      %544 = vmatpush1.msra.mxu0 0.0
      %545 = vmatprep.subr.mxu0 0.0
      %546 = vmatpush1.msra.mxu0 0.0
      %547 = vmatprep.subr.mxu0 0.0
      %548 = vmatpush1.msra.mxu0 0.0
      %549 = vmatprep.subr.mxu0 0.0
      %550 = vmatpush1.msra.mxu0 0.0
      %551 = vmatprep.subr.mxu0 0.0
      %552 = vmatpush1.msra.mxu0 0.0
      %553 = vmatprep.subr.mxu0 0.0
      %554 = vmatpush1.msra.mxu0 0.0
      %555 = vmatprep.mubr.f32.mxu0 0.0
      %556 = vmatmul.mubr.f32.gmra.mrb[0].mxu0 %v419
      %v557 = vpop.f32.mrb[0].mxu0
      %v558 = vadd.f32 %v247, %v557
      %v559 = vpop.f32.mrb[0].mxu0
      %560 = vdwg.mxu0
      %v561 = vadd.f32 %v416, %v487
      %v562 = vxor.u32 %v561, 2147483648
      %v563 = vmul.f32 %v562, 1.442695
      %v564 = vpow.pop %v563
      %v565 = vadd.f32 %v564, 1.0
      %v566 = vrcp.pop %v565
      %v567 = vmul.f32 1.0, %v566
      %v568 = vadd.f32 %v417, %v489
      %v569 = vxor.u32 %v568, 2147483648
      %v570 = vmul.f32 %v569, 1.442695
      %v571 = vpow.pop %v570
      %v572 = vadd.f32 %v571, 1.0
      %v573 = vrcp.pop %v572
      %v574 = vmul.f32 1.0, %v573
      %v575 = vmul.f32 %v567, %v558
      %v576 = vadd.f32 %v418, %v575
      %v577 = vtanh.pop %v576
      %v578 = vsub.f32 1.0, %v574
      %v579 = vmul.f32 %v578, %v577
      %v580 = vmul.f32 %v574, %v419
      %v581 = vadd.f32 %v579, %v580
      %582 = vst [vmem:[#allocation2] sm:$0xff] %v581
      %s583 = scalar_lea.vmem %s175, 8
      %584 = vst [vmem:[%s583] sm:$0xff] %v581
      %s585 = scalar_lea.vmem %s169, 48
      %v586 = vld [vmem:[%s585] sm:$0xff]
      %v587 = vld [vmem:[%s585 + $0x8] sm:$0xff]
      %v588 = vld [vmem:[%s585 + $0x10] sm:$0xff]
      %v589 = vld [vmem:[#allocation2] sm:$0xff]
      %590 = vmatprep.subr.mxu0 %v183
      %591 = vmatpush1.msra.mxu0 %v182
      %592 = vmatprep.subr.mxu0 %v186
      %593 = vmatpush1.msra.mxu0 %v185
      %594 = vmatprep.subr.mxu0 %v189
      %595 = vmatpush1.msra.mxu0 %v188
      %596 = vmatprep.subr.mxu0 %v192
      %597 = vmatpush1.msra.mxu0 %v191
      %598 = vmatprep.subr.mxu0 %v195
      %599 = vmatpush1.msra.mxu0 %v194
      %600 = vmatprep.subr.mxu0 %v198
      %601 = vmatpush1.msra.mxu0 %v197
      %602 = vmatprep.subr.mxu0 %v201
      %603 = vmatpush1.msra.mxu0 %v200
      %604 = vmatprep.subr.mxu0 %v204
      %605 = vmatpush1.msra.mxu0 %v203
      %606 = vmatprep.subr.mxu0 %v207
      %607 = vmatpush1.msra.mxu0 %v206
      %608 = vmatprep.subr.mxu0 %v210
      %609 = vmatpush1.msra.mxu0 %v209
      %610 = vmatprep.subr.mxu0 %v213
      %611 = vmatpush1.msra.mxu0 %v212
      %612 = vmatprep.subr.mxu0 %v216
      %613 = vmatpush1.msra.mxu0 %v215
      %614 = vmatprep.subr.mxu0 %v219
      %615 = vmatpush1.msra.mxu0 %v218
      %616 = vmatprep.subr.mxu0 %v222
      %617 = vmatpush1.msra.mxu0 %v221
      %618 = vmatprep.subr.mxu0 %v225
      %619 = vmatpush1.msra.mxu0 %v224
      %620 = vmatprep.subr.mxu0 %v228
      %621 = vmatpush1.msra.mxu0 %v227
      %622 = vmatprep.subr.mxu0 0.0
      %623 = vmatpush1.msra.mxu0 0.0
      %624 = vmatprep.subr.mxu0 0.0
      %625 = vmatpush1.msra.mxu0 0.0
      %626 = vmatprep.subr.mxu0 0.0
      %627 = vmatpush1.msra.mxu0 0.0
      %628 = vmatprep.subr.mxu0 0.0
      %629 = vmatpush1.msra.mxu0 0.0
      %630 = vmatprep.subr.mxu0 0.0
      %631 = vmatpush1.msra.mxu0 0.0
      %632 = vmatprep.subr.mxu0 0.0
      %633 = vmatpush1.msra.mxu0 0.0
      %634 = vmatprep.subr.mxu0 0.0
      %635 = vmatpush1.msra.mxu0 0.0
      %636 = vmatprep.subr.mxu0 0.0
      %637 = vmatpush1.msra.mxu0 0.0
      %638 = vmatprep.subr.mxu0 0.0
      %639 = vmatpush1.msra.mxu0 0.0
      %640 = vmatprep.subr.mxu0 0.0
      %641 = vmatpush1.msra.mxu0 0.0
      %642 = vmatprep.subr.mxu0 0.0
      %643 = vmatpush1.msra.mxu0 0.0
      %644 = vmatprep.subr.mxu0 0.0
      %645 = vmatpush1.msra.mxu0 0.0
      %646 = vmatprep.subr.mxu0 0.0
      %647 = vmatpush1.msra.mxu0 0.0
      %648 = vmatprep.subr.mxu0 0.0
      %649 = vmatpush1.msra.mxu0 0.0
      %650 = vmatprep.subr.mxu0 0.0
      %651 = vmatpush1.msra.mxu0 0.0
      %652 = vmatprep.subr.mxu0 0.0
      %653 = vmatpush1.msra.mxu0 0.0
      %654 = vmatprep.mubr.f32.mxu0 0.0
      %655 = vmatmul.mubr.f32.gmra.mrb[0].mxu0 %v589
      %v656 = vpop.f32.mrb[0].mxu0
      %v657 = vadd.f32 %v239, %v656
      %v658 = vpop.f32.mrb[0].mxu0
      %v659 = vadd.f32 %v243, %v658
      %660 = vdwg.mxu0
      %661 = vmatprep.subr.mxu0 0.0
      %662 = vmatpush1.msra.mxu0 %v184
      %663 = vmatprep.subr.mxu0 0.0
      %664 = vmatpush1.msra.mxu0 %v187
      %665 = vmatprep.subr.mxu0 0.0
      %666 = vmatpush1.msra.mxu0 %v190
      %667 = vmatprep.subr.mxu0 0.0
      %668 = vmatpush1.msra.mxu0 %v193
      %669 = vmatprep.subr.mxu0 0.0
      %670 = vmatpush1.msra.mxu0 %v196
      %671 = vmatprep.subr.mxu0 0.0
      %672 = vmatpush1.msra.mxu0 %v199
      %673 = vmatprep.subr.mxu0 0.0
      %674 = vmatpush1.msra.mxu0 %v202
      %675 = vmatprep.subr.mxu0 0.0
      %676 = vmatpush1.msra.mxu0 %v205
      %677 = vmatprep.subr.mxu0 0.0
      %678 = vmatpush1.msra.mxu0 %v208
      %679 = vmatprep.subr.mxu0 0.0
      %680 = vmatpush1.msra.mxu0 %v211
      %681 = vmatprep.subr.mxu0 0.0
      %682 = vmatpush1.msra.mxu0 %v214
      %683 = vmatprep.subr.mxu0 0.0
      %684 = vmatpush1.msra.mxu0 %v217
      %685 = vmatprep.subr.mxu0 0.0
      %686 = vmatpush1.msra.mxu0 %v220
      %687 = vmatprep.subr.mxu0 0.0
      %688 = vmatpush1.msra.mxu0 %v223
      %689 = vmatprep.subr.mxu0 0.0
      %690 = vmatpush1.msra.mxu0 %v226
      %691 = vmatprep.subr.mxu0 0.0
      %692 = vmatpush1.msra.mxu0 %v229
      %693 = vmatprep.subr.mxu0 0.0
      %694 = vmatpush1.msra.mxu0 0.0
      %695 = vmatprep.subr.mxu0 0.0
      %696 = vmatpush1.msra.mxu0 0.0
      %697 = vmatprep.subr.mxu0 0.0
      %698 = vmatpush1.msra.mxu0 0.0
      %699 = vmatprep.subr.mxu0 0.0
      %700 = vmatpush1.msra.mxu0 0.0
      %701 = vmatprep.subr.mxu0 0.0
      %702 = vmatpush1.msra.mxu0 0.0
      %703 = vmatprep.subr.mxu0 0.0
      %704 = vmatpush1.msra.mxu0 0.0
      %705 = vmatprep.subr.mxu0 0.0
      %706 = vmatpush1.msra.mxu0 0.0
      %707 = vmatprep.subr.mxu0 0.0
      %708 = vmatpush1.msra.mxu0 0.0
      %709 = vmatprep.subr.mxu0 0.0
      %710 = vmatpush1.msra.mxu0 0.0
      %711 = vmatprep.subr.mxu0 0.0
      %712 = vmatpush1.msra.mxu0 0.0
      %713 = vmatprep.subr.mxu0 0.0
      %714 = vmatpush1.msra.mxu0 0.0
      %715 = vmatprep.subr.mxu0 0.0
      %716 = vmatpush1.msra.mxu0 0.0
      %717 = vmatprep.subr.mxu0 0.0
      %718 = vmatpush1.msra.mxu0 0.0
      %719 = vmatprep.subr.mxu0 0.0
      %720 = vmatpush1.msra.mxu0 0.0
      %721 = vmatprep.subr.mxu0 0.0
      %722 = vmatpush1.msra.mxu0 0.0
      %723 = vmatprep.subr.mxu0 0.0
      %724 = vmatpush1.msra.mxu0 0.0
      %725 = vmatprep.mubr.f32.mxu0 0.0
      %726 = vmatmul.mubr.f32.gmra.mrb[0].mxu0 %v589
      %v727 = vpop.f32.mrb[0].mxu0
      %v728 = vadd.f32 %v247, %v727
      %v729 = vpop.f32.mrb[0].mxu0
      %730 = vdwg.mxu0
      %v731 = vadd.f32 %v586, %v657
      %v732 = vxor.u32 %v731, 2147483648
      %v733 = vmul.f32 %v732, 1.442695
      %v734 = vpow.pop %v733
      %v735 = vadd.f32 %v734, 1.0
      %v736 = vrcp.pop %v735
      %v737 = vmul.f32 1.0, %v736
      %v738 = vadd.f32 %v587, %v659
      %v739 = vxor.u32 %v738, 2147483648
      %v740 = vmul.f32 %v739, 1.442695
      %v741 = vpow.pop %v740
      %v742 = vadd.f32 %v741, 1.0
      %v743 = vrcp.pop %v742
      %v744 = vmul.f32 1.0, %v743
      %v745 = vmul.f32 %v737, %v728
      %v746 = vadd.f32 %v588, %v745
      %v747 = vtanh.pop %v746
      %v748 = vsub.f32 1.0, %v744
      %v749 = vmul.f32 %v748, %v747
      %v750 = vmul.f32 %v744, %v589
      %v751 = vadd.f32 %v749, %v750
      %752 = vst [vmem:[#allocation2] sm:$0xff] %v751
      %s753 = scalar_lea.vmem %s175, 16
      %754 = vst [vmem:[%s753] sm:$0xff] %v751
      %s755 = scalar_lea.vmem %s169, 72
      %v756 = vld [vmem:[%s755] sm:$0xff]
      %v757 = vld [vmem:[%s755 + $0x8] sm:$0xff]
      %v758 = vld [vmem:[%s755 + $0x10] sm:$0xff]
      %v759 = vld [vmem:[#allocation2] sm:$0xff]
      %760 = vmatprep.subr.mxu0 %v183
      %761 = vmatpush1.msra.mxu0 %v182
      %762 = vmatprep.subr.mxu0 %v186
      %763 = vmatpush1.msra.mxu0 %v185
      %764 = vmatprep.subr.mxu0 %v189
      %765 = vmatpush1.msra.mxu0 %v188
      %766 = vmatprep.subr.mxu0 %v192
      %767 = vmatpush1.msra.mxu0 %v191
      %768 = vmatprep.subr.mxu0 %v195
      %769 = vmatpush1.msra.mxu0 %v194
      %770 = vmatprep.subr.mxu0 %v198
      %771 = vmatpush1.msra.mxu0 %v197
      %772 = vmatprep.subr.mxu0 %v201
      %773 = vmatpush1.msra.mxu0 %v200
      %774 = vmatprep.subr.mxu0 %v204
      %775 = vmatpush1.msra.mxu0 %v203
      %776 = vmatprep.subr.mxu0 %v207
      %777 = vmatpush1.msra.mxu0 %v206
      %778 = vmatprep.subr.mxu0 %v210
      %779 = vmatpush1.msra.mxu0 %v209
      %780 = vmatprep.subr.mxu0 %v213
      %781 = vmatpush1.msra.mxu0 %v212
      %782 = vmatprep.subr.mxu0 %v216
      %783 = vmatpush1.msra.mxu0 %v215
      %784 = vmatprep.subr.mxu0 %v219
      %785 = vmatpush1.msra.mxu0 %v218
      %786 = vmatprep.subr.mxu0 %v222
      %787 = vmatpush1.msra.mxu0 %v221
      %788 = vmatprep.subr.mxu0 %v225
      %789 = vmatpush1.msra.mxu0 %v224
      %790 = vmatprep.subr.mxu0 %v228
      %791 = vmatpush1.msra.mxu0 %v227
      %792 = vmatprep.subr.mxu0 0.0
      %793 = vmatpush1.msra.mxu0 0.0
      %794 = vmatprep.subr.mxu0 0.0
      %795 = vmatpush1.msra.mxu0 0.0
      %796 = vmatprep.subr.mxu0 0.0
      %797 = vmatpush1.msra.mxu0 0.0
      %798 = vmatprep.subr.mxu0 0.0
      %799 = vmatpush1.msra.mxu0 0.0
      %800 = vmatprep.subr.mxu0 0.0
      %801 = vmatpush1.msra.mxu0 0.0
      %802 = vmatprep.subr.mxu0 0.0
      %803 = vmatpush1.msra.mxu0 0.0
      %804 = vmatprep.subr.mxu0 0.0
      %805 = vmatpush1.msra.mxu0 0.0
      %806 = vmatprep.subr.mxu0 0.0
      %807 = vmatpush1.msra.mxu0 0.0
      %808 = vmatprep.subr.mxu0 0.0
      %809 = vmatpush1.msra.mxu0 0.0
      %810 = vmatprep.subr.mxu0 0.0
      %811 = vmatpush1.msra.mxu0 0.0
      %812 = vmatprep.subr.mxu0 0.0
      %813 = vmatpush1.msra.mxu0 0.0
      %814 = vmatprep.subr.mxu0 0.0
      %815 = vmatpush1.msra.mxu0 0.0
      %816 = vmatprep.subr.mxu0 0.0
      %817 = vmatpush1.msra.mxu0 0.0
      %818 = vmatprep.subr.mxu0 0.0
      %819 = vmatpush1.msra.mxu0 0.0
      %820 = vmatprep.subr.mxu0 0.0
      %821 = vmatpush1.msra.mxu0 0.0
      %822 = vmatprep.subr.mxu0 0.0
      %823 = vmatpush1.msra.mxu0 0.0
      %824 = vmatprep.mubr.f32.mxu0 0.0
      %825 = vmatmul.mubr.f32.gmra.mrb[0].mxu0 %v759
      %v826 = vpop.f32.mrb[0].mxu0
      %v827 = vadd.f32 %v239, %v826
      %v828 = vpop.f32.mrb[0].mxu0
      %v829 = vadd.f32 %v243, %v828
      %830 = vdwg.mxu0
      %831 = vmatprep.subr.mxu0 0.0
      %832 = vmatpush1.msra.mxu0 %v184
      %833 = vmatprep.subr.mxu0 0.0
      %834 = vmatpush1.msra.mxu0 %v187
      %835 = vmatprep.subr.mxu0 0.0
      %836 = vmatpush1.msra.mxu0 %v190
      %837 = vmatprep.subr.mxu0 0.0
      %838 = vmatpush1.msra.mxu0 %v193
      %839 = vmatprep.subr.mxu0 0.0
      %840 = vmatpush1.msra.mxu0 %v196
      %841 = vmatprep.subr.mxu0 0.0
      %842 = vmatpush1.msra.mxu0 %v199
      %843 = vmatprep.subr.mxu0 0.0
      %844 = vmatpush1.msra.mxu0 %v202
      %845 = vmatprep.subr.mxu0 0.0
      %846 = vmatpush1.msra.mxu0 %v205
      %847 = vmatprep.subr.mxu0 0.0
      %848 = vmatpush1.msra.mxu0 %v208
      %849 = vmatprep.subr.mxu0 0.0
      %850 = vmatpush1.msra.mxu0 %v211
      %851 = vmatprep.subr.mxu0 0.0
      %852 = vmatpush1.msra.mxu0 %v214
      %853 = vmatprep.subr.mxu0 0.0
      %854 = vmatpush1.msra.mxu0 %v217
      %855 = vmatprep.subr.mxu0 0.0
      %856 = vmatpush1.msra.mxu0 %v220
      %857 = vmatprep.subr.mxu0 0.0
      %858 = vmatpush1.msra.mxu0 %v223
      %859 = vmatprep.subr.mxu0 0.0
      %860 = vmatpush1.msra.mxu0 %v226
      %861 = vmatprep.subr.mxu0 0.0
      %862 = vmatpush1.msra.mxu0 %v229
      %863 = vmatprep.subr.mxu0 0.0
      %864 = vmatpush1.msra.mxu0 0.0
      %865 = vmatprep.subr.mxu0 0.0
      %866 = vmatpush1.msra.mxu0 0.0
      %867 = vmatprep.subr.mxu0 0.0
      %868 = vmatpush1.msra.mxu0 0.0
      %869 = vmatprep.subr.mxu0 0.0
      %870 = vmatpush1.msra.mxu0 0.0
      %871 = vmatprep.subr.mxu0 0.0
      %872 = vmatpush1.msra.mxu0 0.0
      %873 = vmatprep.subr.mxu0 0.0
      %874 = vmatpush1.msra.mxu0 0.0
      %875 = vmatprep.subr.mxu0 0.0
      %876 = vmatpush1.msra.mxu0 0.0
      %877 = vmatprep.subr.mxu0 0.0
      %878 = vmatpush1.msra.mxu0 0.0
      %879 = vmatprep.subr.mxu0 0.0
      %880 = vmatpush1.msra.mxu0 0.0
      %881 = vmatprep.subr.mxu0 0.0
      %882 = vmatpush1.msra.mxu0 0.0
      %883 = vmatprep.subr.mxu0 0.0
      %884 = vmatpush1.msra.mxu0 0.0
      %885 = vmatprep.subr.mxu0 0.0
      %886 = vmatpush1.msra.mxu0 0.0
      %887 = vmatprep.subr.mxu0 0.0
      %888 = vmatpush1.msra.mxu0 0.0
      %889 = vmatprep.subr.mxu0 0.0
      %890 = vmatpush1.msra.mxu0 0.0
      %891 = vmatprep.subr.mxu0 0.0
      %892 = vmatpush1.msra.mxu0 0.0
      %893 = vmatprep.subr.mxu0 0.0
      %894 = vmatpush1.msra.mxu0 0.0
      %895 = vmatprep.mubr.f32.mxu0 0.0
      %896 = vmatmul.mubr.f32.gmra.mrb[0].mxu0 %v759
      %v897 = vpop.f32.mrb[0].mxu0
      %v898 = vadd.f32 %v247, %v897
      %v899 = vpop.f32.mrb[0].mxu0
      %900 = vdwg.mxu0
      %v901 = vadd.f32 %v756, %v827
      %v902 = vxor.u32 %v901, 2147483648
      %v903 = vmul.f32 %v902, 1.442695
      %v904 = vpow.pop %v903
      %v905 = vadd.f32 %v904, 1.0
      %v906 = vrcp.pop %v905
      %v907 = vmul.f32 1.0, %v906
      %v908 = vadd.f32 %v757, %v829
      %v909 = vxor.u32 %v908, 2147483648
      %v910 = vmul.f32 %v909, 1.442695
      %v911 = vpow.pop %v910
      %v912 = vadd.f32 %v911, 1.0
      %v913 = vrcp.pop %v912
      %v914 = vmul.f32 1.0, %v913
      %v915 = vmul.f32 %v907, %v898
      %v916 = vadd.f32 %v758, %v915
      %v917 = vtanh.pop %v916
      %v918 = vsub.f32 1.0, %v914
      %v919 = vmul.f32 %v918, %v917
      %v920 = vmul.f32 %v914, %v759
      %v921 = vadd.f32 %v919, %v920
      %922 = vst [vmem:[#allocation2] sm:$0xff] %v921
      %s923 = scalar_lea.vmem %s175, 24
      %924 = vst [vmem:[%s923] sm:$0xff] %v921
      %s925 = scalar_lea.vmem %s169, 96
      %v926 = vld [vmem:[%s925] sm:$0xff]
      %v927 = vld [vmem:[%s925 + $0x8] sm:$0xff]
      %v928 = vld [vmem:[%s925 + $0x10] sm:$0xff]
      %v929 = vld [vmem:[#allocation2] sm:$0xff]
      %930 = vmatprep.subr.mxu0 %v183
      %931 = vmatpush1.msra.mxu0 %v182
      %932 = vmatprep.subr.mxu0 %v186
      %933 = vmatpush1.msra.mxu0 %v185
      %934 = vmatprep.subr.mxu0 %v189
      %935 = vmatpush1.msra.mxu0 %v188
      %936 = vmatprep.subr.mxu0 %v192
      %937 = vmatpush1.msra.mxu0 %v191
      %938 = vmatprep.subr.mxu0 %v195
      %939 = vmatpush1.msra.mxu0 %v194
      %940 = vmatprep.subr.mxu0 %v198
      %941 = vmatpush1.msra.mxu0 %v197
      %942 = vmatprep.subr.mxu0 %v201
      %943 = vmatpush1.msra.mxu0 %v200
      %944 = vmatprep.subr.mxu0 %v204
      %945 = vmatpush1.msra.mxu0 %v203
      %946 = vmatprep.subr.mxu0 %v207
      %947 = vmatpush1.msra.mxu0 %v206
      %948 = vmatprep.subr.mxu0 %v210
      %949 = vmatpush1.msra.mxu0 %v209
      %950 = vmatprep.subr.mxu0 %v213
      %951 = vmatpush1.msra.mxu0 %v212
      %952 = vmatprep.subr.mxu0 %v216
      %953 = vmatpush1.msra.mxu0 %v215
      %954 = vmatprep.subr.mxu0 %v219
      %955 = vmatpush1.msra.mxu0 %v218
      %956 = vmatprep.subr.mxu0 %v222
      %957 = vmatpush1.msra.mxu0 %v221
      %958 = vmatprep.subr.mxu0 %v225
      %959 = vmatpush1.msra.mxu0 %v224
      %960 = vmatprep.subr.mxu0 %v228
      %961 = vmatpush1.msra.mxu0 %v227
      %962 = vmatprep.subr.mxu0 0.0
      %963 = vmatpush1.msra.mxu0 0.0
      %964 = vmatprep.subr.mxu0 0.0
      %965 = vmatpush1.msra.mxu0 0.0
      %966 = vmatprep.subr.mxu0 0.0
      %967 = vmatpush1.msra.mxu0 0.0
      %968 = vmatprep.subr.mxu0 0.0
      %969 = vmatpush1.msra.mxu0 0.0
      %970 = vmatprep.subr.mxu0 0.0
      %971 = vmatpush1.msra.mxu0 0.0
      %972 = vmatprep.subr.mxu0 0.0
      %973 = vmatpush1.msra.mxu0 0.0
      %974 = vmatprep.subr.mxu0 0.0
      %975 = vmatpush1.msra.mxu0 0.0
      %976 = vmatprep.subr.mxu0 0.0
      %977 = vmatpush1.msra.mxu0 0.0
      %978 = vmatprep.subr.mxu0 0.0
      %979 = vmatpush1.msra.mxu0 0.0
      %980 = vmatprep.subr.mxu0 0.0
      %981 = vmatpush1.msra.mxu0 0.0
      %982 = vmatprep.subr.mxu0 0.0
      %983 = vmatpush1.msra.mxu0 0.0
      %984 = vmatprep.subr.mxu0 0.0
      %985 = vmatpush1.msra.mxu0 0.0
      %986 = vmatprep.subr.mxu0 0.0
      %987 = vmatpush1.msra.mxu0 0.0
      %988 = vmatprep.subr.mxu0 0.0
      %989 = vmatpush1.msra.mxu0 0.0
      %990 = vmatprep.subr.mxu0 0.0
      %991 = vmatpush1.msra.mxu0 0.0
      %992 = vmatprep.subr.mxu0 0.0
      %993 = vmatpush1.msra.mxu0 0.0
      %994 = vmatprep.mubr.f32.mxu0 0.0
      %995 = vmatmul.mubr.f32.gmra.mrb[0].mxu0 %v929
      %v996 = vpop.f32.mrb[0].mxu0
      %v997 = vadd.f32 %v239, %v996
      %v998 = vpop.f32.mrb[0].mxu0
      %v999 = vadd.f32 %v243, %v998
      %1000 = vdwg.mxu0
      %1001 = vmatprep.subr.mxu0 0.0
      %1002 = vmatpush1.msra.mxu0 %v184
      %1003 = vmatprep.subr.mxu0 0.0
      %1004 = vmatpush1.msra.mxu0 %v187
      %1005 = vmatprep.subr.mxu0 0.0
      %1006 = vmatpush1.msra.mxu0 %v190
      %1007 = vmatprep.subr.mxu0 0.0
      %1008 = vmatpush1.msra.mxu0 %v193
      %1009 = vmatprep.subr.mxu0 0.0
      %1010 = vmatpush1.msra.mxu0 %v196
      %1011 = vmatprep.subr.mxu0 0.0
      %1012 = vmatpush1.msra.mxu0 %v199
      %1013 = vmatprep.subr.mxu0 0.0
      %1014 = vmatpush1.msra.mxu0 %v202
      %1015 = vmatprep.subr.mxu0 0.0
      %1016 = vmatpush1.msra.mxu0 %v205
      %1017 = vmatprep.subr.mxu0 0.0
      %1018 = vmatpush1.msra.mxu0 %v208
      %1019 = vmatprep.subr.mxu0 0.0
      %1020 = vmatpush1.msra.mxu0 %v211
      %1021 = vmatprep.subr.mxu0 0.0
      %1022 = vmatpush1.msra.mxu0 %v214
      %1023 = vmatprep.subr.mxu0 0.0
      %1024 = vmatpush1.msra.mxu0 %v217
      %1025 = vmatprep.subr.mxu0 0.0
      %1026 = vmatpush1.msra.mxu0 %v220
      %1027 = vmatprep.subr.mxu0 0.0
      %1028 = vmatpush1.msra.mxu0 %v223
      %1029 = vmatprep.subr.mxu0 0.0
      %1030 = vmatpush1.msra.mxu0 %v226
      %1031 = vmatprep.subr.mxu0 0.0
      %1032 = vmatpush1.msra.mxu0 %v229
      %1033 = vmatprep.subr.mxu0 0.0
      %1034 = vmatpush1.msra.mxu0 0.0
      %1035 = vmatprep.subr.mxu0 0.0
      %1036 = vmatpush1.msra.mxu0 0.0
      %1037 = vmatprep.subr.mxu0 0.0
      %1038 = vmatpush1.msra.mxu0 0.0
      %1039 = vmatprep.subr.mxu0 0.0
      %1040 = vmatpush1.msra.mxu0 0.0
      %1041 = vmatprep.subr.mxu0 0.0
      %1042 = vmatpush1.msra.mxu0 0.0
      %1043 = vmatprep.subr.mxu0 0.0
      %1044 = vmatpush1.msra.mxu0 0.0
      %1045 = vmatprep.subr.mxu0 0.0
      %1046 = vmatpush1.msra.mxu0 0.0
      %1047 = vmatprep.subr.mxu0 0.0
      %1048 = vmatpush1.msra.mxu0 0.0
      %1049 = vmatprep.subr.mxu0 0.0
      %1050 = vmatpush1.msra.mxu0 0.0
      %1051 = vmatprep.subr.mxu0 0.0
      %1052 = vmatpush1.msra.mxu0 0.0
      %1053 = vmatprep.subr.mxu0 0.0
      %1054 = vmatpush1.msra.mxu0 0.0
      %1055 = vmatprep.subr.mxu0 0.0
      %1056 = vmatpush1.msra.mxu0 0.0
      %1057 = vmatprep.subr.mxu0 0.0
      %1058 = vmatpush1.msra.mxu0 0.0
      %1059 = vmatprep.subr.mxu0 0.0
      %1060 = vmatpush1.msra.mxu0 0.0
      %1061 = vmatprep.subr.mxu0 0.0
      %1062 = vmatpush1.msra.mxu0 0.0
      %1063 = vmatprep.subr.mxu0 0.0
      %1064 = vmatpush1.msra.mxu0 0.0
      %1065 = vmatprep.mubr.f32.mxu0 0.0
      %1066 = vmatmul.mubr.f32.gmra.mrb[0].mxu0 %v929
      %v1067 = vpop.f32.mrb[0].mxu0
      %v1068 = vadd.f32 %v247, %v1067
      %v1069 = vpop.f32.mrb[0].mxu0
      %1070 = vdwg.mxu0
      %v1071 = vadd.f32 %v926, %v997
      %v1072 = vxor.u32 %v1071, 2147483648
      %v1073 = vmul.f32 %v1072, 1.442695
      %v1074 = vpow.pop %v1073
      %v1075 = vadd.f32 %v1074, 1.0
      %v1076 = vrcp.pop %v1075
      %v1077 = vmul.f32 1.0, %v1076
      %v1078 = vadd.f32 %v927, %v999
      %v1079 = vxor.u32 %v1078, 2147483648
      %v1080 = vmul.f32 %v1079, 1.442695
      %v1081 = vpow.pop %v1080
      %v1082 = vadd.f32 %v1081, 1.0
      %v1083 = vrcp.pop %v1082
      %v1084 = vmul.f32 1.0, %v1083
      %v1085 = vmul.f32 %v1077, %v1068
      %v1086 = vadd.f32 %v928, %v1085
      %v1087 = vtanh.pop %v1086
      %v1088 = vsub.f32 1.0, %v1084
      %v1089 = vmul.f32 %v1088, %v1087
      %v1090 = vmul.f32 %v1084, %v929
      %v1091 = vadd.f32 %v1089, %v1090
      %1092 = vst [vmem:[#allocation2] sm:$0xff] %v1091
      %s1093 = scalar_lea.vmem %s175, 32
      %1094 = vst [vmem:[%s1093] sm:$0xff] %v1091
      %s1095 = scalar_lea.vmem %s169, 120
      %v1096 = vld [vmem:[%s1095] sm:$0xff]
      %v1097 = vld [vmem:[%s1095 + $0x8] sm:$0xff]
      %v1098 = vld [vmem:[%s1095 + $0x10] sm:$0xff]
      %v1099 = vld [vmem:[#allocation2] sm:$0xff]
      %1100 = vmatprep.subr.mxu0 %v183
      %1101 = vmatpush1.msra.mxu0 %v182
      %1102 = vmatprep.subr.mxu0 %v186
      %1103 = vmatpush1.msra.mxu0 %v185
      %1104 = vmatprep.subr.mxu0 %v189
      %1105 = vmatpush1.msra.mxu0 %v188
      %1106 = vmatprep.subr.mxu0 %v192
      %1107 = vmatpush1.msra.mxu0 %v191
      %1108 = vmatprep.subr.mxu0 %v195
      %1109 = vmatpush1.msra.mxu0 %v194
      %1110 = vmatprep.subr.mxu0 %v198
      %1111 = vmatpush1.msra.mxu0 %v197
      %1112 = vmatprep.subr.mxu0 %v201
      %1113 = vmatpush1.msra.mxu0 %v200
      %1114 = vmatprep.subr.mxu0 %v204
      %1115 = vmatpush1.msra.mxu0 %v203
      %1116 = vmatprep.subr.mxu0 %v207
      %1117 = vmatpush1.msra.mxu0 %v206
      %1118 = vmatprep.subr.mxu0 %v210
      %1119 = vmatpush1.msra.mxu0 %v209
      %1120 = vmatprep.subr.mxu0 %v213
      %1121 = vmatpush1.msra.mxu0 %v212
      %1122 = vmatprep.subr.mxu0 %v216
      %1123 = vmatpush1.msra.mxu0 %v215
      %1124 = vmatprep.subr.mxu0 %v219
      %1125 = vmatpush1.msra.mxu0 %v218
      %1126 = vmatprep.subr.mxu0 %v222
      %1127 = vmatpush1.msra.mxu0 %v221
      %1128 = vmatprep.subr.mxu0 %v225
      %1129 = vmatpush1.msra.mxu0 %v224
      %1130 = vmatprep.subr.mxu0 %v228
      %1131 = vmatpush1.msra.mxu0 %v227
      %1132 = vmatprep.subr.mxu0 0.0
      %1133 = vmatpush1.msra.mxu0 0.0
      %1134 = vmatprep.subr.mxu0 0.0
      %1135 = vmatpush1.msra.mxu0 0.0
      %1136 = vmatprep.subr.mxu0 0.0
      %1137 = vmatpush1.msra.mxu0 0.0
      %1138 = vmatprep.subr.mxu0 0.0
      %1139 = vmatpush1.msra.mxu0 0.0
      %1140 = vmatprep.subr.mxu0 0.0
      %1141 = vmatpush1.msra.mxu0 0.0
      %1142 = vmatprep.subr.mxu0 0.0
      %1143 = vmatpush1.msra.mxu0 0.0
      %1144 = vmatprep.subr.mxu0 0.0
      %1145 = vmatpush1.msra.mxu0 0.0
      %1146 = vmatprep.subr.mxu0 0.0
      %1147 = vmatpush1.msra.mxu0 0.0
      %1148 = vmatprep.subr.mxu0 0.0
      %1149 = vmatpush1.msra.mxu0 0.0
      %1150 = vmatprep.subr.mxu0 0.0
      %1151 = vmatpush1.msra.mxu0 0.0
      %1152 = vmatprep.subr.mxu0 0.0
      %1153 = vmatpush1.msra.mxu0 0.0
      %1154 = vmatprep.subr.mxu0 0.0
      %1155 = vmatpush1.msra.mxu0 0.0
      %1156 = vmatprep.subr.mxu0 0.0
      %1157 = vmatpush1.msra.mxu0 0.0
      %1158 = vmatprep.subr.mxu0 0.0
      %1159 = vmatpush1.msra.mxu0 0.0
      %1160 = vmatprep.subr.mxu0 0.0
      %1161 = vmatpush1.msra.mxu0 0.0
      %1162 = vmatprep.subr.mxu0 0.0
      %1163 = vmatpush1.msra.mxu0 0.0
      %1164 = vmatprep.mubr.f32.mxu0 0.0
      %1165 = vmatmul.mubr.f32.gmra.mrb[0].mxu0 %v1099
      %v1166 = vpop.f32.mrb[0].mxu0
      %v1167 = vadd.f32 %v239, %v1166
      %v1168 = vpop.f32.mrb[0].mxu0
      %v1169 = vadd.f32 %v243, %v1168
      %1170 = vdwg.mxu0
      %1171 = vmatprep.subr.mxu0 0.0
      %1172 = vmatpush1.msra.mxu0 %v184
      %1173 = vmatprep.subr.mxu0 0.0
      %1174 = vmatpush1.msra.mxu0 %v187
      %1175 = vmatprep.subr.mxu0 0.0
      %1176 = vmatpush1.msra.mxu0 %v190
      %1177 = vmatprep.subr.mxu0 0.0
      %1178 = vmatpush1.msra.mxu0 %v193
      %1179 = vmatprep.subr.mxu0 0.0
      %1180 = vmatpush1.msra.mxu0 %v196
      %1181 = vmatprep.subr.mxu0 0.0
      %1182 = vmatpush1.msra.mxu0 %v199
      %1183 = vmatprep.subr.mxu0 0.0
      %1184 = vmatpush1.msra.mxu0 %v202
      %1185 = vmatprep.subr.mxu0 0.0
      %1186 = vmatpush1.msra.mxu0 %v205
      %1187 = vmatprep.subr.mxu0 0.0
      %1188 = vmatpush1.msra.mxu0 %v208
      %1189 = vmatprep.subr.mxu0 0.0
      %1190 = vmatpush1.msra.mxu0 %v211
      %1191 = vmatprep.subr.mxu0 0.0
      %1192 = vmatpush1.msra.mxu0 %v214
      %1193 = vmatprep.subr.mxu0 0.0
      %1194 = vmatpush1.msra.mxu0 %v217
      %1195 = vmatprep.subr.mxu0 0.0
      %1196 = vmatpush1.msra.mxu0 %v220
      %1197 = vmatprep.subr.mxu0 0.0
      %1198 = vmatpush1.msra.mxu0 %v223
      %1199 = vmatprep.subr.mxu0 0.0
      %1200 = vmatpush1.msra.mxu0 %v226
      %1201 = vmatprep.subr.mxu0 0.0
      %1202 = vmatpush1.msra.mxu0 %v229
      %1203 = vmatprep.subr.mxu0 0.0
      %1204 = vmatpush1.msra.mxu0 0.0
      %1205 = vmatprep.subr.mxu0 0.0
      %1206 = vmatpush1.msra.mxu0 0.0
      %1207 = vmatprep.subr.mxu0 0.0
      %1208 = vmatpush1.msra.mxu0 0.0
      %1209 = vmatprep.subr.mxu0 0.0
      %1210 = vmatpush1.msra.mxu0 0.0
      %1211 = vmatprep.subr.mxu0 0.0
      %1212 = vmatpush1.msra.mxu0 0.0
      %1213 = vmatprep.subr.mxu0 0.0
      %1214 = vmatpush1.msra.mxu0 0.0
      %1215 = vmatprep.subr.mxu0 0.0
      %1216 = vmatpush1.msra.mxu0 0.0
      %1217 = vmatprep.subr.mxu0 0.0
      %1218 = vmatpush1.msra.mxu0 0.0
      %1219 = vmatprep.subr.mxu0 0.0
      %1220 = vmatpush1.msra.mxu0 0.0
      %1221 = vmatprep.subr.mxu0 0.0
      %1222 = vmatpush1.msra.mxu0 0.0
      %1223 = vmatprep.subr.mxu0 0.0
      %1224 = vmatpush1.msra.mxu0 0.0
      %1225 = vmatprep.subr.mxu0 0.0
      %1226 = vmatpush1.msra.mxu0 0.0
      %1227 = vmatprep.subr.mxu0 0.0
      %1228 = vmatpush1.msra.mxu0 0.0
      %1229 = vmatprep.subr.mxu0 0.0
      %1230 = vmatpush1.msra.mxu0 0.0
      %1231 = vmatprep.subr.mxu0 0.0
      %1232 = vmatpush1.msra.mxu0 0.0
      %1233 = vmatprep.subr.mxu0 0.0
      %1234 = vmatpush1.msra.mxu0 0.0
      %1235 = vmatprep.mubr.f32.mxu0 0.0
      %1236 = vmatmul.mubr.f32.gmra.mrb[0].mxu0 %v1099
      %v1237 = vpop.f32.mrb[0].mxu0
      %v1238 = vadd.f32 %v247, %v1237
      %v1239 = vpop.f32.mrb[0].mxu0
      %1240 = vdwg.mxu0
      %v1241 = vadd.f32 %v1096, %v1167
      %v1242 = vxor.u32 %v1241, 2147483648
      %v1243 = vmul.f32 %v1242, 1.442695
      %v1244 = vpow.pop %v1243
      %v1245 = vadd.f32 %v1244, 1.0
      %v1246 = vrcp.pop %v1245
      %v1247 = vmul.f32 1.0, %v1246
      %v1248 = vadd.f32 %v1097, %v1169
      %v1249 = vxor.u32 %v1248, 2147483648
      %v1250 = vmul.f32 %v1249, 1.442695
      %v1251 = vpow.pop %v1250
      %v1252 = vadd.f32 %v1251, 1.0
      %v1253 = vrcp.pop %v1252
      %v1254 = vmul.f32 1.0, %v1253
      %v1255 = vmul.f32 %v1247, %v1238
      %v1256 = vadd.f32 %v1098, %v1255
      %v1257 = vtanh.pop %v1256
      %v1258 = vsub.f32 1.0, %v1254
      %v1259 = vmul.f32 %v1258, %v1257
      %v1260 = vmul.f32 %v1254, %v1099
      %v1261 = vadd.f32 %v1259, %v1260
      %1262 = vst [vmem:[#allocation2] sm:$0xff] %v1261
      %s1263 = scalar_lea.vmem %s175, 40
      %1264 = vst [vmem:[%s1263] sm:$0xff] %v1261
      %s1265 = scalar_lea.vmem %s169, 144
      %v1266 = vld [vmem:[%s1265] sm:$0xff]
      %v1267 = vld [vmem:[%s1265 + $0x8] sm:$0xff]
      %v1268 = vld [vmem:[%s1265 + $0x10] sm:$0xff]
      %v1269 = vld [vmem:[#allocation2] sm:$0xff]
      %1270 = vmatprep.subr.mxu0 %v183
      %1271 = vmatpush1.msra.mxu0 %v182
      %1272 = vmatprep.subr.mxu0 %v186
      %1273 = vmatpush1.msra.mxu0 %v185
      %1274 = vmatprep.subr.mxu0 %v189
      %1275 = vmatpush1.msra.mxu0 %v188
      %1276 = vmatprep.subr.mxu0 %v192
      %1277 = vmatpush1.msra.mxu0 %v191
      %1278 = vmatprep.subr.mxu0 %v195
      %1279 = vmatpush1.msra.mxu0 %v194
      %1280 = vmatprep.subr.mxu0 %v198
      %1281 = vmatpush1.msra.mxu0 %v197
      %1282 = vmatprep.subr.mxu0 %v201
      %1283 = vmatpush1.msra.mxu0 %v200
      %1284 = vmatprep.subr.mxu0 %v204
      %1285 = vmatpush1.msra.mxu0 %v203
      %1286 = vmatprep.subr.mxu0 %v207
      %1287 = vmatpush1.msra.mxu0 %v206
      %1288 = vmatprep.subr.mxu0 %v210
      %1289 = vmatpush1.msra.mxu0 %v209
      %1290 = vmatprep.subr.mxu0 %v213
      %1291 = vmatpush1.msra.mxu0 %v212
      %1292 = vmatprep.subr.mxu0 %v216
      %1293 = vmatpush1.msra.mxu0 %v215
      %1294 = vmatprep.subr.mxu0 %v219
      %1295 = vmatpush1.msra.mxu0 %v218
      %1296 = vmatprep.subr.mxu0 %v222
      %1297 = vmatpush1.msra.mxu0 %v221
      %1298 = vmatprep.subr.mxu0 %v225
      %1299 = vmatpush1.msra.mxu0 %v224
      %1300 = vmatprep.subr.mxu0 %v228
      %1301 = vmatpush1.msra.mxu0 %v227
      %1302 = vmatprep.subr.mxu0 0.0
      %1303 = vmatpush1.msra.mxu0 0.0
      %1304 = vmatprep.subr.mxu0 0.0
      %1305 = vmatpush1.msra.mxu0 0.0
      %1306 = vmatprep.subr.mxu0 0.0
      %1307 = vmatpush1.msra.mxu0 0.0
      %1308 = vmatprep.subr.mxu0 0.0
      %1309 = vmatpush1.msra.mxu0 0.0
      %1310 = vmatprep.subr.mxu0 0.0
      %1311 = vmatpush1.msra.mxu0 0.0
      %1312 = vmatprep.subr.mxu0 0.0
      %1313 = vmatpush1.msra.mxu0 0.0
      %1314 = vmatprep.subr.mxu0 0.0
      %1315 = vmatpush1.msra.mxu0 0.0
      %1316 = vmatprep.subr.mxu0 0.0
      %1317 = vmatpush1.msra.mxu0 0.0
      %1318 = vmatprep.subr.mxu0 0.0
      %1319 = vmatpush1.msra.mxu0 0.0
      %1320 = vmatprep.subr.mxu0 0.0
      %1321 = vmatpush1.msra.mxu0 0.0
      %1322 = vmatprep.subr.mxu0 0.0
      %1323 = vmatpush1.msra.mxu0 0.0
      %1324 = vmatprep.subr.mxu0 0.0
      %1325 = vmatpush1.msra.mxu0 0.0
      %1326 = vmatprep.subr.mxu0 0.0
      %1327 = vmatpush1.msra.mxu0 0.0
      %1328 = vmatprep.subr.mxu0 0.0
      %1329 = vmatpush1.msra.mxu0 0.0
      %1330 = vmatprep.subr.mxu0 0.0
      %1331 = vmatpush1.msra.mxu0 0.0
      %1332 = vmatprep.subr.mxu0 0.0
      %1333 = vmatpush1.msra.mxu0 0.0
      %1334 = vmatprep.mubr.f32.mxu0 0.0
      %1335 = vmatmul.mubr.f32.gmra.mrb[0].mxu0 %v1269
      %v1336 = vpop.f32.mrb[0].mxu0
      %v1337 = vadd.f32 %v239, %v1336
      %v1338 = vpop.f32.mrb[0].mxu0
      %v1339 = vadd.f32 %v243, %v1338
      %1340 = vdwg.mxu0
      %1341 = vmatprep.subr.mxu0 0.0
      %1342 = vmatpush1.msra.mxu0 %v184
      %1343 = vmatprep.subr.mxu0 0.0
      %1344 = vmatpush1.msra.mxu0 %v187
      %1345 = vmatprep.subr.mxu0 0.0
      %1346 = vmatpush1.msra.mxu0 %v190
      %1347 = vmatprep.subr.mxu0 0.0
      %1348 = vmatpush1.msra.mxu0 %v193
      %1349 = vmatprep.subr.mxu0 0.0
      %1350 = vmatpush1.msra.mxu0 %v196
      %1351 = vmatprep.subr.mxu0 0.0
      %1352 = vmatpush1.msra.mxu0 %v199
      %1353 = vmatprep.subr.mxu0 0.0
      %1354 = vmatpush1.msra.mxu0 %v202
      %1355 = vmatprep.subr.mxu0 0.0
      %1356 = vmatpush1.msra.mxu0 %v205
      %1357 = vmatprep.subr.mxu0 0.0
      %1358 = vmatpush1.msra.mxu0 %v208
      %1359 = vmatprep.subr.mxu0 0.0
      %1360 = vmatpush1.msra.mxu0 %v211
      %1361 = vmatprep.subr.mxu0 0.0
      %1362 = vmatpush1.msra.mxu0 %v214
      %1363 = vmatprep.subr.mxu0 0.0
      %1364 = vmatpush1.msra.mxu0 %v217
      %1365 = vmatprep.subr.mxu0 0.0
      %1366 = vmatpush1.msra.mxu0 %v220
      %1367 = vmatprep.subr.mxu0 0.0
      %1368 = vmatpush1.msra.mxu0 %v223
      %1369 = vmatprep.subr.mxu0 0.0
      %1370 = vmatpush1.msra.mxu0 %v226
      %1371 = vmatprep.subr.mxu0 0.0
      %1372 = vmatpush1.msra.mxu0 %v229
      %1373 = vmatprep.subr.mxu0 0.0
      %1374 = vmatpush1.msra.mxu0 0.0
      %1375 = vmatprep.subr.mxu0 0.0
      %1376 = vmatpush1.msra.mxu0 0.0
      %1377 = vmatprep.subr.mxu0 0.0
      %1378 = vmatpush1.msra.mxu0 0.0
      %1379 = vmatprep.subr.mxu0 0.0
      %1380 = vmatpush1.msra.mxu0 0.0
      %1381 = vmatprep.subr.mxu0 0.0
      %1382 = vmatpush1.msra.mxu0 0.0
      %1383 = vmatprep.subr.mxu0 0.0
      %1384 = vmatpush1.msra.mxu0 0.0
      %1385 = vmatprep.subr.mxu0 0.0
      %1386 = vmatpush1.msra.mxu0 0.0
      %1387 = vmatprep.subr.mxu0 0.0
      %1388 = vmatpush1.msra.mxu0 0.0
      %1389 = vmatprep.subr.mxu0 0.0
      %1390 = vmatpush1.msra.mxu0 0.0
      %1391 = vmatprep.subr.mxu0 0.0
      %1392 = vmatpush1.msra.mxu0 0.0
      %1393 = vmatprep.subr.mxu0 0.0
      %1394 = vmatpush1.msra.mxu0 0.0
      %1395 = vmatprep.subr.mxu0 0.0
      %1396 = vmatpush1.msra.mxu0 0.0
      %1397 = vmatprep.subr.mxu0 0.0
      %1398 = vmatpush1.msra.mxu0 0.0
      %1399 = vmatprep.subr.mxu0 0.0
      %1400 = vmatpush1.msra.mxu0 0.0
      %1401 = vmatprep.subr.mxu0 0.0
      %1402 = vmatpush1.msra.mxu0 0.0
      %1403 = vmatprep.subr.mxu0 0.0
      %1404 = vmatpush1.msra.mxu0 0.0
      %1405 = vmatprep.mubr.f32.mxu0 0.0
      %1406 = vmatmul.mubr.f32.gmra.mrb[0].mxu0 %v1269
      %v1407 = vpop.f32.mrb[0].mxu0
      %v1408 = vadd.f32 %v247, %v1407
      %v1409 = vpop.f32.mrb[0].mxu0
      %1410 = vdwg.mxu0
      %v1411 = vadd.f32 %v1266, %v1337
      %v1412 = vxor.u32 %v1411, 2147483648
      %v1413 = vmul.f32 %v1412, 1.442695
      %v1414 = vpow.pop %v1413
      %v1415 = vadd.f32 %v1414, 1.0
      %v1416 = vrcp.pop %v1415
      %v1417 = vmul.f32 1.0, %v1416
      %v1418 = vadd.f32 %v1267, %v1339
      %v1419 = vxor.u32 %v1418, 2147483648
      %v1420 = vmul.f32 %v1419, 1.442695
      %v1421 = vpow.pop %v1420
      %v1422 = vadd.f32 %v1421, 1.0
      %v1423 = vrcp.pop %v1422
      %v1424 = vmul.f32 1.0, %v1423
      %v1425 = vmul.f32 %v1417, %v1408
      %v1426 = vadd.f32 %v1268, %v1425
      %v1427 = vtanh.pop %v1426
      %v1428 = vsub.f32 1.0, %v1424
      %v1429 = vmul.f32 %v1428, %v1427
      %v1430 = vmul.f32 %v1424, %v1269
      %v1431 = vadd.f32 %v1429, %v1430
      %1432 = vst [vmem:[#allocation2] sm:$0xff] %v1431
      %s1433 = scalar_lea.vmem %s175, 48
      %1434 = vst [vmem:[%s1433] sm:$0xff] %v1431
      %s1435 = scalar_lea.vmem %s169, 168
      %v1436 = vld [vmem:[%s1435] sm:$0xff]
      %v1437 = vld [vmem:[%s1435 + $0x8] sm:$0xff]
      %v1438 = vld [vmem:[%s1435 + $0x10] sm:$0xff]
      %v1439 = vld [vmem:[#allocation2] sm:$0xff]
      %1440 = vmatprep.subr.mxu0 %v183
      %1441 = vmatpush1.msra.mxu0 %v182
      %1442 = vmatprep.subr.mxu0 %v186
      %1443 = vmatpush1.msra.mxu0 %v185
      %1444 = vmatprep.subr.mxu0 %v189
      %1445 = vmatpush1.msra.mxu0 %v188
      %1446 = vmatprep.subr.mxu0 %v192
      %1447 = vmatpush1.msra.mxu0 %v191
      %1448 = vmatprep.subr.mxu0 %v195
      %1449 = vmatpush1.msra.mxu0 %v194
      %1450 = vmatprep.subr.mxu0 %v198
      %1451 = vmatpush1.msra.mxu0 %v197
      %1452 = vmatprep.subr.mxu0 %v201
      %1453 = vmatpush1.msra.mxu0 %v200
      %1454 = vmatprep.subr.mxu0 %v204
      %1455 = vmatpush1.msra.mxu0 %v203
      %1456 = vmatprep.subr.mxu0 %v207
      %1457 = vmatpush1.msra.mxu0 %v206
      %1458 = vmatprep.subr.mxu0 %v210
      %1459 = vmatpush1.msra.mxu0 %v209
      %1460 = vmatprep.subr.mxu0 %v213
      %1461 = vmatpush1.msra.mxu0 %v212
      %1462 = vmatprep.subr.mxu0 %v216
      %1463 = vmatpush1.msra.mxu0 %v215
      %1464 = vmatprep.subr.mxu0 %v219
      %1465 = vmatpush1.msra.mxu0 %v218
      %1466 = vmatprep.subr.mxu0 %v222
      %1467 = vmatpush1.msra.mxu0 %v221
      %1468 = vmatprep.subr.mxu0 %v225
      %1469 = vmatpush1.msra.mxu0 %v224
      %1470 = vmatprep.subr.mxu0 %v228
      %1471 = vmatpush1.msra.mxu0 %v227
      %1472 = vmatprep.subr.mxu0 0.0
      %1473 = vmatpush1.msra.mxu0 0.0
      %1474 = vmatprep.subr.mxu0 0.0
      %1475 = vmatpush1.msra.mxu0 0.0
      %1476 = vmatprep.subr.mxu0 0.0
      %1477 = vmatpush1.msra.mxu0 0.0
      %1478 = vmatprep.subr.mxu0 0.0
      %1479 = vmatpush1.msra.mxu0 0.0
      %1480 = vmatprep.subr.mxu0 0.0
      %1481 = vmatpush1.msra.mxu0 0.0
      %1482 = vmatprep.subr.mxu0 0.0
      %1483 = vmatpush1.msra.mxu0 0.0
      %1484 = vmatprep.subr.mxu0 0.0
      %1485 = vmatpush1.msra.mxu0 0.0
      %1486 = vmatprep.subr.mxu0 0.0
      %1487 = vmatpush1.msra.mxu0 0.0
      %1488 = vmatprep.subr.mxu0 0.0
      %1489 = vmatpush1.msra.mxu0 0.0
      %1490 = vmatprep.subr.mxu0 0.0
      %1491 = vmatpush1.msra.mxu0 0.0
      %1492 = vmatprep.subr.mxu0 0.0
      %1493 = vmatpush1.msra.mxu0 0.0
      %1494 = vmatprep.subr.mxu0 0.0
      %1495 = vmatpush1.msra.mxu0 0.0
      %1496 = vmatprep.subr.mxu0 0.0
      %1497 = vmatpush1.msra.mxu0 0.0
      %1498 = vmatprep.subr.mxu0 0.0
      %1499 = vmatpush1.msra.mxu0 0.0
      %1500 = vmatprep.subr.mxu0 0.0
      %1501 = vmatpush1.msra.mxu0 0.0
      %1502 = vmatprep.subr.mxu0 0.0
      %1503 = vmatpush1.msra.mxu0 0.0
      %1504 = vmatprep.mubr.f32.mxu0 0.0
      %1505 = vmatmul.mubr.f32.gmra.mrb[0].mxu0 %v1439
      %v1506 = vpop.f32.mrb[0].mxu0
      %v1507 = vadd.f32 %v239, %v1506
      %v1508 = vpop.f32.mrb[0].mxu0
      %v1509 = vadd.f32 %v243, %v1508
      %1510 = vdwg.mxu0
      %1511 = vmatprep.subr.mxu0 0.0
      %1512 = vmatpush1.msra.mxu0 %v184
      %1513 = vmatprep.subr.mxu0 0.0
      %1514 = vmatpush1.msra.mxu0 %v187
      %1515 = vmatprep.subr.mxu0 0.0
      %1516 = vmatpush1.msra.mxu0 %v190
      %1517 = vmatprep.subr.mxu0 0.0
      %1518 = vmatpush1.msra.mxu0 %v193
      %1519 = vmatprep.subr.mxu0 0.0
      %1520 = vmatpush1.msra.mxu0 %v196
      %1521 = vmatprep.subr.mxu0 0.0
      %1522 = vmatpush1.msra.mxu0 %v199
      %1523 = vmatprep.subr.mxu0 0.0
      %1524 = vmatpush1.msra.mxu0 %v202
      %1525 = vmatprep.subr.mxu0 0.0
      %1526 = vmatpush1.msra.mxu0 %v205
      %1527 = vmatprep.subr.mxu0 0.0
      %1528 = vmatpush1.msra.mxu0 %v208
      %1529 = vmatprep.subr.mxu0 0.0
      %1530 = vmatpush1.msra.mxu0 %v211
      %1531 = vmatprep.subr.mxu0 0.0
      %1532 = vmatpush1.msra.mxu0 %v214
      %1533 = vmatprep.subr.mxu0 0.0
      %1534 = vmatpush1.msra.mxu0 %v217
      %1535 = vmatprep.subr.mxu0 0.0
      %1536 = vmatpush1.msra.mxu0 %v220
      %1537 = vmatprep.subr.mxu0 0.0
      %1538 = vmatpush1.msra.mxu0 %v223
      %1539 = vmatprep.subr.mxu0 0.0
      %1540 = vmatpush1.msra.mxu0 %v226
      %1541 = vmatprep.subr.mxu0 0.0
      %1542 = vmatpush1.msra.mxu0 %v229
      %1543 = vmatprep.subr.mxu0 0.0
      %1544 = vmatpush1.msra.mxu0 0.0
      %1545 = vmatprep.subr.mxu0 0.0
      %1546 = vmatpush1.msra.mxu0 0.0
      %1547 = vmatprep.subr.mxu0 0.0
      %1548 = vmatpush1.msra.mxu0 0.0
      %1549 = vmatprep.subr.mxu0 0.0
      %1550 = vmatpush1.msra.mxu0 0.0
      %1551 = vmatprep.subr.mxu0 0.0
      %1552 = vmatpush1.msra.mxu0 0.0
      %1553 = vmatprep.subr.mxu0 0.0
      %1554 = vmatpush1.msra.mxu0 0.0
      %1555 = vmatprep.subr.mxu0 0.0
      %1556 = vmatpush1.msra.mxu0 0.0
      %1557 = vmatprep.subr.mxu0 0.0
      %1558 = vmatpush1.msra.mxu0 0.0
      %1559 = vmatprep.subr.mxu0 0.0
      %1560 = vmatpush1.msra.mxu0 0.0
      %1561 = vmatprep.subr.mxu0 0.0
      %1562 = vmatpush1.msra.mxu0 0.0
      %1563 = vmatprep.subr.mxu0 0.0
      %1564 = vmatpush1.msra.mxu0 0.0
      %1565 = vmatprep.subr.mxu0 0.0
      %1566 = vmatpush1.msra.mxu0 0.0
      %1567 = vmatprep.subr.mxu0 0.0
      %1568 = vmatpush1.msra.mxu0 0.0
      %1569 = vmatprep.subr.mxu0 0.0
      %1570 = vmatpush1.msra.mxu0 0.0
      %1571 = vmatprep.subr.mxu0 0.0
      %1572 = vmatpush1.msra.mxu0 0.0
      %1573 = vmatprep.subr.mxu0 0.0
      %1574 = vmatpush1.msra.mxu0 0.0
      %1575 = vmatprep.mubr.f32.mxu0 0.0
      %1576 = vmatmul.mubr.f32.gmra.mrb[0].mxu0 %v1439
      %v1577 = vpop.f32.mrb[0].mxu0
      %v1578 = vadd.f32 %v247, %v1577
      %v1579 = vpop.f32.mrb[0].mxu0
      %1580 = vdwg.mxu0
      %v1581 = vadd.f32 %v1436, %v1507
      %v1582 = vxor.u32 %v1581, 2147483648
      %v1583 = vmul.f32 %v1582, 1.442695
      %v1584 = vpow.pop %v1583
      %v1585 = vadd.f32 %v1584, 1.0
      %v1586 = vrcp.pop %v1585
      %v1587 = vmul.f32 1.0, %v1586
      %v1588 = vadd.f32 %v1437, %v1509
      %v1589 = vxor.u32 %v1588, 2147483648
      %v1590 = vmul.f32 %v1589, 1.442695
      %v1591 = vpow.pop %v1590
      %v1592 = vadd.f32 %v1591, 1.0
      %v1593 = vrcp.pop %v1592
      %v1594 = vmul.f32 1.0, %v1593
      %v1595 = vmul.f32 %v1587, %v1578
      %v1596 = vadd.f32 %v1438, %v1595
      %v1597 = vtanh.pop %v1596
      %v1598 = vsub.f32 1.0, %v1594
      %v1599 = vmul.f32 %v1598, %v1597
      %v1600 = vmul.f32 %v1594, %v1439
      %v1601 = vadd.f32 %v1599, %v1600
      %1602 = vst [vmem:[#allocation2] sm:$0xff] %v1601
      %s1603 = scalar_lea.vmem %s175, 56
      %1604 = vst [vmem:[%s1603] sm:$0xff] %v1601
      %s1605 = smul.u32 8, %s14
      %p1606 = scmp.lt.s32.totalorder %s1605, 15
      %s1607 = scalar_select %p1606, %s1605, 15
      %s1608 = smul.addr %s1607, 8
      %s1609 = scalar_lea.vmem %s3, %s1608
      // Predicated region
      $region37: #{bigru_forward.5} parent=31 // pred_check
        %p1610 = pneg %p100
      $region38: #{bigru_forward.5} parent=31 // pred_check_branch
        %1612 = sbr.rel (%p1610) target = $region40
      $region39: #{bigru_forward.5} parent=31 // pred_region
        %s1613 = smul.u32 8, %s14
      $region40: #{bigru_forward.5} parent=31 // pred_fallthru
        _
    $region32: #{bigru_forward.5} parent=5 // pred_fallthru
      _
    %p1614 = scmp.le.s32.totalorder 2, %s9
    // Predicated region
    $region41: #{bigru_forward.5} parent=5 // pred_check
      %p1615 = pneg %p1614
    $region42: #{bigru_forward.5} parent=5 // pred_check_branch
      %1617 = sbr.rel (%p1615) target = $region44
    $region43: #{bigru_forward.5} parent=5 // pred_region
      %s1618 = ssub.s32 %s9, 2
      // Predicated region
      $region45: #{bigru_forward.5} parent=43 // pred_check
        %p1619 = pneg %p106
      $region46: #{bigru_forward.5} parent=43 // pred_check_branch
        %1621 = sbr.rel (%p1619) target = $region48
      $region47: #{bigru_forward.5} parent=43 // pred_region
        %s1622 = smul.u32 8, %s15
        %p1623 = scmp.lt.s32.totalorder %s1622, 15
        %s1624 = scalar_select %p1623, %s1622, 15
        %s1625 = smul.addr %s1624, 8
        %s1626 = scalar_lea.vmem %s3, %s1625
      $region48: #{bigru_forward.5} parent=43 // pred_fallthru
        _
    $region44: #{bigru_forward.5} parent=5 // pred_fallthru
      _
  $region6: #{bigru_forward.5} parent=0 // loop_footer
    %s13 = sadd.s32 1, %s9
  $region7: #{bigru_forward.5} parent=0 // loop_footer_branch
    %8 = sbr.rel target = $region3
  $region8: #{bigru_forward.5} parent=0 // loop_exit
    _

// kernel: bigru_forward.9
$region0: #{bigru_forward.9}
  #allocation0 [shape = 'u32[]', space=smem, size = 0x4, offset = 0x4, fixed_abs, tag = 'smem constant byte address 0x4 - core index']
  #allocation1 [shape = 'u32[144,128]{1,0:T(1,128)}', space=vmem, size = 0x12000, scoped, tag = 'internal scratch']
  %s0 = inlined_call_operand.vmem [shape: f32[8,128], index: 0, kind: input, shape index: {}]
  %s1 = inlined_call_operand.vmem [shape: f32[8,128], index: 1, kind: input, shape index: {}]
  %s2 = inlined_call_operand.vmem [shape: f32[128,128], index: 2, kind: input, shape index: {}]
  %s3 = inlined_call_operand.vmem [shape: f32[128,128], index: 3, kind: input, shape index: {}]
  %s4 = inlined_call_operand.vmem [shape: f32[1,128], index: 4, kind: input, shape index: {}]
  %s5 = inlined_call_operand.vmem [shape: f32[8,128], index: 5, kind: output, shape index: {}]
  %s6 = sld [smem:[#allocation0]]
  $region30: #{bigru_forward.9} parent=0
    _
  %s8 = ssub.s32 1, %s6
  %s9 = scalar_select 0, %s8, %s6
  // Predicated region
  $region2: #{bigru_forward.9} parent=0 // pred_check
    _
  $region3: #{bigru_forward.9} parent=0 // pred_check_branch
    %11 = sbr.rel (0) target = $region5
  $region4: #{bigru_forward.9} parent=0 // pred_region
    _
  $region5: #{bigru_forward.9} parent=0 // pred_fallthru
    _
  // Predicated region
  $region6: #{bigru_forward.9} parent=0 // pred_check
    _
  $region7: #{bigru_forward.9} parent=0 // pred_check_branch
    %13 = sbr.rel (0) target = $region9
  $region8: #{bigru_forward.9} parent=0 // pred_region
    _
  $region9: #{bigru_forward.9} parent=0 // pred_fallthru
    _
  // Predicated region
  $region10: #{bigru_forward.9} parent=0 // pred_check
    _
  $region11: #{bigru_forward.9} parent=0 // pred_check_branch
    %15 = sbr.rel (0) target = $region13
  $region12: #{bigru_forward.9} parent=0 // pred_region
    _
  $region13: #{bigru_forward.9} parent=0 // pred_fallthru
    _
  // Predicated region
  $region14: #{bigru_forward.9} parent=0 // pred_check
    _
  $region15: #{bigru_forward.9} parent=0 // pred_check_branch
    %17 = sbr.rel (0) target = $region17
  $region16: #{bigru_forward.9} parent=0 // pred_region
    _
  $region17: #{bigru_forward.9} parent=0 // pred_fallthru
    _
  // Predicated region
  $region18: #{bigru_forward.9} parent=0 // pred_check
    _
  $region19: #{bigru_forward.9} parent=0 // pred_check_branch
    %19 = sbr.rel (0) target = $region21
  $region20: #{bigru_forward.9} parent=0 // pred_region
    _
  $region21: #{bigru_forward.9} parent=0 // pred_fallthru
    _
  %v20 = vld [vmem:[%s0] sm:$0xff]
  %v21 = vld [vmem:[%s2] sm:$0xff]
  %v22 = vld [vmem:[%s2 + $0x8] sm:$0xff]
  %v23 = vld [vmem:[%s2 + $0x10] sm:$0xff]
  %v24 = vld [vmem:[%s2 + $0x18] sm:$0xff]
  %v25 = vld [vmem:[%s2 + $0x20] sm:$0xff]
  %v26 = vld [vmem:[%s2 + $0x28] sm:$0xff]
  %v27 = vld [vmem:[%s2 + $0x30] sm:$0xff]
  %v28 = vld [vmem:[%s2 + $0x38] sm:$0xff]
  %v29 = vld [vmem:[%s2 + $0x40] sm:$0xff]
  %v30 = vld [vmem:[%s2 + $0x48] sm:$0xff]
  %v31 = vld [vmem:[%s2 + $0x50] sm:$0xff]
  %v32 = vld [vmem:[%s2 + $0x58] sm:$0xff]
  %v33 = vld [vmem:[%s2 + $0x60] sm:$0xff]
  %v34 = vld [vmem:[%s2 + $0x68] sm:$0xff]
  %v35 = vld [vmem:[%s2 + $0x70] sm:$0xff]
  %v36 = vld [vmem:[%s2 + $0x78] sm:$0xff]
  %v37 = vld [vmem:[%s1] sm:$0xff]
  %v38 = vld [vmem:[%s3] sm:$0xff]
  %v39 = vld [vmem:[%s3 + $0x8] sm:$0xff]
  %v40 = vld [vmem:[%s3 + $0x10] sm:$0xff]
  %v41 = vld [vmem:[%s3 + $0x18] sm:$0xff]
  %v42 = vld [vmem:[%s3 + $0x20] sm:$0xff]
  %v43 = vld [vmem:[%s3 + $0x28] sm:$0xff]
  %v44 = vld [vmem:[%s3 + $0x30] sm:$0xff]
  %v45 = vld [vmem:[%s3 + $0x38] sm:$0xff]
  %v46 = vld [vmem:[%s3 + $0x40] sm:$0xff]
  %v47 = vld [vmem:[%s3 + $0x48] sm:$0xff]
  %v48 = vld [vmem:[%s3 + $0x50] sm:$0xff]
  %v49 = vld [vmem:[%s3 + $0x58] sm:$0xff]
  %v50 = vld [vmem:[%s3 + $0x60] sm:$0xff]
  %v51 = vld [vmem:[%s3 + $0x68] sm:$0xff]
  %v52 = vld [vmem:[%s3 + $0x70] sm:$0xff]
  %v53 = vld [vmem:[%s3 + $0x78] sm:$0xff]
  %54 = vmatprep.subr.mxu0 0.0
  %55 = vmatpush1.msra.mxu0 %v38
  %56 = vmatprep.subr.mxu0 0.0
  %57 = vmatpush1.msra.mxu0 %v39
  %58 = vmatprep.subr.mxu0 0.0
  %59 = vmatpush1.msra.mxu0 %v40
  %60 = vmatprep.subr.mxu0 0.0
  %61 = vmatpush1.msra.mxu0 %v41
  %62 = vmatprep.subr.mxu0 0.0
  %63 = vmatpush1.msra.mxu0 %v42
  %64 = vmatprep.subr.mxu0 0.0
  %65 = vmatpush1.msra.mxu0 %v43
  %66 = vmatprep.subr.mxu0 0.0
  %67 = vmatpush1.msra.mxu0 %v44
  %68 = vmatprep.subr.mxu0 0.0
  %69 = vmatpush1.msra.mxu0 %v45
  %70 = vmatprep.subr.mxu0 0.0
  %71 = vmatpush1.msra.mxu0 %v46
  %72 = vmatprep.subr.mxu0 0.0
  %73 = vmatpush1.msra.mxu0 %v47
  %74 = vmatprep.subr.mxu0 0.0
  %75 = vmatpush1.msra.mxu0 %v48
  %76 = vmatprep.subr.mxu0 0.0
  %77 = vmatpush1.msra.mxu0 %v49
  %78 = vmatprep.subr.mxu0 0.0
  %79 = vmatpush1.msra.mxu0 %v50
  %80 = vmatprep.subr.mxu0 0.0
  %81 = vmatpush1.msra.mxu0 %v51
  %82 = vmatprep.subr.mxu0 0.0
  %83 = vmatpush1.msra.mxu0 %v52
  %84 = vmatprep.subr.mxu0 0.0
  %85 = vmatpush1.msra.mxu0 %v53
  %86 = vmatprep.subr.mxu0 0.0
  %87 = vmatpush1.msra.mxu0 0.0
  %88 = vmatprep.subr.mxu0 0.0
  %89 = vmatpush1.msra.mxu0 0.0
  %90 = vmatprep.subr.mxu0 0.0
  %91 = vmatpush1.msra.mxu0 0.0
  %92 = vmatprep.subr.mxu0 0.0
  %93 = vmatpush1.msra.mxu0 0.0
  %94 = vmatprep.subr.mxu0 0.0
  %95 = vmatpush1.msra.mxu0 0.0
  %96 = vmatprep.subr.mxu0 0.0
  %97 = vmatpush1.msra.mxu0 0.0
  %98 = vmatprep.subr.mxu0 0.0
  %99 = vmatpush1.msra.mxu0 0.0
  %100 = vmatprep.subr.mxu0 0.0
  %101 = vmatpush1.msra.mxu0 0.0
  %102 = vmatprep.subr.mxu0 0.0
  %103 = vmatpush1.msra.mxu0 0.0
  %104 = vmatprep.subr.mxu0 0.0
  %105 = vmatpush1.msra.mxu0 0.0
  %106 = vmatprep.subr.mxu0 0.0
  %107 = vmatpush1.msra.mxu0 0.0
  %108 = vmatprep.subr.mxu0 0.0
  %109 = vmatpush1.msra.mxu0 0.0
  %110 = vmatprep.subr.mxu0 0.0
  %111 = vmatpush1.msra.mxu0 0.0
  %112 = vmatprep.subr.mxu0 0.0
  %113 = vmatpush1.msra.mxu0 0.0
  %114 = vmatprep.subr.mxu0 0.0
  %115 = vmatpush1.msra.mxu0 0.0
  %116 = vmatprep.subr.mxu0 0.0
  %117 = vmatpush1.msra.mxu0 0.0
  %118 = vmatprep.mubr.f32.mxu0 0.0
  %119 = vmatmul.mubr.f32.gmra.mrb[0].mxu0 %v37
  %v120 = vpop.f32.mrb[0].mxu0
  %v121 = vadd.f32 0.0, %v120
  %v122 = vpop.f32.mrb[0].mxu0
  %123 = vdwg.mxu0
  %124 = vmatprep.subr.mxu0 0.0
  %125 = vmatpush1.msra.mxu0 %v21
  %126 = vmatprep.subr.mxu0 0.0
  %127 = vmatpush1.msra.mxu0 %v22
  %128 = vmatprep.subr.mxu0 0.0
  %129 = vmatpush1.msra.mxu0 %v23
  %130 = vmatprep.subr.mxu0 0.0
  %131 = vmatpush1.msra.mxu0 %v24
  %132 = vmatprep.subr.mxu0 0.0
  %133 = vmatpush1.msra.mxu0 %v25
  %134 = vmatprep.subr.mxu0 0.0
  %135 = vmatpush1.msra.mxu0 %v26
  %136 = vmatprep.subr.mxu0 0.0
  %137 = vmatpush1.msra.mxu0 %v27
  %138 = vmatprep.subr.mxu0 0.0
  %139 = vmatpush1.msra.mxu0 %v28
  %140 = vmatprep.subr.mxu0 0.0
  %141 = vmatpush1.msra.mxu0 %v29
  %142 = vmatprep.subr.mxu0 0.0
  %143 = vmatpush1.msra.mxu0 %v30
  %144 = vmatprep.subr.mxu0 0.0
  %145 = vmatpush1.msra.mxu0 %v31
  %146 = vmatprep.subr.mxu0 0.0
  %147 = vmatpush1.msra.mxu0 %v32
  %148 = vmatprep.subr.mxu0 0.0
  %149 = vmatpush1.msra.mxu0 %v33
  %150 = vmatprep.subr.mxu0 0.0
  %151 = vmatpush1.msra.mxu0 %v34
  %152 = vmatprep.subr.mxu0 0.0
  %153 = vmatpush1.msra.mxu0 %v35
  %154 = vmatprep.subr.mxu0 0.0
  %155 = vmatpush1.msra.mxu0 %v36
  %156 = vmatprep.subr.mxu0 0.0
  %157 = vmatpush1.msra.mxu0 0.0
  %158 = vmatprep.subr.mxu0 0.0
  %159 = vmatpush1.msra.mxu0 0.0
  %160 = vmatprep.subr.mxu0 0.0
  %161 = vmatpush1.msra.mxu0 0.0
  %162 = vmatprep.subr.mxu0 0.0
  %163 = vmatpush1.msra.mxu0 0.0
  %164 = vmatprep.subr.mxu0 0.0
  %165 = vmatpush1.msra.mxu0 0.0
  %166 = vmatprep.subr.mxu0 0.0
  %167 = vmatpush1.msra.mxu0 0.0
  %168 = vmatprep.subr.mxu0 0.0
  %169 = vmatpush1.msra.mxu0 0.0
  %170 = vmatprep.subr.mxu0 0.0
  %171 = vmatpush1.msra.mxu0 0.0
  %172 = vmatprep.subr.mxu0 0.0
  %173 = vmatpush1.msra.mxu0 0.0
  %174 = vmatprep.subr.mxu0 0.0
  %175 = vmatpush1.msra.mxu0 0.0
  %176 = vmatprep.subr.mxu0 0.0
  %177 = vmatpush1.msra.mxu0 0.0
  %178 = vmatprep.subr.mxu0 0.0
  %179 = vmatpush1.msra.mxu0 0.0
  %180 = vmatprep.subr.mxu0 0.0
  %181 = vmatpush1.msra.mxu0 0.0
  %182 = vmatprep.subr.mxu0 0.0
  %183 = vmatpush1.msra.mxu0 0.0
  %184 = vmatprep.subr.mxu0 0.0
  %185 = vmatpush1.msra.mxu0 0.0
  %186 = vmatprep.subr.mxu0 0.0
  %187 = vmatpush1.msra.mxu0 0.0
  %188 = vmatprep.mubr.f32.mxu0 0.0
  %189 = vmatmul.mubr.f32.gmra.mrb[0].mxu0 %v20
  %v190 = vpop.f32.mrb[0].mxu0
  %v191 = vadd.f32 %v121, %v190
  %v192 = vpop.f32.mrb[0].mxu0
  %193 = vdwg.mxu0
  %v194 = vld [vmem:[%s4] sm:$0x1]
  %v196 = vlaneseq
  %v197 = vshrl.u32 %v196, 7
  %v198 = vsub.s32 0, %v197
  %v199 = vrot.slane %v194, %v198
  %v201 = vadd.f32 %v191, %v199
  %202 = vmax.xlane.f32.xlu0 %v201
  %v203 = vpop.xlane.xlu0 %202
  %v204 = vsub.f32 %v201, %v203
  %v205 = vmul.f32 %v204, 1.442695
  %v206 = vpow.pop %v205
  %207 = vadd.xlane.f32.xlu0 %v206
  %v208 = vpop.xlane.xlu0 %207
  %v209 = vlog2.pop %v208
  %v210 = vmul.f32 %v209, 0.6931472
  %v211 = vsub.f32 %v204, %v210
  %212 = vst [vmem:[%s5] sm:$0xff] %v211
  // Predicated region
  $region22: #{bigru_forward.9} parent=0 // pred_check
    _
  $region23: #{bigru_forward.9} parent=0 // pred_check_branch
    %214 = sbr.rel (0) target = $region25
  $region24: #{bigru_forward.9} parent=0 // pred_region
    _
  $region25: #{bigru_forward.9} parent=0 // pred_fallthru
    _
  // Predicated region
  $region26: #{bigru_forward.9} parent=0 // pred_check
    _
  $region27: #{bigru_forward.9} parent=0 // pred_check_branch
    %216 = sbr.rel (0) target = $region29
  $region28: #{bigru_forward.9} parent=0 // pred_region
    _
  $region29: #{bigru_forward.9} parent=0 // pred_fallthru
    _

</llo_original>
